<compile_context>
chip_gen: v5e
topology: v5e:2x2
jax: 0.10.0
libtpu: 0.0.40
codegen_flags: <defaults>
</compile_context>

<pallas_src>
import functools

import jax
import jax.numpy as jnp
from jax import lax
from jax.experimental import pallas as pl
from jax.experimental.pallas import tpu as pltpu

P_MAX = 5                      # max padding among the three dilated convs
DILATIONS = (1, 3, 5)
KOFFS = (-1, 0, 1)             # 3x3 tap offsets
BN_EPS = 1e-5


def _round_up(x, m):
    return (x + m - 1) // m * m


def ms_kernel(xrep_ref, xres_ref, wcol_ref, gcol_ref, bcol_ref, o_ref,
              *, C, N, H, W, WP, center):
    """Whole (tiny) problem in one grid step, everything resident in VMEM.

    Sublane layout everywhere: s = n*C + co  (n-major == NCHW order).

    xrep_ref: (C, C*N, L)   f32  zero-padded input planes; [ci, n*C + *, :] is
                                 plane (ci, n) flattened with row stride WP,
                                 replicated over the co sub-index so every tap
                                 is one sublane-dense (C*N, SPAN) slice.
    xres_ref: (C*N, SPAN)   f32  x itself in output layout (residual term).
    wcol_ref: (9*C, C*N, 1) f32  wcol[t*C+ci, n*C+co] = w[co, ci, ky, kx]
                                 with t = (ky+1)*3 + (kx+1).
    gcol_ref: (C*N, 1)      f32  gamma[co] per sublane.
    bcol_ref: (C*N, 1)      f32  beta[co]  per sublane.
    o_ref:    (C*N, SPAN)        output in padded-row layout (wrapper crops
                                 the WP-W pad columns; order already NCHW).
    """
    NC = C * N
    SPAN = o_ref.shape[-1]

    # ---- three dilated 3x3 convs (dilation innermost: weight reuse x3) ----
    accs = [None] * len(DILATIONS)
    for kyi, ky in enumerate(KOFFS):
        for kxi, kx in enumerate(KOFFS):
            t = kyi * 3 + kxi
            for ci in range(C):
                # (NC,1) weight column, lane-broadcast once, reused 3x
                wb = jnp.broadcast_to(wcol_ref[t * C + ci], (NC, SPAN))
                for di, d in enumerate(DILATIONS):
                    start = center + (ky * WP + kx) * d        # static offset
                    win = xrep_ref[ci, :, start:start + SPAN]  # (NC, SPAN)
                    term = win * wb                            # VPU FMA, 8/8 dense
                    accs[di] = term if accs[di] is None else accs[di] + term

    # ---- per-dilation BatchNorm2d (training-mode stats) + residual sum ----
    lane = lax.broadcasted_iota(jnp.int32, (NC, SPAN), 1)
    mask = ((lane & (WP - 1)) < W).astype(jnp.float32)   # valid output pixels
    inv_count = 1.0 / float(N * H * W)

    out = xres_ref[...].astype(jnp.float32)              # residual term: x
    for acc in accs:
        m = acc * mask
        s1 = jnp.sum(m, axis=1, keepdims=True)            # (NC,1) per-(n,co)
        s2 = jnp.sum(m * acc, axis=1, keepdims=True)
        # cross-batch finish: sublane s pairs with s +/- C (mod NC); summing
        # rolls by every multiple of C is roll-direction independent.
        t1, t2 = s1, s2
        for nstep in range(1, N):
            t1 = t1 + pltpu.roll(s1, shift=nstep * C, axis=0)
            t2 = t2 + pltpu.roll(s2, shift=nstep * C, axis=0)
        mean = t1 * inv_count
        # one-pass biased variance (adequate for the 0.01-std init weights)
        var = t2 * inv_count - mean * mean
        scale = gcol_ref[...] * lax.rsqrt(var + BN_EPS)    # (NC,1)
        shift = bcol_ref[...] - mean * scale
        out = out + acc * scale + shift                    # (NC,1) lane-bcast

    o_ref[...] = out.astype(o_ref.dtype)                   # one unmasked store


@jax.jit
def ms_forward(x_nchw, weights, gamma, beta):
    """x_nchw: (N, C, H, W); weights: (Cout, Cin, 3, 3) PyTorch OIHW layout."""
    N, C, H, W = x_nchw.shape
    NC = N * C
    P = P_MAX
    HP = H + 2 * P
    WP = _round_up(W + 2 * P, 8)          # padded row stride (32 here)
    assert WP & (WP - 1) == 0, "mask uses & (WP-1); WP must be a power of two"
    SPAN = H * WP                         # 512 -> unmasked (8, 512) slab store
    assert SPAN % 128 == 0
    center = P * WP + P                   # flat index of output pixel (0, 0)
    max_off = P * WP + P                  # largest |tap offset| (d = P)
    L = _round_up(max(HP * WP, center + max_off + SPAN), 128)

    xf = x_nchw.astype(jnp.float32)

    # padded planes, replicated over the co sub-index (sublane s = n*C + co)
    x_cn = jnp.transpose(xf, (1, 0, 2, 3))                          # (C,N,H,W)
    xp = jnp.pad(x_cn, ((0, 0), (0, 0), (P, P), (P, WP - W - P)))   # (C,N,HP,WP)
    xflat = jnp.pad(xp.reshape(C, N, HP * WP),
                    ((0, 0), (0, 0), (0, L - HP * WP)))             # (C,N,L)
    xrep = jnp.broadcast_to(xflat[:, :, None, :], (C, N, C, L)).reshape(C, NC, L)

    # residual in output layout: sublane n*C+co, lane h*WP+w (zeros for w>=W)
    xres = jnp.pad(xf, ((0, 0), (0, 0), (0, 0), (0, WP - W))).reshape(NC, SPAN)

    # weight columns: wcol[(ky*3+kx)*C + ci, n*C + co] = w[co, ci, ky, kx]
    w_t = jnp.transpose(weights.astype(jnp.float32), (2, 3, 1, 0))  # (3,3,ci,co)
    wcol = jnp.tile(w_t, (1, 1, 1, N)).reshape(9 * C, NC, 1)

    gcol = jnp.tile(gamma.astype(jnp.float32).reshape(-1), (N,)).reshape(NC, 1)
    bcol = jnp.tile(beta.astype(jnp.float32).reshape(-1), (N,)).reshape(NC, 1)

    kernel = functools.partial(ms_kernel, C=C, N=N, H=H, W=W, WP=WP,
                               center=center)
    out_pad = pl.pallas_call(
        kernel,
        out_shape=jax.ShapeDtypeStruct((NC, SPAN), x_nchw.dtype),
        in_specs=[pl.BlockSpec(memory_space=pltpu.MemorySpace.VMEM)] * 5,
        out_specs=pl.BlockSpec(memory_space=pltpu.MemorySpace.VMEM),
    )(xrep, xres, wcol, gcol, bcol)

    # crop the WP-W pad columns; sublane order is already NCHW (no transpose)
    return out_pad.reshape(N, C, H, WP)[:, :, :, :W]


def ms_reference(x, weights, gamma, beta):
    """Pure-JAX reference mirroring the PyTorch forward (training-mode BN)."""
    out = x
    g = gamma.reshape(1, -1, 1, 1)
    b = beta.reshape(1, -1, 1, 1)
    for d in DILATIONS:
        conv = jax.lax.conv_general_dilated(
            x, weights, window_strides=(1, 1),
            padding=((d, d), (d, d)), rhs_dilation=(d, d),
            dimension_numbers=("NCHW", "OIHW", "NCHW"))
        mean = conv.mean(axis=(0, 2, 3), keepdims=True)
        var = jnp.square(conv - mean).mean(axis=(0, 2, 3), keepdims=True)
        out = out + (conv - mean) * jax.lax.rsqrt(var + BN_EPS) * g + b
    return out


if __name__ == "__main__":
    key = jax.random.PRNGKey(0)
    k_x, k_w = jax.random.split(key)

    N, C, H, W = 2, 4, 16, 16
    x = jax.random.normal(k_x, (N, C, H, W), jnp.float32)
    # Parameter(torch.zeros(C, C, 3, 3)).normal_(std=0.01)
    weights = 0.01 * jax.random.normal(k_w, (C, C, 3, 3), jnp.float32)
    # BatchNorm2d default init
    gamma = jnp.ones((C,), jnp.float32)
    beta = jnp.zeros((C,), jnp.float32)

    out = ms_forward(x, weights, gamma, beta)
    out = jax.block_until_ready(out)

    ref = ms_reference(x, weights, gamma, beta)
    max_err = float(jnp.max(jnp.abs(out - ref)))
    assert out.shape == (N, C, H, W)
    assert max_err < 1e-4, f"mismatch vs reference, max abs err = {max_err}"

    print("KERNEL_OK")
</pallas_src>

<mosaic_0001>
module attributes {stable_mosaic.version = 11 : i64} {
  func.func @ms_kernel(%arg0: memref<4x8x896xf32, #tpu.memory_space<vmem>>, %arg1: memref<8x512xf32, #tpu.memory_space<vmem>>, %arg2: memref<36x8x1xf32, #tpu.memory_space<vmem>>, %arg3: memref<8x1xf32, #tpu.memory_space<vmem>>, %arg4: memref<8x1xf32, #tpu.memory_space<vmem>>, %arg5: memref<8x512xf32, #tpu.memory_space<vmem>>) attributes {dimension_semantics = [], scalar_prefetch = 0 : i64, scratch_operands = 0 : i64, tpu.core_type = #tpu.core_type<tc>} {
    %c0 = arith.constant 0 : index
    %c0_0 = arith.constant 0 : index
    %c0_1 = arith.constant 0 : index
    %0 = vector.load %arg2[%c0, %c0_0, %c0_1] : memref<36x8x1xf32, #tpu.memory_space<vmem>>, vector<1x8x1xf32>
    %1 = vector.shape_cast %0 : vector<1x8x1xf32> to vector<8x1xf32>
    %2 = vector.shape_cast %1 : vector<8x1xf32> to vector<8x1xf32>
    %3 = vector.broadcast %2 : vector<8x1xf32> to vector<8x512xf32>
    %c0_2 = arith.constant 0 : index
    %c0_3 = arith.constant 0 : index
    %c132 = arith.constant 132 : index
    %4 = vector.load %arg0[%c0_2, %c0_3, %c132] : memref<4x8x896xf32, #tpu.memory_space<vmem>>, vector<1x8x512xf32>
    %5 = vector.shape_cast %4 : vector<1x8x512xf32> to vector<8x512xf32>
    %6 = arith.mulf %5, %3 : vector<8x512xf32>
    %c0_4 = arith.constant 0 : index
    %c0_5 = arith.constant 0 : index
    %c66 = arith.constant 66 : index
    %7 = vector.load %arg0[%c0_4, %c0_5, %c66] : memref<4x8x896xf32, #tpu.memory_space<vmem>>, vector<1x8x512xf32>
    %8 = vector.shape_cast %7 : vector<1x8x512xf32> to vector<8x512xf32>
    %9 = arith.mulf %8, %3 : vector<8x512xf32>
    %c0_6 = arith.constant 0 : index
    %c0_7 = arith.constant 0 : index
    %c0_8 = arith.constant 0 : index
    %10 = vector.load %arg0[%c0_6, %c0_7, %c0_8] : memref<4x8x896xf32, #tpu.memory_space<vmem>>, vector<1x8x512xf32>
    %11 = vector.shape_cast %10 : vector<1x8x512xf32> to vector<8x512xf32>
    %12 = arith.mulf %11, %3 : vector<8x512xf32>
    %c1 = arith.constant 1 : index
    %c0_9 = arith.constant 0 : index
    %c0_10 = arith.constant 0 : index
    %13 = vector.load %arg2[%c1, %c0_9, %c0_10] : memref<36x8x1xf32, #tpu.memory_space<vmem>>, vector<1x8x1xf32>
    %14 = vector.shape_cast %13 : vector<1x8x1xf32> to vector<8x1xf32>
    %15 = vector.shape_cast %14 : vector<8x1xf32> to vector<8x1xf32>
    %16 = vector.broadcast %15 : vector<8x1xf32> to vector<8x512xf32>
    %c1_11 = arith.constant 1 : index
    %c0_12 = arith.constant 0 : index
    %c132_13 = arith.constant 132 : index
    %17 = vector.load %arg0[%c1_11, %c0_12, %c132_13] : memref<4x8x896xf32, #tpu.memory_space<vmem>>, vector<1x8x512xf32>
    %18 = vector.shape_cast %17 : vector<1x8x512xf32> to vector<8x512xf32>
    %19 = arith.mulf %18, %16 : vector<8x512xf32>
    %20 = arith.addf %6, %19 : vector<8x512xf32>
    %c1_14 = arith.constant 1 : index
    %c0_15 = arith.constant 0 : index
    %c66_16 = arith.constant 66 : index
    %21 = vector.load %arg0[%c1_14, %c0_15, %c66_16] : memref<4x8x896xf32, #tpu.memory_space<vmem>>, vector<1x8x512xf32>
    %22 = vector.shape_cast %21 : vector<1x8x512xf32> to vector<8x512xf32>
    %23 = arith.mulf %22, %16 : vector<8x512xf32>
    %24 = arith.addf %9, %23 : vector<8x512xf32>
    %c1_17 = arith.constant 1 : index
    %c0_18 = arith.constant 0 : index
    %c0_19 = arith.constant 0 : index
    %25 = vector.load %arg0[%c1_17, %c0_18, %c0_19] : memref<4x8x896xf32, #tpu.memory_space<vmem>>, vector<1x8x512xf32>
    %26 = vector.shape_cast %25 : vector<1x8x512xf32> to vector<8x512xf32>
    %27 = arith.mulf %26, %16 : vector<8x512xf32>
    %28 = arith.addf %12, %27 : vector<8x512xf32>
    %c2 = arith.constant 2 : index
    %c0_20 = arith.constant 0 : index
    %c0_21 = arith.constant 0 : index
    %29 = vector.load %arg2[%c2, %c0_20, %c0_21] : memref<36x8x1xf32, #tpu.memory_space<vmem>>, vector<1x8x1xf32>
    %30 = vector.shape_cast %29 : vector<1x8x1xf32> to vector<8x1xf32>
    %31 = vector.shape_cast %30 : vector<8x1xf32> to vector<8x1xf32>
    %32 = vector.broadcast %31 : vector<8x1xf32> to vector<8x512xf32>
    %c2_22 = arith.constant 2 : index
    %c0_23 = arith.constant 0 : index
    %c132_24 = arith.constant 132 : index
    %33 = vector.load %arg0[%c2_22, %c0_23, %c132_24] : memref<4x8x896xf32, #tpu.memory_space<vmem>>, vector<1x8x512xf32>
    %34 = vector.shape_cast %33 : vector<1x8x512xf32> to vector<8x512xf32>
    %35 = arith.mulf %34, %32 : vector<8x512xf32>
    %36 = arith.addf %20, %35 : vector<8x512xf32>
    %c2_25 = arith.constant 2 : index
    %c0_26 = arith.constant 0 : index
    %c66_27 = arith.constant 66 : index
    %37 = vector.load %arg0[%c2_25, %c0_26, %c66_27] : memref<4x8x896xf32, #tpu.memory_space<vmem>>, vector<1x8x512xf32>
    %38 = vector.shape_cast %37 : vector<1x8x512xf32> to vector<8x512xf32>
    %39 = arith.mulf %38, %32 : vector<8x512xf32>
    %40 = arith.addf %24, %39 : vector<8x512xf32>
    %c2_28 = arith.constant 2 : index
    %c0_29 = arith.constant 0 : index
    %c0_30 = arith.constant 0 : index
    %41 = vector.load %arg0[%c2_28, %c0_29, %c0_30] : memref<4x8x896xf32, #tpu.memory_space<vmem>>, vector<1x8x512xf32>
    %42 = vector.shape_cast %41 : vector<1x8x512xf32> to vector<8x512xf32>
    %43 = arith.mulf %42, %32 : vector<8x512xf32>
    %44 = arith.addf %28, %43 : vector<8x512xf32>
    %c3 = arith.constant 3 : index
    %c0_31 = arith.constant 0 : index
    %c0_32 = arith.constant 0 : index
    %45 = vector.load %arg2[%c3, %c0_31, %c0_32] : memref<36x8x1xf32, #tpu.memory_space<vmem>>, vector<1x8x1xf32>
    %46 = vector.shape_cast %45 : vector<1x8x1xf32> to vector<8x1xf32>
    %47 = vector.shape_cast %46 : vector<8x1xf32> to vector<8x1xf32>
    %48 = vector.broadcast %47 : vector<8x1xf32> to vector<8x512xf32>
    %c3_33 = arith.constant 3 : index
    %c0_34 = arith.constant 0 : index
    %c132_35 = arith.constant 132 : index
    %49 = vector.load %arg0[%c3_33, %c0_34, %c132_35] : memref<4x8x896xf32, #tpu.memory_space<vmem>>, vector<1x8x512xf32>
    %50 = vector.shape_cast %49 : vector<1x8x512xf32> to vector<8x512xf32>
    %51 = arith.mulf %50, %48 : vector<8x512xf32>
    %52 = arith.addf %36, %51 : vector<8x512xf32>
    %c3_36 = arith.constant 3 : index
    %c0_37 = arith.constant 0 : index
    %c66_38 = arith.constant 66 : index
    %53 = vector.load %arg0[%c3_36, %c0_37, %c66_38] : memref<4x8x896xf32, #tpu.memory_space<vmem>>, vector<1x8x512xf32>
    %54 = vector.shape_cast %53 : vector<1x8x512xf32> to vector<8x512xf32>
    %55 = arith.mulf %54, %48 : vector<8x512xf32>
    %56 = arith.addf %40, %55 : vector<8x512xf32>
    %c3_39 = arith.constant 3 : index
    %c0_40 = arith.constant 0 : index
    %c0_41 = arith.constant 0 : index
    %57 = vector.load %arg0[%c3_39, %c0_40, %c0_41] : memref<4x8x896xf32, #tpu.memory_space<vmem>>, vector<1x8x512xf32>
    %58 = vector.shape_cast %57 : vector<1x8x512xf32> to vector<8x512xf32>
    %59 = arith.mulf %58, %48 : vector<8x512xf32>
    %60 = arith.addf %44, %59 : vector<8x512xf32>
    %c4 = arith.constant 4 : index
    %c0_42 = arith.constant 0 : index
    %c0_43 = arith.constant 0 : index
    %61 = vector.load %arg2[%c4, %c0_42, %c0_43] : memref<36x8x1xf32, #tpu.memory_space<vmem>>, vector<1x8x1xf32>
    %62 = vector.shape_cast %61 : vector<1x8x1xf32> to vector<8x1xf32>
    %63 = vector.shape_cast %62 : vector<8x1xf32> to vector<8x1xf32>
    %64 = vector.broadcast %63 : vector<8x1xf32> to vector<8x512xf32>
    %c0_44 = arith.constant 0 : index
    %c0_45 = arith.constant 0 : index
    %c133 = arith.constant 133 : index
    %65 = vector.load %arg0[%c0_44, %c0_45, %c133] : memref<4x8x896xf32, #tpu.memory_space<vmem>>, vector<1x8x512xf32>
    %66 = vector.shape_cast %65 : vector<1x8x512xf32> to vector<8x512xf32>
    %67 = arith.mulf %66, %64 : vector<8x512xf32>
    %68 = arith.addf %52, %67 : vector<8x512xf32>
    %c0_46 = arith.constant 0 : index
    %c0_47 = arith.constant 0 : index
    %c69 = arith.constant 69 : index
    %69 = vector.load %arg0[%c0_46, %c0_47, %c69] : memref<4x8x896xf32, #tpu.memory_space<vmem>>, vector<1x8x512xf32>
    %70 = vector.shape_cast %69 : vector<1x8x512xf32> to vector<8x512xf32>
    %71 = arith.mulf %70, %64 : vector<8x512xf32>
    %72 = arith.addf %56, %71 : vector<8x512xf32>
    %c0_48 = arith.constant 0 : index
    %c0_49 = arith.constant 0 : index
    %c5 = arith.constant 5 : index
    %73 = vector.load %arg0[%c0_48, %c0_49, %c5] : memref<4x8x896xf32, #tpu.memory_space<vmem>>, vector<1x8x512xf32>
    %74 = vector.shape_cast %73 : vector<1x8x512xf32> to vector<8x512xf32>
    %75 = arith.mulf %74, %64 : vector<8x512xf32>
    %76 = arith.addf %60, %75 : vector<8x512xf32>
    %c5_50 = arith.constant 5 : index
    %c0_51 = arith.constant 0 : index
    %c0_52 = arith.constant 0 : index
    %77 = vector.load %arg2[%c5_50, %c0_51, %c0_52] : memref<36x8x1xf32, #tpu.memory_space<vmem>>, vector<1x8x1xf32>
    %78 = vector.shape_cast %77 : vector<1x8x1xf32> to vector<8x1xf32>
    %79 = vector.shape_cast %78 : vector<8x1xf32> to vector<8x1xf32>
    %80 = vector.broadcast %79 : vector<8x1xf32> to vector<8x512xf32>
    %c1_53 = arith.constant 1 : index
    %c0_54 = arith.constant 0 : index
    %c133_55 = arith.constant 133 : index
    %81 = vector.load %arg0[%c1_53, %c0_54, %c133_55] : memref<4x8x896xf32, #tpu.memory_space<vmem>>, vector<1x8x512xf32>
    %82 = vector.shape_cast %81 : vector<1x8x512xf32> to vector<8x512xf32>
    %83 = arith.mulf %82, %80 : vector<8x512xf32>
    %84 = arith.addf %68, %83 : vector<8x512xf32>
    %c1_56 = arith.constant 1 : index
    %c0_57 = arith.constant 0 : index
    %c69_58 = arith.constant 69 : index
    %85 = vector.load %arg0[%c1_56, %c0_57, %c69_58] : memref<4x8x896xf32, #tpu.memory_space<vmem>>, vector<1x8x512xf32>
    %86 = vector.shape_cast %85 : vector<1x8x512xf32> to vector<8x512xf32>
    %87 = arith.mulf %86, %80 : vector<8x512xf32>
    %88 = arith.addf %72, %87 : vector<8x512xf32>
    %c1_59 = arith.constant 1 : index
    %c0_60 = arith.constant 0 : index
    %c5_61 = arith.constant 5 : index
    %89 = vector.load %arg0[%c1_59, %c0_60, %c5_61] : memref<4x8x896xf32, #tpu.memory_space<vmem>>, vector<1x8x512xf32>
    %90 = vector.shape_cast %89 : vector<1x8x512xf32> to vector<8x512xf32>
    %91 = arith.mulf %90, %80 : vector<8x512xf32>
    %92 = arith.addf %76, %91 : vector<8x512xf32>
    %c6 = arith.constant 6 : index
    %c0_62 = arith.constant 0 : index
    %c0_63 = arith.constant 0 : index
    %93 = vector.load %arg2[%c6, %c0_62, %c0_63] : memref<36x8x1xf32, #tpu.memory_space<vmem>>, vector<1x8x1xf32>
    %94 = vector.shape_cast %93 : vector<1x8x1xf32> to vector<8x1xf32>
    %95 = vector.shape_cast %94 : vector<8x1xf32> to vector<8x1xf32>
    %96 = vector.broadcast %95 : vector<8x1xf32> to vector<8x512xf32>
    %c2_64 = arith.constant 2 : index
    %c0_65 = arith.constant 0 : index
    %c133_66 = arith.constant 133 : index
    %97 = vector.load %arg0[%c2_64, %c0_65, %c133_66] : memref<4x8x896xf32, #tpu.memory_space<vmem>>, vector<1x8x512xf32>
    %98 = vector.shape_cast %97 : vector<1x8x512xf32> to vector<8x512xf32>
    %99 = arith.mulf %98, %96 : vector<8x512xf32>
    %100 = arith.addf %84, %99 : vector<8x512xf32>
    %c2_67 = arith.constant 2 : index
    %c0_68 = arith.constant 0 : index
    %c69_69 = arith.constant 69 : index
    %101 = vector.load %arg0[%c2_67, %c0_68, %c69_69] : memref<4x8x896xf32, #tpu.memory_space<vmem>>, vector<1x8x512xf32>
    %102 = vector.shape_cast %101 : vector<1x8x512xf32> to vector<8x512xf32>
    %103 = arith.mulf %102, %96 : vector<8x512xf32>
    %104 = arith.addf %88, %103 : vector<8x512xf32>
    %c2_70 = arith.constant 2 : index
    %c0_71 = arith.constant 0 : index
    %c5_72 = arith.constant 5 : index
    %105 = vector.load %arg0[%c2_70, %c0_71, %c5_72] : memref<4x8x896xf32, #tpu.memory_space<vmem>>, vector<1x8x512xf32>
    %106 = vector.shape_cast %105 : vector<1x8x512xf32> to vector<8x512xf32>
    %107 = arith.mulf %106, %96 : vector<8x512xf32>
    %108 = arith.addf %92, %107 : vector<8x512xf32>
    %c7 = arith.constant 7 : index
    %c0_73 = arith.constant 0 : index
    %c0_74 = arith.constant 0 : index
    %109 = vector.load %arg2[%c7, %c0_73, %c0_74] : memref<36x8x1xf32, #tpu.memory_space<vmem>>, vector<1x8x1xf32>
    %110 = vector.shape_cast %109 : vector<1x8x1xf32> to vector<8x1xf32>
    %111 = vector.shape_cast %110 : vector<8x1xf32> to vector<8x1xf32>
    %112 = vector.broadcast %111 : vector<8x1xf32> to vector<8x512xf32>
    %c3_75 = arith.constant 3 : index
    %c0_76 = arith.constant 0 : index
    %c133_77 = arith.constant 133 : index
    %113 = vector.load %arg0[%c3_75, %c0_76, %c133_77] : memref<4x8x896xf32, #tpu.memory_space<vmem>>, vector<1x8x512xf32>
    %114 = vector.shape_cast %113 : vector<1x8x512xf32> to vector<8x512xf32>
    %115 = arith.mulf %114, %112 : vector<8x512xf32>
    %116 = arith.addf %100, %115 : vector<8x512xf32>
    %c3_78 = arith.constant 3 : index
    %c0_79 = arith.constant 0 : index
    %c69_80 = arith.constant 69 : index
    %117 = vector.load %arg0[%c3_78, %c0_79, %c69_80] : memref<4x8x896xf32, #tpu.memory_space<vmem>>, vector<1x8x512xf32>
    %118 = vector.shape_cast %117 : vector<1x8x512xf32> to vector<8x512xf32>
    %119 = arith.mulf %118, %112 : vector<8x512xf32>
    %120 = arith.addf %104, %119 : vector<8x512xf32>
    %c3_81 = arith.constant 3 : index
    %c0_82 = arith.constant 0 : index
    %c5_83 = arith.constant 5 : index
    %121 = vector.load %arg0[%c3_81, %c0_82, %c5_83] : memref<4x8x896xf32, #tpu.memory_space<vmem>>, vector<1x8x512xf32>
    %122 = vector.shape_cast %121 : vector<1x8x512xf32> to vector<8x512xf32>
    %123 = arith.mulf %122, %112 : vector<8x512xf32>
    %124 = arith.addf %108, %123 : vector<8x512xf32>
    %c8 = arith.constant 8 : index
    %c0_84 = arith.constant 0 : index
    %c0_85 = arith.constant 0 : index
    %125 = vector.load %arg2[%c8, %c0_84, %c0_85] : memref<36x8x1xf32, #tpu.memory_space<vmem>>, vector<1x8x1xf32>
    %126 = vector.shape_cast %125 : vector<1x8x1xf32> to vector<8x1xf32>
    %127 = vector.shape_cast %126 : vector<8x1xf32> to vector<8x1xf32>
    %128 = vector.broadcast %127 : vector<8x1xf32> to vector<8x512xf32>
    %c0_86 = arith.constant 0 : index
    %c0_87 = arith.constant 0 : index
    %c134 = arith.constant 134 : index
    %129 = vector.load %arg0[%c0_86, %c0_87, %c134] : memref<4x8x896xf32, #tpu.memory_space<vmem>>, vector<1x8x512xf32>
    %130 = vector.shape_cast %129 : vector<1x8x512xf32> to vector<8x512xf32>
    %131 = arith.mulf %130, %128 : vector<8x512xf32>
    %132 = arith.addf %116, %131 : vector<8x512xf32>
    %c0_88 = arith.constant 0 : index
    %c0_89 = arith.constant 0 : index
    %c72 = arith.constant 72 : index
    %133 = vector.load %arg0[%c0_88, %c0_89, %c72] : memref<4x8x896xf32, #tpu.memory_space<vmem>>, vector<1x8x512xf32>
    %134 = vector.shape_cast %133 : vector<1x8x512xf32> to vector<8x512xf32>
    %135 = arith.mulf %134, %128 : vector<8x512xf32>
    %136 = arith.addf %120, %135 : vector<8x512xf32>
    %c0_90 = arith.constant 0 : index
    %c0_91 = arith.constant 0 : index
    %c10 = arith.constant 10 : index
    %137 = vector.load %arg0[%c0_90, %c0_91, %c10] : memref<4x8x896xf32, #tpu.memory_space<vmem>>, vector<1x8x512xf32>
    %138 = vector.shape_cast %137 : vector<1x8x512xf32> to vector<8x512xf32>
    %139 = arith.mulf %138, %128 : vector<8x512xf32>
    %140 = arith.addf %124, %139 : vector<8x512xf32>
    %c9 = arith.constant 9 : index
    %c0_92 = arith.constant 0 : index
    %c0_93 = arith.constant 0 : index
    %141 = vector.load %arg2[%c9, %c0_92, %c0_93] : memref<36x8x1xf32, #tpu.memory_space<vmem>>, vector<1x8x1xf32>
    %142 = vector.shape_cast %141 : vector<1x8x1xf32> to vector<8x1xf32>
    %143 = vector.shape_cast %142 : vector<8x1xf32> to vector<8x1xf32>
    %144 = vector.broadcast %143 : vector<8x1xf32> to vector<8x512xf32>
    %c1_94 = arith.constant 1 : index
    %c0_95 = arith.constant 0 : index
    %c134_96 = arith.constant 134 : index
    %145 = vector.load %arg0[%c1_94, %c0_95, %c134_96] : memref<4x8x896xf32, #tpu.memory_space<vmem>>, vector<1x8x512xf32>
    %146 = vector.shape_cast %145 : vector<1x8x512xf32> to vector<8x512xf32>
    %147 = arith.mulf %146, %144 : vector<8x512xf32>
    %148 = arith.addf %132, %147 : vector<8x512xf32>
    %c1_97 = arith.constant 1 : index
    %c0_98 = arith.constant 0 : index
    %c72_99 = arith.constant 72 : index
    %149 = vector.load %arg0[%c1_97, %c0_98, %c72_99] : memref<4x8x896xf32, #tpu.memory_space<vmem>>, vector<1x8x512xf32>
    %150 = vector.shape_cast %149 : vector<1x8x512xf32> to vector<8x512xf32>
    %151 = arith.mulf %150, %144 : vector<8x512xf32>
    %152 = arith.addf %136, %151 : vector<8x512xf32>
    %c1_100 = arith.constant 1 : index
    %c0_101 = arith.constant 0 : index
    %c10_102 = arith.constant 10 : index
    %153 = vector.load %arg0[%c1_100, %c0_101, %c10_102] : memref<4x8x896xf32, #tpu.memory_space<vmem>>, vector<1x8x512xf32>
    %154 = vector.shape_cast %153 : vector<1x8x512xf32> to vector<8x512xf32>
    %155 = arith.mulf %154, %144 : vector<8x512xf32>
    %156 = arith.addf %140, %155 : vector<8x512xf32>
    %c10_103 = arith.constant 10 : index
    %c0_104 = arith.constant 0 : index
    %c0_105 = arith.constant 0 : index
    %157 = vector.load %arg2[%c10_103, %c0_104, %c0_105] : memref<36x8x1xf32, #tpu.memory_space<vmem>>, vector<1x8x1xf32>
    %158 = vector.shape_cast %157 : vector<1x8x1xf32> to vector<8x1xf32>
    %159 = vector.shape_cast %158 : vector<8x1xf32> to vector<8x1xf32>
    %160 = vector.broadcast %159 : vector<8x1xf32> to vector<8x512xf32>
    %c2_106 = arith.constant 2 : index
    %c0_107 = arith.constant 0 : index
    %c134_108 = arith.constant 134 : index
    %161 = vector.load %arg0[%c2_106, %c0_107, %c134_108] : memref<4x8x896xf32, #tpu.memory_space<vmem>>, vector<1x8x512xf32>
    %162 = vector.shape_cast %161 : vector<1x8x512xf32> to vector<8x512xf32>
    %163 = arith.mulf %162, %160 : vector<8x512xf32>
    %164 = arith.addf %148, %163 : vector<8x512xf32>
    %c2_109 = arith.constant 2 : index
    %c0_110 = arith.constant 0 : index
    %c72_111 = arith.constant 72 : index
    %165 = vector.load %arg0[%c2_109, %c0_110, %c72_111] : memref<4x8x896xf32, #tpu.memory_space<vmem>>, vector<1x8x512xf32>
    %166 = vector.shape_cast %165 : vector<1x8x512xf32> to vector<8x512xf32>
    %167 = arith.mulf %166, %160 : vector<8x512xf32>
    %168 = arith.addf %152, %167 : vector<8x512xf32>
    %c2_112 = arith.constant 2 : index
    %c0_113 = arith.constant 0 : index
    %c10_114 = arith.constant 10 : index
    %169 = vector.load %arg0[%c2_112, %c0_113, %c10_114] : memref<4x8x896xf32, #tpu.memory_space<vmem>>, vector<1x8x512xf32>
    %170 = vector.shape_cast %169 : vector<1x8x512xf32> to vector<8x512xf32>
    %171 = arith.mulf %170, %160 : vector<8x512xf32>
    %172 = arith.addf %156, %171 : vector<8x512xf32>
    %c11 = arith.constant 11 : index
    %c0_115 = arith.constant 0 : index
    %c0_116 = arith.constant 0 : index
    %173 = vector.load %arg2[%c11, %c0_115, %c0_116] : memref<36x8x1xf32, #tpu.memory_space<vmem>>, vector<1x8x1xf32>
    %174 = vector.shape_cast %173 : vector<1x8x1xf32> to vector<8x1xf32>
    %175 = vector.shape_cast %174 : vector<8x1xf32> to vector<8x1xf32>
    %176 = vector.broadcast %175 : vector<8x1xf32> to vector<8x512xf32>
    %c3_117 = arith.constant 3 : index
    %c0_118 = arith.constant 0 : index
    %c134_119 = arith.constant 134 : index
    %177 = vector.load %arg0[%c3_117, %c0_118, %c134_119] : memref<4x8x896xf32, #tpu.memory_space<vmem>>, vector<1x8x512xf32>
    %178 = vector.shape_cast %177 : vector<1x8x512xf32> to vector<8x512xf32>
    %179 = arith.mulf %178, %176 : vector<8x512xf32>
    %180 = arith.addf %164, %179 : vector<8x512xf32>
    %c3_120 = arith.constant 3 : index
    %c0_121 = arith.constant 0 : index
    %c72_122 = arith.constant 72 : index
    %181 = vector.load %arg0[%c3_120, %c0_121, %c72_122] : memref<4x8x896xf32, #tpu.memory_space<vmem>>, vector<1x8x512xf32>
    %182 = vector.shape_cast %181 : vector<1x8x512xf32> to vector<8x512xf32>
    %183 = arith.mulf %182, %176 : vector<8x512xf32>
    %184 = arith.addf %168, %183 : vector<8x512xf32>
    %c3_123 = arith.constant 3 : index
    %c0_124 = arith.constant 0 : index
    %c10_125 = arith.constant 10 : index
    %185 = vector.load %arg0[%c3_123, %c0_124, %c10_125] : memref<4x8x896xf32, #tpu.memory_space<vmem>>, vector<1x8x512xf32>
    %186 = vector.shape_cast %185 : vector<1x8x512xf32> to vector<8x512xf32>
    %187 = arith.mulf %186, %176 : vector<8x512xf32>
    %188 = arith.addf %172, %187 : vector<8x512xf32>
    %c12 = arith.constant 12 : index
    %c0_126 = arith.constant 0 : index
    %c0_127 = arith.constant 0 : index
    %189 = vector.load %arg2[%c12, %c0_126, %c0_127] : memref<36x8x1xf32, #tpu.memory_space<vmem>>, vector<1x8x1xf32>
    %190 = vector.shape_cast %189 : vector<1x8x1xf32> to vector<8x1xf32>
    %191 = vector.shape_cast %190 : vector<8x1xf32> to vector<8x1xf32>
    %192 = vector.broadcast %191 : vector<8x1xf32> to vector<8x512xf32>
    %c0_128 = arith.constant 0 : index
    %c0_129 = arith.constant 0 : index
    %c164 = arith.constant 164 : index
    %193 = vector.load %arg0[%c0_128, %c0_129, %c164] : memref<4x8x896xf32, #tpu.memory_space<vmem>>, vector<1x8x512xf32>
    %194 = vector.shape_cast %193 : vector<1x8x512xf32> to vector<8x512xf32>
    %195 = arith.mulf %194, %192 : vector<8x512xf32>
    %196 = arith.addf %180, %195 : vector<8x512xf32>
    %c0_130 = arith.constant 0 : index
    %c0_131 = arith.constant 0 : index
    %c162 = arith.constant 162 : index
    %197 = vector.load %arg0[%c0_130, %c0_131, %c162] : memref<4x8x896xf32, #tpu.memory_space<vmem>>, vector<1x8x512xf32>
    %198 = vector.shape_cast %197 : vector<1x8x512xf32> to vector<8x512xf32>
    %199 = arith.mulf %198, %192 : vector<8x512xf32>
    %200 = arith.addf %184, %199 : vector<8x512xf32>
    %c0_132 = arith.constant 0 : index
    %c0_133 = arith.constant 0 : index
    %c160 = arith.constant 160 : index
    %201 = vector.load %arg0[%c0_132, %c0_133, %c160] : memref<4x8x896xf32, #tpu.memory_space<vmem>>, vector<1x8x512xf32>
    %202 = vector.shape_cast %201 : vector<1x8x512xf32> to vector<8x512xf32>
    %203 = arith.mulf %202, %192 : vector<8x512xf32>
    %204 = arith.addf %188, %203 : vector<8x512xf32>
    %c13 = arith.constant 13 : index
    %c0_134 = arith.constant 0 : index
    %c0_135 = arith.constant 0 : index
    %205 = vector.load %arg2[%c13, %c0_134, %c0_135] : memref<36x8x1xf32, #tpu.memory_space<vmem>>, vector<1x8x1xf32>
    %206 = vector.shape_cast %205 : vector<1x8x1xf32> to vector<8x1xf32>
    %207 = vector.shape_cast %206 : vector<8x1xf32> to vector<8x1xf32>
    %208 = vector.broadcast %207 : vector<8x1xf32> to vector<8x512xf32>
    %c1_136 = arith.constant 1 : index
    %c0_137 = arith.constant 0 : index
    %c164_138 = arith.constant 164 : index
    %209 = vector.load %arg0[%c1_136, %c0_137, %c164_138] : memref<4x8x896xf32, #tpu.memory_space<vmem>>, vector<1x8x512xf32>
    %210 = vector.shape_cast %209 : vector<1x8x512xf32> to vector<8x512xf32>
    %211 = arith.mulf %210, %208 : vector<8x512xf32>
    %212 = arith.addf %196, %211 : vector<8x512xf32>
    %c1_139 = arith.constant 1 : index
    %c0_140 = arith.constant 0 : index
    %c162_141 = arith.constant 162 : index
    %213 = vector.load %arg0[%c1_139, %c0_140, %c162_141] : memref<4x8x896xf32, #tpu.memory_space<vmem>>, vector<1x8x512xf32>
    %214 = vector.shape_cast %213 : vector<1x8x512xf32> to vector<8x512xf32>
    %215 = arith.mulf %214, %208 : vector<8x512xf32>
    %216 = arith.addf %200, %215 : vector<8x512xf32>
    %c1_142 = arith.constant 1 : index
    %c0_143 = arith.constant 0 : index
    %c160_144 = arith.constant 160 : index
    %217 = vector.load %arg0[%c1_142, %c0_143, %c160_144] : memref<4x8x896xf32, #tpu.memory_space<vmem>>, vector<1x8x512xf32>
    %218 = vector.shape_cast %217 : vector<1x8x512xf32> to vector<8x512xf32>
    %219 = arith.mulf %218, %208 : vector<8x512xf32>
    %220 = arith.addf %204, %219 : vector<8x512xf32>
    %c14 = arith.constant 14 : index
    %c0_145 = arith.constant 0 : index
    %c0_146 = arith.constant 0 : index
    %221 = vector.load %arg2[%c14, %c0_145, %c0_146] : memref<36x8x1xf32, #tpu.memory_space<vmem>>, vector<1x8x1xf32>
    %222 = vector.shape_cast %221 : vector<1x8x1xf32> to vector<8x1xf32>
    %223 = vector.shape_cast %222 : vector<8x1xf32> to vector<8x1xf32>
    %224 = vector.broadcast %223 : vector<8x1xf32> to vector<8x512xf32>
    %c2_147 = arith.constant 2 : index
    %c0_148 = arith.constant 0 : index
    %c164_149 = arith.constant 164 : index
    %225 = vector.load %arg0[%c2_147, %c0_148, %c164_149] : memref<4x8x896xf32, #tpu.memory_space<vmem>>, vector<1x8x512xf32>
    %226 = vector.shape_cast %225 : vector<1x8x512xf32> to vector<8x512xf32>
    %227 = arith.mulf %226, %224 : vector<8x512xf32>
    %228 = arith.addf %212, %227 : vector<8x512xf32>
    %c2_150 = arith.constant 2 : index
    %c0_151 = arith.constant 0 : index
    %c162_152 = arith.constant 162 : index
    %229 = vector.load %arg0[%c2_150, %c0_151, %c162_152] : memref<4x8x896xf32, #tpu.memory_space<vmem>>, vector<1x8x512xf32>
    %230 = vector.shape_cast %229 : vector<1x8x512xf32> to vector<8x512xf32>
    %231 = arith.mulf %230, %224 : vector<8x512xf32>
    %232 = arith.addf %216, %231 : vector<8x512xf32>
    %c2_153 = arith.constant 2 : index
    %c0_154 = arith.constant 0 : index
    %c160_155 = arith.constant 160 : index
    %233 = vector.load %arg0[%c2_153, %c0_154, %c160_155] : memref<4x8x896xf32, #tpu.memory_space<vmem>>, vector<1x8x512xf32>
    %234 = vector.shape_cast %233 : vector<1x8x512xf32> to vector<8x512xf32>
    %235 = arith.mulf %234, %224 : vector<8x512xf32>
    %236 = arith.addf %220, %235 : vector<8x512xf32>
    %c15 = arith.constant 15 : index
    %c0_156 = arith.constant 0 : index
    %c0_157 = arith.constant 0 : index
    %237 = vector.load %arg2[%c15, %c0_156, %c0_157] : memref<36x8x1xf32, #tpu.memory_space<vmem>>, vector<1x8x1xf32>
    %238 = vector.shape_cast %237 : vector<1x8x1xf32> to vector<8x1xf32>
    %239 = vector.shape_cast %238 : vector<8x1xf32> to vector<8x1xf32>
    %240 = vector.broadcast %239 : vector<8x1xf32> to vector<8x512xf32>
    %c3_158 = arith.constant 3 : index
    %c0_159 = arith.constant 0 : index
    %c164_160 = arith.constant 164 : index
    %241 = vector.load %arg0[%c3_158, %c0_159, %c164_160] : memref<4x8x896xf32, #tpu.memory_space<vmem>>, vector<1x8x512xf32>
    %242 = vector.shape_cast %241 : vector<1x8x512xf32> to vector<8x512xf32>
    %243 = arith.mulf %242, %240 : vector<8x512xf32>
    %244 = arith.addf %228, %243 : vector<8x512xf32>
    %c3_161 = arith.constant 3 : index
    %c0_162 = arith.constant 0 : index
    %c162_163 = arith.constant 162 : index
    %245 = vector.load %arg0[%c3_161, %c0_162, %c162_163] : memref<4x8x896xf32, #tpu.memory_space<vmem>>, vector<1x8x512xf32>
    %246 = vector.shape_cast %245 : vector<1x8x512xf32> to vector<8x512xf32>
    %247 = arith.mulf %246, %240 : vector<8x512xf32>
    %248 = arith.addf %232, %247 : vector<8x512xf32>
    %c3_164 = arith.constant 3 : index
    %c0_165 = arith.constant 0 : index
    %c160_166 = arith.constant 160 : index
    %249 = vector.load %arg0[%c3_164, %c0_165, %c160_166] : memref<4x8x896xf32, #tpu.memory_space<vmem>>, vector<1x8x512xf32>
    %250 = vector.shape_cast %249 : vector<1x8x512xf32> to vector<8x512xf32>
    %251 = arith.mulf %250, %240 : vector<8x512xf32>
    %252 = arith.addf %236, %251 : vector<8x512xf32>
    %c16 = arith.constant 16 : index
    %c0_167 = arith.constant 0 : index
    %c0_168 = arith.constant 0 : index
    %253 = vector.load %arg2[%c16, %c0_167, %c0_168] : memref<36x8x1xf32, #tpu.memory_space<vmem>>, vector<1x8x1xf32>
    %254 = vector.shape_cast %253 : vector<1x8x1xf32> to vector<8x1xf32>
    %255 = vector.shape_cast %254 : vector<8x1xf32> to vector<8x1xf32>
    %256 = vector.broadcast %255 : vector<8x1xf32> to vector<8x512xf32>
    %c0_169 = arith.constant 0 : index
    %c0_170 = arith.constant 0 : index
    %c165 = arith.constant 165 : index
    %257 = vector.load %arg0[%c0_169, %c0_170, %c165] : memref<4x8x896xf32, #tpu.memory_space<vmem>>, vector<1x8x512xf32>
    %258 = vector.shape_cast %257 : vector<1x8x512xf32> to vector<8x512xf32>
    %259 = arith.mulf %258, %256 : vector<8x512xf32>
    %260 = arith.addf %244, %259 : vector<8x512xf32>
    %c0_171 = arith.constant 0 : index
    %c0_172 = arith.constant 0 : index
    %c165_173 = arith.constant 165 : index
    %261 = vector.load %arg0[%c0_171, %c0_172, %c165_173] : memref<4x8x896xf32, #tpu.memory_space<vmem>>, vector<1x8x512xf32>
    %262 = vector.shape_cast %261 : vector<1x8x512xf32> to vector<8x512xf32>
    %263 = arith.mulf %262, %256 : vector<8x512xf32>
    %264 = arith.addf %248, %263 : vector<8x512xf32>
    %c0_174 = arith.constant 0 : index
    %c0_175 = arith.constant 0 : index
    %c165_176 = arith.constant 165 : index
    %265 = vector.load %arg0[%c0_174, %c0_175, %c165_176] : memref<4x8x896xf32, #tpu.memory_space<vmem>>, vector<1x8x512xf32>
    %266 = vector.shape_cast %265 : vector<1x8x512xf32> to vector<8x512xf32>
    %267 = arith.mulf %266, %256 : vector<8x512xf32>
    %268 = arith.addf %252, %267 : vector<8x512xf32>
    %c17 = arith.constant 17 : index
    %c0_177 = arith.constant 0 : index
    %c0_178 = arith.constant 0 : index
    %269 = vector.load %arg2[%c17, %c0_177, %c0_178] : memref<36x8x1xf32, #tpu.memory_space<vmem>>, vector<1x8x1xf32>
    %270 = vector.shape_cast %269 : vector<1x8x1xf32> to vector<8x1xf32>
    %271 = vector.shape_cast %270 : vector<8x1xf32> to vector<8x1xf32>
    %272 = vector.broadcast %271 : vector<8x1xf32> to vector<8x512xf32>
    %c1_179 = arith.constant 1 : index
    %c0_180 = arith.constant 0 : index
    %c165_181 = arith.constant 165 : index
    %273 = vector.load %arg0[%c1_179, %c0_180, %c165_181] : memref<4x8x896xf32, #tpu.memory_space<vmem>>, vector<1x8x512xf32>
    %274 = vector.shape_cast %273 : vector<1x8x512xf32> to vector<8x512xf32>
    %275 = arith.mulf %274, %272 : vector<8x512xf32>
    %276 = arith.addf %260, %275 : vector<8x512xf32>
    %c1_182 = arith.constant 1 : index
    %c0_183 = arith.constant 0 : index
    %c165_184 = arith.constant 165 : index
    %277 = vector.load %arg0[%c1_182, %c0_183, %c165_184] : memref<4x8x896xf32, #tpu.memory_space<vmem>>, vector<1x8x512xf32>
    %278 = vector.shape_cast %277 : vector<1x8x512xf32> to vector<8x512xf32>
    %279 = arith.mulf %278, %272 : vector<8x512xf32>
    %280 = arith.addf %264, %279 : vector<8x512xf32>
    %c1_185 = arith.constant 1 : index
    %c0_186 = arith.constant 0 : index
    %c165_187 = arith.constant 165 : index
    %281 = vector.load %arg0[%c1_185, %c0_186, %c165_187] : memref<4x8x896xf32, #tpu.memory_space<vmem>>, vector<1x8x512xf32>
    %282 = vector.shape_cast %281 : vector<1x8x512xf32> to vector<8x512xf32>
    %283 = arith.mulf %282, %272 : vector<8x512xf32>
    %284 = arith.addf %268, %283 : vector<8x512xf32>
    %c18 = arith.constant 18 : index
    %c0_188 = arith.constant 0 : index
    %c0_189 = arith.constant 0 : index
    %285 = vector.load %arg2[%c18, %c0_188, %c0_189] : memref<36x8x1xf32, #tpu.memory_space<vmem>>, vector<1x8x1xf32>
    %286 = vector.shape_cast %285 : vector<1x8x1xf32> to vector<8x1xf32>
    %287 = vector.shape_cast %286 : vector<8x1xf32> to vector<8x1xf32>
    %288 = vector.broadcast %287 : vector<8x1xf32> to vector<8x512xf32>
    %c2_190 = arith.constant 2 : index
    %c0_191 = arith.constant 0 : index
    %c165_192 = arith.constant 165 : index
    %289 = vector.load %arg0[%c2_190, %c0_191, %c165_192] : memref<4x8x896xf32, #tpu.memory_space<vmem>>, vector<1x8x512xf32>
    %290 = vector.shape_cast %289 : vector<1x8x512xf32> to vector<8x512xf32>
    %291 = arith.mulf %290, %288 : vector<8x512xf32>
    %292 = arith.addf %276, %291 : vector<8x512xf32>
    %c2_193 = arith.constant 2 : index
    %c0_194 = arith.constant 0 : index
    %c165_195 = arith.constant 165 : index
    %293 = vector.load %arg0[%c2_193, %c0_194, %c165_195] : memref<4x8x896xf32, #tpu.memory_space<vmem>>, vector<1x8x512xf32>
    %294 = vector.shape_cast %293 : vector<1x8x512xf32> to vector<8x512xf32>
    %295 = arith.mulf %294, %288 : vector<8x512xf32>
    %296 = arith.addf %280, %295 : vector<8x512xf32>
    %c2_196 = arith.constant 2 : index
    %c0_197 = arith.constant 0 : index
    %c165_198 = arith.constant 165 : index
    %297 = vector.load %arg0[%c2_196, %c0_197, %c165_198] : memref<4x8x896xf32, #tpu.memory_space<vmem>>, vector<1x8x512xf32>
    %298 = vector.shape_cast %297 : vector<1x8x512xf32> to vector<8x512xf32>
    %299 = arith.mulf %298, %288 : vector<8x512xf32>
    %300 = arith.addf %284, %299 : vector<8x512xf32>
    %c19 = arith.constant 19 : index
    %c0_199 = arith.constant 0 : index
    %c0_200 = arith.constant 0 : index
    %301 = vector.load %arg2[%c19, %c0_199, %c0_200] : memref<36x8x1xf32, #tpu.memory_space<vmem>>, vector<1x8x1xf32>
    %302 = vector.shape_cast %301 : vector<1x8x1xf32> to vector<8x1xf32>
    %303 = vector.shape_cast %302 : vector<8x1xf32> to vector<8x1xf32>
    %304 = vector.broadcast %303 : vector<8x1xf32> to vector<8x512xf32>
    %c3_201 = arith.constant 3 : index
    %c0_202 = arith.constant 0 : index
    %c165_203 = arith.constant 165 : index
    %305 = vector.load %arg0[%c3_201, %c0_202, %c165_203] : memref<4x8x896xf32, #tpu.memory_space<vmem>>, vector<1x8x512xf32>
    %306 = vector.shape_cast %305 : vector<1x8x512xf32> to vector<8x512xf32>
    %307 = arith.mulf %306, %304 : vector<8x512xf32>
    %308 = arith.addf %292, %307 : vector<8x512xf32>
    %c3_204 = arith.constant 3 : index
    %c0_205 = arith.constant 0 : index
    %c165_206 = arith.constant 165 : index
    %309 = vector.load %arg0[%c3_204, %c0_205, %c165_206] : memref<4x8x896xf32, #tpu.memory_space<vmem>>, vector<1x8x512xf32>
    %310 = vector.shape_cast %309 : vector<1x8x512xf32> to vector<8x512xf32>
    %311 = arith.mulf %310, %304 : vector<8x512xf32>
    %312 = arith.addf %296, %311 : vector<8x512xf32>
    %c3_207 = arith.constant 3 : index
    %c0_208 = arith.constant 0 : index
    %c165_209 = arith.constant 165 : index
    %313 = vector.load %arg0[%c3_207, %c0_208, %c165_209] : memref<4x8x896xf32, #tpu.memory_space<vmem>>, vector<1x8x512xf32>
    %314 = vector.shape_cast %313 : vector<1x8x512xf32> to vector<8x512xf32>
    %315 = arith.mulf %314, %304 : vector<8x512xf32>
    %316 = arith.addf %300, %315 : vector<8x512xf32>
    %c20 = arith.constant 20 : index
    %c0_210 = arith.constant 0 : index
    %c0_211 = arith.constant 0 : index
    %317 = vector.load %arg2[%c20, %c0_210, %c0_211] : memref<36x8x1xf32, #tpu.memory_space<vmem>>, vector<1x8x1xf32>
    %318 = vector.shape_cast %317 : vector<1x8x1xf32> to vector<8x1xf32>
    %319 = vector.shape_cast %318 : vector<8x1xf32> to vector<8x1xf32>
    %320 = vector.broadcast %319 : vector<8x1xf32> to vector<8x512xf32>
    %c0_212 = arith.constant 0 : index
    %c0_213 = arith.constant 0 : index
    %c166 = arith.constant 166 : index
    %321 = vector.load %arg0[%c0_212, %c0_213, %c166] : memref<4x8x896xf32, #tpu.memory_space<vmem>>, vector<1x8x512xf32>
    %322 = vector.shape_cast %321 : vector<1x8x512xf32> to vector<8x512xf32>
    %323 = arith.mulf %322, %320 : vector<8x512xf32>
    %324 = arith.addf %308, %323 : vector<8x512xf32>
    %c0_214 = arith.constant 0 : index
    %c0_215 = arith.constant 0 : index
    %c168 = arith.constant 168 : index
    %325 = vector.load %arg0[%c0_214, %c0_215, %c168] : memref<4x8x896xf32, #tpu.memory_space<vmem>>, vector<1x8x512xf32>
    %326 = vector.shape_cast %325 : vector<1x8x512xf32> to vector<8x512xf32>
    %327 = arith.mulf %326, %320 : vector<8x512xf32>
    %328 = arith.addf %312, %327 : vector<8x512xf32>
    %c0_216 = arith.constant 0 : index
    %c0_217 = arith.constant 0 : index
    %c170 = arith.constant 170 : index
    %329 = vector.load %arg0[%c0_216, %c0_217, %c170] : memref<4x8x896xf32, #tpu.memory_space<vmem>>, vector<1x8x512xf32>
    %330 = vector.shape_cast %329 : vector<1x8x512xf32> to vector<8x512xf32>
    %331 = arith.mulf %330, %320 : vector<8x512xf32>
    %332 = arith.addf %316, %331 : vector<8x512xf32>
    %c21 = arith.constant 21 : index
    %c0_218 = arith.constant 0 : index
    %c0_219 = arith.constant 0 : index
    %333 = vector.load %arg2[%c21, %c0_218, %c0_219] : memref<36x8x1xf32, #tpu.memory_space<vmem>>, vector<1x8x1xf32>
    %334 = vector.shape_cast %333 : vector<1x8x1xf32> to vector<8x1xf32>
    %335 = vector.shape_cast %334 : vector<8x1xf32> to vector<8x1xf32>
    %336 = vector.broadcast %335 : vector<8x1xf32> to vector<8x512xf32>
    %c1_220 = arith.constant 1 : index
    %c0_221 = arith.constant 0 : index
    %c166_222 = arith.constant 166 : index
    %337 = vector.load %arg0[%c1_220, %c0_221, %c166_222] : memref<4x8x896xf32, #tpu.memory_space<vmem>>, vector<1x8x512xf32>
    %338 = vector.shape_cast %337 : vector<1x8x512xf32> to vector<8x512xf32>
    %339 = arith.mulf %338, %336 : vector<8x512xf32>
    %340 = arith.addf %324, %339 : vector<8x512xf32>
    %c1_223 = arith.constant 1 : index
    %c0_224 = arith.constant 0 : index
    %c168_225 = arith.constant 168 : index
    %341 = vector.load %arg0[%c1_223, %c0_224, %c168_225] : memref<4x8x896xf32, #tpu.memory_space<vmem>>, vector<1x8x512xf32>
    %342 = vector.shape_cast %341 : vector<1x8x512xf32> to vector<8x512xf32>
    %343 = arith.mulf %342, %336 : vector<8x512xf32>
    %344 = arith.addf %328, %343 : vector<8x512xf32>
    %c1_226 = arith.constant 1 : index
    %c0_227 = arith.constant 0 : index
    %c170_228 = arith.constant 170 : index
    %345 = vector.load %arg0[%c1_226, %c0_227, %c170_228] : memref<4x8x896xf32, #tpu.memory_space<vmem>>, vector<1x8x512xf32>
    %346 = vector.shape_cast %345 : vector<1x8x512xf32> to vector<8x512xf32>
    %347 = arith.mulf %346, %336 : vector<8x512xf32>
    %348 = arith.addf %332, %347 : vector<8x512xf32>
    %c22 = arith.constant 22 : index
    %c0_229 = arith.constant 0 : index
    %c0_230 = arith.constant 0 : index
    %349 = vector.load %arg2[%c22, %c0_229, %c0_230] : memref<36x8x1xf32, #tpu.memory_space<vmem>>, vector<1x8x1xf32>
    %350 = vector.shape_cast %349 : vector<1x8x1xf32> to vector<8x1xf32>
    %351 = vector.shape_cast %350 : vector<8x1xf32> to vector<8x1xf32>
    %352 = vector.broadcast %351 : vector<8x1xf32> to vector<8x512xf32>
    %c2_231 = arith.constant 2 : index
    %c0_232 = arith.constant 0 : index
    %c166_233 = arith.constant 166 : index
    %353 = vector.load %arg0[%c2_231, %c0_232, %c166_233] : memref<4x8x896xf32, #tpu.memory_space<vmem>>, vector<1x8x512xf32>
    %354 = vector.shape_cast %353 : vector<1x8x512xf32> to vector<8x512xf32>
    %355 = arith.mulf %354, %352 : vector<8x512xf32>
    %356 = arith.addf %340, %355 : vector<8x512xf32>
    %c2_234 = arith.constant 2 : index
    %c0_235 = arith.constant 0 : index
    %c168_236 = arith.constant 168 : index
    %357 = vector.load %arg0[%c2_234, %c0_235, %c168_236] : memref<4x8x896xf32, #tpu.memory_space<vmem>>, vector<1x8x512xf32>
    %358 = vector.shape_cast %357 : vector<1x8x512xf32> to vector<8x512xf32>
    %359 = arith.mulf %358, %352 : vector<8x512xf32>
    %360 = arith.addf %344, %359 : vector<8x512xf32>
    %c2_237 = arith.constant 2 : index
    %c0_238 = arith.constant 0 : index
    %c170_239 = arith.constant 170 : index
    %361 = vector.load %arg0[%c2_237, %c0_238, %c170_239] : memref<4x8x896xf32, #tpu.memory_space<vmem>>, vector<1x8x512xf32>
    %362 = vector.shape_cast %361 : vector<1x8x512xf32> to vector<8x512xf32>
    %363 = arith.mulf %362, %352 : vector<8x512xf32>
    %364 = arith.addf %348, %363 : vector<8x512xf32>
    %c23 = arith.constant 23 : index
    %c0_240 = arith.constant 0 : index
    %c0_241 = arith.constant 0 : index
    %365 = vector.load %arg2[%c23, %c0_240, %c0_241] : memref<36x8x1xf32, #tpu.memory_space<vmem>>, vector<1x8x1xf32>
    %366 = vector.shape_cast %365 : vector<1x8x1xf32> to vector<8x1xf32>
    %367 = vector.shape_cast %366 : vector<8x1xf32> to vector<8x1xf32>
    %368 = vector.broadcast %367 : vector<8x1xf32> to vector<8x512xf32>
    %c3_242 = arith.constant 3 : index
    %c0_243 = arith.constant 0 : index
    %c166_244 = arith.constant 166 : index
    %369 = vector.load %arg0[%c3_242, %c0_243, %c166_244] : memref<4x8x896xf32, #tpu.memory_space<vmem>>, vector<1x8x512xf32>
    %370 = vector.shape_cast %369 : vector<1x8x512xf32> to vector<8x512xf32>
    %371 = arith.mulf %370, %368 : vector<8x512xf32>
    %372 = arith.addf %356, %371 : vector<8x512xf32>
    %c3_245 = arith.constant 3 : index
    %c0_246 = arith.constant 0 : index
    %c168_247 = arith.constant 168 : index
    %373 = vector.load %arg0[%c3_245, %c0_246, %c168_247] : memref<4x8x896xf32, #tpu.memory_space<vmem>>, vector<1x8x512xf32>
    %374 = vector.shape_cast %373 : vector<1x8x512xf32> to vector<8x512xf32>
    %375 = arith.mulf %374, %368 : vector<8x512xf32>
    %376 = arith.addf %360, %375 : vector<8x512xf32>
    %c3_248 = arith.constant 3 : index
    %c0_249 = arith.constant 0 : index
    %c170_250 = arith.constant 170 : index
    %377 = vector.load %arg0[%c3_248, %c0_249, %c170_250] : memref<4x8x896xf32, #tpu.memory_space<vmem>>, vector<1x8x512xf32>
    %378 = vector.shape_cast %377 : vector<1x8x512xf32> to vector<8x512xf32>
    %379 = arith.mulf %378, %368 : vector<8x512xf32>
    %380 = arith.addf %364, %379 : vector<8x512xf32>
    %c24 = arith.constant 24 : index
    %c0_251 = arith.constant 0 : index
    %c0_252 = arith.constant 0 : index
    %381 = vector.load %arg2[%c24, %c0_251, %c0_252] : memref<36x8x1xf32, #tpu.memory_space<vmem>>, vector<1x8x1xf32>
    %382 = vector.shape_cast %381 : vector<1x8x1xf32> to vector<8x1xf32>
    %383 = vector.shape_cast %382 : vector<8x1xf32> to vector<8x1xf32>
    %384 = vector.broadcast %383 : vector<8x1xf32> to vector<8x512xf32>
    %c0_253 = arith.constant 0 : index
    %c0_254 = arith.constant 0 : index
    %c196 = arith.constant 196 : index
    %385 = vector.load %arg0[%c0_253, %c0_254, %c196] : memref<4x8x896xf32, #tpu.memory_space<vmem>>, vector<1x8x512xf32>
    %386 = vector.shape_cast %385 : vector<1x8x512xf32> to vector<8x512xf32>
    %387 = arith.mulf %386, %384 : vector<8x512xf32>
    %388 = arith.addf %372, %387 : vector<8x512xf32>
    %c0_255 = arith.constant 0 : index
    %c0_256 = arith.constant 0 : index
    %c258 = arith.constant 258 : index
    %389 = vector.load %arg0[%c0_255, %c0_256, %c258] : memref<4x8x896xf32, #tpu.memory_space<vmem>>, vector<1x8x512xf32>
    %390 = vector.shape_cast %389 : vector<1x8x512xf32> to vector<8x512xf32>
    %391 = arith.mulf %390, %384 : vector<8x512xf32>
    %392 = arith.addf %376, %391 : vector<8x512xf32>
    %c0_257 = arith.constant 0 : index
    %c0_258 = arith.constant 0 : index
    %c320 = arith.constant 320 : index
    %393 = vector.load %arg0[%c0_257, %c0_258, %c320] : memref<4x8x896xf32, #tpu.memory_space<vmem>>, vector<1x8x512xf32>
    %394 = vector.shape_cast %393 : vector<1x8x512xf32> to vector<8x512xf32>
    %395 = arith.mulf %394, %384 : vector<8x512xf32>
    %396 = arith.addf %380, %395 : vector<8x512xf32>
    %c25 = arith.constant 25 : index
    %c0_259 = arith.constant 0 : index
    %c0_260 = arith.constant 0 : index
    %397 = vector.load %arg2[%c25, %c0_259, %c0_260] : memref<36x8x1xf32, #tpu.memory_space<vmem>>, vector<1x8x1xf32>
    %398 = vector.shape_cast %397 : vector<1x8x1xf32> to vector<8x1xf32>
    %399 = vector.shape_cast %398 : vector<8x1xf32> to vector<8x1xf32>
    %400 = vector.broadcast %399 : vector<8x1xf32> to vector<8x512xf32>
    %c1_261 = arith.constant 1 : index
    %c0_262 = arith.constant 0 : index
    %c196_263 = arith.constant 196 : index
    %401 = vector.load %arg0[%c1_261, %c0_262, %c196_263] : memref<4x8x896xf32, #tpu.memory_space<vmem>>, vector<1x8x512xf32>
    %402 = vector.shape_cast %401 : vector<1x8x512xf32> to vector<8x512xf32>
    %403 = arith.mulf %402, %400 : vector<8x512xf32>
    %404 = arith.addf %388, %403 : vector<8x512xf32>
    %c1_264 = arith.constant 1 : index
    %c0_265 = arith.constant 0 : index
    %c258_266 = arith.constant 258 : index
    %405 = vector.load %arg0[%c1_264, %c0_265, %c258_266] : memref<4x8x896xf32, #tpu.memory_space<vmem>>, vector<1x8x512xf32>
    %406 = vector.shape_cast %405 : vector<1x8x512xf32> to vector<8x512xf32>
    %407 = arith.mulf %406, %400 : vector<8x512xf32>
    %408 = arith.addf %392, %407 : vector<8x512xf32>
    %c1_267 = arith.constant 1 : index
    %c0_268 = arith.constant 0 : index
    %c320_269 = arith.constant 320 : index
    %409 = vector.load %arg0[%c1_267, %c0_268, %c320_269] : memref<4x8x896xf32, #tpu.memory_space<vmem>>, vector<1x8x512xf32>
    %410 = vector.shape_cast %409 : vector<1x8x512xf32> to vector<8x512xf32>
    %411 = arith.mulf %410, %400 : vector<8x512xf32>
    %412 = arith.addf %396, %411 : vector<8x512xf32>
    %c26 = arith.constant 26 : index
    %c0_270 = arith.constant 0 : index
    %c0_271 = arith.constant 0 : index
    %413 = vector.load %arg2[%c26, %c0_270, %c0_271] : memref<36x8x1xf32, #tpu.memory_space<vmem>>, vector<1x8x1xf32>
    %414 = vector.shape_cast %413 : vector<1x8x1xf32> to vector<8x1xf32>
    %415 = vector.shape_cast %414 : vector<8x1xf32> to vector<8x1xf32>
    %416 = vector.broadcast %415 : vector<8x1xf32> to vector<8x512xf32>
    %c2_272 = arith.constant 2 : index
    %c0_273 = arith.constant 0 : index
    %c196_274 = arith.constant 196 : index
    %417 = vector.load %arg0[%c2_272, %c0_273, %c196_274] : memref<4x8x896xf32, #tpu.memory_space<vmem>>, vector<1x8x512xf32>
    %418 = vector.shape_cast %417 : vector<1x8x512xf32> to vector<8x512xf32>
    %419 = arith.mulf %418, %416 : vector<8x512xf32>
    %420 = arith.addf %404, %419 : vector<8x512xf32>
    %c2_275 = arith.constant 2 : index
    %c0_276 = arith.constant 0 : index
    %c258_277 = arith.constant 258 : index
    %421 = vector.load %arg0[%c2_275, %c0_276, %c258_277] : memref<4x8x896xf32, #tpu.memory_space<vmem>>, vector<1x8x512xf32>
    %422 = vector.shape_cast %421 : vector<1x8x512xf32> to vector<8x512xf32>
    %423 = arith.mulf %422, %416 : vector<8x512xf32>
    %424 = arith.addf %408, %423 : vector<8x512xf32>
    %c2_278 = arith.constant 2 : index
    %c0_279 = arith.constant 0 : index
    %c320_280 = arith.constant 320 : index
    %425 = vector.load %arg0[%c2_278, %c0_279, %c320_280] : memref<4x8x896xf32, #tpu.memory_space<vmem>>, vector<1x8x512xf32>
    %426 = vector.shape_cast %425 : vector<1x8x512xf32> to vector<8x512xf32>
    %427 = arith.mulf %426, %416 : vector<8x512xf32>
    %428 = arith.addf %412, %427 : vector<8x512xf32>
    %c27 = arith.constant 27 : index
    %c0_281 = arith.constant 0 : index
    %c0_282 = arith.constant 0 : index
    %429 = vector.load %arg2[%c27, %c0_281, %c0_282] : memref<36x8x1xf32, #tpu.memory_space<vmem>>, vector<1x8x1xf32>
    %430 = vector.shape_cast %429 : vector<1x8x1xf32> to vector<8x1xf32>
    %431 = vector.shape_cast %430 : vector<8x1xf32> to vector<8x1xf32>
    %432 = vector.broadcast %431 : vector<8x1xf32> to vector<8x512xf32>
    %c3_283 = arith.constant 3 : index
    %c0_284 = arith.constant 0 : index
    %c196_285 = arith.constant 196 : index
    %433 = vector.load %arg0[%c3_283, %c0_284, %c196_285] : memref<4x8x896xf32, #tpu.memory_space<vmem>>, vector<1x8x512xf32>
    %434 = vector.shape_cast %433 : vector<1x8x512xf32> to vector<8x512xf32>
    %435 = arith.mulf %434, %432 : vector<8x512xf32>
    %436 = arith.addf %420, %435 : vector<8x512xf32>
    %c3_286 = arith.constant 3 : index
    %c0_287 = arith.constant 0 : index
    %c258_288 = arith.constant 258 : index
    %437 = vector.load %arg0[%c3_286, %c0_287, %c258_288] : memref<4x8x896xf32, #tpu.memory_space<vmem>>, vector<1x8x512xf32>
    %438 = vector.shape_cast %437 : vector<1x8x512xf32> to vector<8x512xf32>
    %439 = arith.mulf %438, %432 : vector<8x512xf32>
    %440 = arith.addf %424, %439 : vector<8x512xf32>
    %c3_289 = arith.constant 3 : index
    %c0_290 = arith.constant 0 : index
    %c320_291 = arith.constant 320 : index
    %441 = vector.load %arg0[%c3_289, %c0_290, %c320_291] : memref<4x8x896xf32, #tpu.memory_space<vmem>>, vector<1x8x512xf32>
    %442 = vector.shape_cast %441 : vector<1x8x512xf32> to vector<8x512xf32>
    %443 = arith.mulf %442, %432 : vector<8x512xf32>
    %444 = arith.addf %428, %443 : vector<8x512xf32>
    %c28 = arith.constant 28 : index
    %c0_292 = arith.constant 0 : index
    %c0_293 = arith.constant 0 : index
    %445 = vector.load %arg2[%c28, %c0_292, %c0_293] : memref<36x8x1xf32, #tpu.memory_space<vmem>>, vector<1x8x1xf32>
    %446 = vector.shape_cast %445 : vector<1x8x1xf32> to vector<8x1xf32>
    %447 = vector.shape_cast %446 : vector<8x1xf32> to vector<8x1xf32>
    %448 = vector.broadcast %447 : vector<8x1xf32> to vector<8x512xf32>
    %c0_294 = arith.constant 0 : index
    %c0_295 = arith.constant 0 : index
    %c197 = arith.constant 197 : index
    %449 = vector.load %arg0[%c0_294, %c0_295, %c197] : memref<4x8x896xf32, #tpu.memory_space<vmem>>, vector<1x8x512xf32>
    %450 = vector.shape_cast %449 : vector<1x8x512xf32> to vector<8x512xf32>
    %451 = arith.mulf %450, %448 : vector<8x512xf32>
    %452 = arith.addf %436, %451 : vector<8x512xf32>
    %c0_296 = arith.constant 0 : index
    %c0_297 = arith.constant 0 : index
    %c261 = arith.constant 261 : index
    %453 = vector.load %arg0[%c0_296, %c0_297, %c261] : memref<4x8x896xf32, #tpu.memory_space<vmem>>, vector<1x8x512xf32>
    %454 = vector.shape_cast %453 : vector<1x8x512xf32> to vector<8x512xf32>
    %455 = arith.mulf %454, %448 : vector<8x512xf32>
    %456 = arith.addf %440, %455 : vector<8x512xf32>
    %c0_298 = arith.constant 0 : index
    %c0_299 = arith.constant 0 : index
    %c325 = arith.constant 325 : index
    %457 = vector.load %arg0[%c0_298, %c0_299, %c325] : memref<4x8x896xf32, #tpu.memory_space<vmem>>, vector<1x8x512xf32>
    %458 = vector.shape_cast %457 : vector<1x8x512xf32> to vector<8x512xf32>
    %459 = arith.mulf %458, %448 : vector<8x512xf32>
    %460 = arith.addf %444, %459 : vector<8x512xf32>
    %c29 = arith.constant 29 : index
    %c0_300 = arith.constant 0 : index
    %c0_301 = arith.constant 0 : index
    %461 = vector.load %arg2[%c29, %c0_300, %c0_301] : memref<36x8x1xf32, #tpu.memory_space<vmem>>, vector<1x8x1xf32>
    %462 = vector.shape_cast %461 : vector<1x8x1xf32> to vector<8x1xf32>
    %463 = vector.shape_cast %462 : vector<8x1xf32> to vector<8x1xf32>
    %464 = vector.broadcast %463 : vector<8x1xf32> to vector<8x512xf32>
    %c1_302 = arith.constant 1 : index
    %c0_303 = arith.constant 0 : index
    %c197_304 = arith.constant 197 : index
    %465 = vector.load %arg0[%c1_302, %c0_303, %c197_304] : memref<4x8x896xf32, #tpu.memory_space<vmem>>, vector<1x8x512xf32>
    %466 = vector.shape_cast %465 : vector<1x8x512xf32> to vector<8x512xf32>
    %467 = arith.mulf %466, %464 : vector<8x512xf32>
    %468 = arith.addf %452, %467 : vector<8x512xf32>
    %c1_305 = arith.constant 1 : index
    %c0_306 = arith.constant 0 : index
    %c261_307 = arith.constant 261 : index
    %469 = vector.load %arg0[%c1_305, %c0_306, %c261_307] : memref<4x8x896xf32, #tpu.memory_space<vmem>>, vector<1x8x512xf32>
    %470 = vector.shape_cast %469 : vector<1x8x512xf32> to vector<8x512xf32>
    %471 = arith.mulf %470, %464 : vector<8x512xf32>
    %472 = arith.addf %456, %471 : vector<8x512xf32>
    %c1_308 = arith.constant 1 : index
    %c0_309 = arith.constant 0 : index
    %c325_310 = arith.constant 325 : index
    %473 = vector.load %arg0[%c1_308, %c0_309, %c325_310] : memref<4x8x896xf32, #tpu.memory_space<vmem>>, vector<1x8x512xf32>
    %474 = vector.shape_cast %473 : vector<1x8x512xf32> to vector<8x512xf32>
    %475 = arith.mulf %474, %464 : vector<8x512xf32>
    %476 = arith.addf %460, %475 : vector<8x512xf32>
    %c30 = arith.constant 30 : index
    %c0_311 = arith.constant 0 : index
    %c0_312 = arith.constant 0 : index
    %477 = vector.load %arg2[%c30, %c0_311, %c0_312] : memref<36x8x1xf32, #tpu.memory_space<vmem>>, vector<1x8x1xf32>
    %478 = vector.shape_cast %477 : vector<1x8x1xf32> to vector<8x1xf32>
    %479 = vector.shape_cast %478 : vector<8x1xf32> to vector<8x1xf32>
    %480 = vector.broadcast %479 : vector<8x1xf32> to vector<8x512xf32>
    %c2_313 = arith.constant 2 : index
    %c0_314 = arith.constant 0 : index
    %c197_315 = arith.constant 197 : index
    %481 = vector.load %arg0[%c2_313, %c0_314, %c197_315] : memref<4x8x896xf32, #tpu.memory_space<vmem>>, vector<1x8x512xf32>
    %482 = vector.shape_cast %481 : vector<1x8x512xf32> to vector<8x512xf32>
    %483 = arith.mulf %482, %480 : vector<8x512xf32>
    %484 = arith.addf %468, %483 : vector<8x512xf32>
    %c2_316 = arith.constant 2 : index
    %c0_317 = arith.constant 0 : index
    %c261_318 = arith.constant 261 : index
    %485 = vector.load %arg0[%c2_316, %c0_317, %c261_318] : memref<4x8x896xf32, #tpu.memory_space<vmem>>, vector<1x8x512xf32>
    %486 = vector.shape_cast %485 : vector<1x8x512xf32> to vector<8x512xf32>
    %487 = arith.mulf %486, %480 : vector<8x512xf32>
    %488 = arith.addf %472, %487 : vector<8x512xf32>
    %c2_319 = arith.constant 2 : index
    %c0_320 = arith.constant 0 : index
    %c325_321 = arith.constant 325 : index
    %489 = vector.load %arg0[%c2_319, %c0_320, %c325_321] : memref<4x8x896xf32, #tpu.memory_space<vmem>>, vector<1x8x512xf32>
    %490 = vector.shape_cast %489 : vector<1x8x512xf32> to vector<8x512xf32>
    %491 = arith.mulf %490, %480 : vector<8x512xf32>
    %492 = arith.addf %476, %491 : vector<8x512xf32>
    %c31 = arith.constant 31 : index
    %c0_322 = arith.constant 0 : index
    %c0_323 = arith.constant 0 : index
    %493 = vector.load %arg2[%c31, %c0_322, %c0_323] : memref<36x8x1xf32, #tpu.memory_space<vmem>>, vector<1x8x1xf32>
    %494 = vector.shape_cast %493 : vector<1x8x1xf32> to vector<8x1xf32>
    %495 = vector.shape_cast %494 : vector<8x1xf32> to vector<8x1xf32>
    %496 = vector.broadcast %495 : vector<8x1xf32> to vector<8x512xf32>
    %c3_324 = arith.constant 3 : index
    %c0_325 = arith.constant 0 : index
    %c197_326 = arith.constant 197 : index
    %497 = vector.load %arg0[%c3_324, %c0_325, %c197_326] : memref<4x8x896xf32, #tpu.memory_space<vmem>>, vector<1x8x512xf32>
    %498 = vector.shape_cast %497 : vector<1x8x512xf32> to vector<8x512xf32>
    %499 = arith.mulf %498, %496 : vector<8x512xf32>
    %500 = arith.addf %484, %499 : vector<8x512xf32>
    %c3_327 = arith.constant 3 : index
    %c0_328 = arith.constant 0 : index
    %c261_329 = arith.constant 261 : index
    %501 = vector.load %arg0[%c3_327, %c0_328, %c261_329] : memref<4x8x896xf32, #tpu.memory_space<vmem>>, vector<1x8x512xf32>
    %502 = vector.shape_cast %501 : vector<1x8x512xf32> to vector<8x512xf32>
    %503 = arith.mulf %502, %496 : vector<8x512xf32>
    %504 = arith.addf %488, %503 : vector<8x512xf32>
    %c3_330 = arith.constant 3 : index
    %c0_331 = arith.constant 0 : index
    %c325_332 = arith.constant 325 : index
    %505 = vector.load %arg0[%c3_330, %c0_331, %c325_332] : memref<4x8x896xf32, #tpu.memory_space<vmem>>, vector<1x8x512xf32>
    %506 = vector.shape_cast %505 : vector<1x8x512xf32> to vector<8x512xf32>
    %507 = arith.mulf %506, %496 : vector<8x512xf32>
    %508 = arith.addf %492, %507 : vector<8x512xf32>
    %c32 = arith.constant 32 : index
    %c0_333 = arith.constant 0 : index
    %c0_334 = arith.constant 0 : index
    %509 = vector.load %arg2[%c32, %c0_333, %c0_334] : memref<36x8x1xf32, #tpu.memory_space<vmem>>, vector<1x8x1xf32>
    %510 = vector.shape_cast %509 : vector<1x8x1xf32> to vector<8x1xf32>
    %511 = vector.shape_cast %510 : vector<8x1xf32> to vector<8x1xf32>
    %512 = vector.broadcast %511 : vector<8x1xf32> to vector<8x512xf32>
    %c0_335 = arith.constant 0 : index
    %c0_336 = arith.constant 0 : index
    %c198 = arith.constant 198 : index
    %513 = vector.load %arg0[%c0_335, %c0_336, %c198] : memref<4x8x896xf32, #tpu.memory_space<vmem>>, vector<1x8x512xf32>
    %514 = vector.shape_cast %513 : vector<1x8x512xf32> to vector<8x512xf32>
    %515 = arith.mulf %514, %512 : vector<8x512xf32>
    %516 = arith.addf %500, %515 : vector<8x512xf32>
    %c0_337 = arith.constant 0 : index
    %c0_338 = arith.constant 0 : index
    %c264 = arith.constant 264 : index
    %517 = vector.load %arg0[%c0_337, %c0_338, %c264] : memref<4x8x896xf32, #tpu.memory_space<vmem>>, vector<1x8x512xf32>
    %518 = vector.shape_cast %517 : vector<1x8x512xf32> to vector<8x512xf32>
    %519 = arith.mulf %518, %512 : vector<8x512xf32>
    %520 = arith.addf %504, %519 : vector<8x512xf32>
    %c0_339 = arith.constant 0 : index
    %c0_340 = arith.constant 0 : index
    %c330 = arith.constant 330 : index
    %521 = vector.load %arg0[%c0_339, %c0_340, %c330] : memref<4x8x896xf32, #tpu.memory_space<vmem>>, vector<1x8x512xf32>
    %522 = vector.shape_cast %521 : vector<1x8x512xf32> to vector<8x512xf32>
    %523 = arith.mulf %522, %512 : vector<8x512xf32>
    %524 = arith.addf %508, %523 : vector<8x512xf32>
    %c33 = arith.constant 33 : index
    %c0_341 = arith.constant 0 : index
    %c0_342 = arith.constant 0 : index
    %525 = vector.load %arg2[%c33, %c0_341, %c0_342] : memref<36x8x1xf32, #tpu.memory_space<vmem>>, vector<1x8x1xf32>
    %526 = vector.shape_cast %525 : vector<1x8x1xf32> to vector<8x1xf32>
    %527 = vector.shape_cast %526 : vector<8x1xf32> to vector<8x1xf32>
    %528 = vector.broadcast %527 : vector<8x1xf32> to vector<8x512xf32>
    %c1_343 = arith.constant 1 : index
    %c0_344 = arith.constant 0 : index
    %c198_345 = arith.constant 198 : index
    %529 = vector.load %arg0[%c1_343, %c0_344, %c198_345] : memref<4x8x896xf32, #tpu.memory_space<vmem>>, vector<1x8x512xf32>
    %530 = vector.shape_cast %529 : vector<1x8x512xf32> to vector<8x512xf32>
    %531 = arith.mulf %530, %528 : vector<8x512xf32>
    %532 = arith.addf %516, %531 : vector<8x512xf32>
    %c1_346 = arith.constant 1 : index
    %c0_347 = arith.constant 0 : index
    %c264_348 = arith.constant 264 : index
    %533 = vector.load %arg0[%c1_346, %c0_347, %c264_348] : memref<4x8x896xf32, #tpu.memory_space<vmem>>, vector<1x8x512xf32>
    %534 = vector.shape_cast %533 : vector<1x8x512xf32> to vector<8x512xf32>
    %535 = arith.mulf %534, %528 : vector<8x512xf32>
    %536 = arith.addf %520, %535 : vector<8x512xf32>
    %c1_349 = arith.constant 1 : index
    %c0_350 = arith.constant 0 : index
    %c330_351 = arith.constant 330 : index
    %537 = vector.load %arg0[%c1_349, %c0_350, %c330_351] : memref<4x8x896xf32, #tpu.memory_space<vmem>>, vector<1x8x512xf32>
    %538 = vector.shape_cast %537 : vector<1x8x512xf32> to vector<8x512xf32>
    %539 = arith.mulf %538, %528 : vector<8x512xf32>
    %540 = arith.addf %524, %539 : vector<8x512xf32>
    %c34 = arith.constant 34 : index
    %c0_352 = arith.constant 0 : index
    %c0_353 = arith.constant 0 : index
    %541 = vector.load %arg2[%c34, %c0_352, %c0_353] : memref<36x8x1xf32, #tpu.memory_space<vmem>>, vector<1x8x1xf32>
    %542 = vector.shape_cast %541 : vector<1x8x1xf32> to vector<8x1xf32>
    %543 = vector.shape_cast %542 : vector<8x1xf32> to vector<8x1xf32>
    %544 = vector.broadcast %543 : vector<8x1xf32> to vector<8x512xf32>
    %c2_354 = arith.constant 2 : index
    %c0_355 = arith.constant 0 : index
    %c198_356 = arith.constant 198 : index
    %545 = vector.load %arg0[%c2_354, %c0_355, %c198_356] : memref<4x8x896xf32, #tpu.memory_space<vmem>>, vector<1x8x512xf32>
    %546 = vector.shape_cast %545 : vector<1x8x512xf32> to vector<8x512xf32>
    %547 = arith.mulf %546, %544 : vector<8x512xf32>
    %548 = arith.addf %532, %547 : vector<8x512xf32>
    %c2_357 = arith.constant 2 : index
    %c0_358 = arith.constant 0 : index
    %c264_359 = arith.constant 264 : index
    %549 = vector.load %arg0[%c2_357, %c0_358, %c264_359] : memref<4x8x896xf32, #tpu.memory_space<vmem>>, vector<1x8x512xf32>
    %550 = vector.shape_cast %549 : vector<1x8x512xf32> to vector<8x512xf32>
    %551 = arith.mulf %550, %544 : vector<8x512xf32>
    %552 = arith.addf %536, %551 : vector<8x512xf32>
    %c2_360 = arith.constant 2 : index
    %c0_361 = arith.constant 0 : index
    %c330_362 = arith.constant 330 : index
    %553 = vector.load %arg0[%c2_360, %c0_361, %c330_362] : memref<4x8x896xf32, #tpu.memory_space<vmem>>, vector<1x8x512xf32>
    %554 = vector.shape_cast %553 : vector<1x8x512xf32> to vector<8x512xf32>
    %555 = arith.mulf %554, %544 : vector<8x512xf32>
    %556 = arith.addf %540, %555 : vector<8x512xf32>
    %c35 = arith.constant 35 : index
    %c0_363 = arith.constant 0 : index
    %c0_364 = arith.constant 0 : index
    %557 = vector.load %arg2[%c35, %c0_363, %c0_364] : memref<36x8x1xf32, #tpu.memory_space<vmem>>, vector<1x8x1xf32>
    %558 = vector.shape_cast %557 : vector<1x8x1xf32> to vector<8x1xf32>
    %559 = vector.shape_cast %558 : vector<8x1xf32> to vector<8x1xf32>
    %560 = vector.broadcast %559 : vector<8x1xf32> to vector<8x512xf32>
    %c3_365 = arith.constant 3 : index
    %c0_366 = arith.constant 0 : index
    %c198_367 = arith.constant 198 : index
    %561 = vector.load %arg0[%c3_365, %c0_366, %c198_367] : memref<4x8x896xf32, #tpu.memory_space<vmem>>, vector<1x8x512xf32>
    %562 = vector.shape_cast %561 : vector<1x8x512xf32> to vector<8x512xf32>
    %563 = arith.mulf %562, %560 : vector<8x512xf32>
    %564 = arith.addf %548, %563 : vector<8x512xf32>
    %c3_368 = arith.constant 3 : index
    %c0_369 = arith.constant 0 : index
    %c264_370 = arith.constant 264 : index
    %565 = vector.load %arg0[%c3_368, %c0_369, %c264_370] : memref<4x8x896xf32, #tpu.memory_space<vmem>>, vector<1x8x512xf32>
    %566 = vector.shape_cast %565 : vector<1x8x512xf32> to vector<8x512xf32>
    %567 = arith.mulf %566, %560 : vector<8x512xf32>
    %568 = arith.addf %552, %567 : vector<8x512xf32>
    %c3_371 = arith.constant 3 : index
    %c0_372 = arith.constant 0 : index
    %c330_373 = arith.constant 330 : index
    %569 = vector.load %arg0[%c3_371, %c0_372, %c330_373] : memref<4x8x896xf32, #tpu.memory_space<vmem>>, vector<1x8x512xf32>
    %570 = vector.shape_cast %569 : vector<1x8x512xf32> to vector<8x512xf32>
    %571 = arith.mulf %570, %560 : vector<8x512xf32>
    %572 = arith.addf %556, %571 : vector<8x512xf32>
    %573 = tpu.iota {dimensions = array<i32: 1>} : vector<8x512xi32>
    %c31_i32 = arith.constant 31 : i32
    %574 = vector.broadcast %c31_i32 : i32 to vector<8x512xi32>
    %575 = arith.andi %573, %574 : vector<8x512xi32>
    %c16_i32 = arith.constant 16 : i32
    %576 = vector.broadcast %c16_i32 : i32 to vector<8x512xi32>
    %577 = arith.cmpi slt, %575, %576 : vector<8x512xi32>
    %578 = arith.extui %577 : vector<8x512xi1> to vector<8x512xi32>
    %579 = arith.sitofp %578 : vector<8x512xi32> to vector<8x512xf32>
    %c0_374 = arith.constant 0 : index
    %c0_375 = arith.constant 0 : index
    %580 = vector.load %arg1[%c0_374, %c0_375] : memref<8x512xf32, #tpu.memory_space<vmem>>, vector<8x512xf32>
    %581 = arith.mulf %564, %579 : vector<8x512xf32>
    %cst = arith.constant dense<0.000000e+00> : vector<8xf32>
    %582 = vector.multi_reduction <add>, %581, %cst [1] : vector<8x512xf32> to vector<8xf32>
    %583 = vector.shape_cast %582 : vector<8xf32> to vector<8x1xf32>
    %584 = arith.mulf %581, %564 : vector<8x512xf32>
    %cst_376 = arith.constant dense<0.000000e+00> : vector<8xf32>
    %585 = vector.multi_reduction <add>, %584, %cst_376 [1] : vector<8x512xf32> to vector<8xf32>
    %586 = vector.shape_cast %585 : vector<8xf32> to vector<8x1xf32>
    %c4_i32 = arith.constant 4 : i32
    %587 = tpu.dynamic_rotate %583 by %c4_i32 dim 0 : vector<8x1xf32>, i32 -> vector<8x1xf32>
    %588 = arith.addf %583, %587 : vector<8x1xf32>
    %c4_i32_377 = arith.constant 4 : i32
    %589 = tpu.dynamic_rotate %586 by %c4_i32_377 dim 0 : vector<8x1xf32>, i32 -> vector<8x1xf32>
    %590 = arith.addf %586, %589 : vector<8x1xf32>
    %cst_378 = arith.constant 0.001953125 : f32
    %591 = vector.broadcast %cst_378 : f32 to vector<8x1xf32>
    %592 = arith.mulf %588, %591 : vector<8x1xf32>
    %cst_379 = arith.constant 0.001953125 : f32
    %593 = vector.broadcast %cst_379 : f32 to vector<8x1xf32>
    %594 = arith.mulf %590, %593 : vector<8x1xf32>
    %595 = arith.mulf %592, %592 : vector<8x1xf32>
    %596 = arith.subf %594, %595 : vector<8x1xf32>
    %c0_380 = arith.constant 0 : index
    %c0_381 = arith.constant 0 : index
    %597 = vector.load %arg3[%c0_380, %c0_381] : memref<8x1xf32, #tpu.memory_space<vmem>>, vector<8x1xf32>
    %cst_382 = arith.constant 9.99999974E-6 : f32
    %598 = vector.broadcast %cst_382 : f32 to vector<8x1xf32>
    %599 = arith.addf %596, %598 : vector<8x1xf32>
    %600 = math.rsqrt %599 : vector<8x1xf32>
    %601 = arith.mulf %597, %600 : vector<8x1xf32>
    %c0_383 = arith.constant 0 : index
    %c0_384 = arith.constant 0 : index
    %602 = vector.load %arg4[%c0_383, %c0_384] : memref<8x1xf32, #tpu.memory_space<vmem>>, vector<8x1xf32>
    %603 = arith.mulf %592, %601 : vector<8x1xf32>
    %604 = arith.subf %602, %603 : vector<8x1xf32>
    %605 = vector.broadcast %601 : vector<8x1xf32> to vector<8x512xf32>
    %606 = arith.mulf %564, %605 : vector<8x512xf32>
    %607 = arith.addf %580, %606 : vector<8x512xf32>
    %608 = vector.broadcast %604 : vector<8x1xf32> to vector<8x512xf32>
    %609 = arith.addf %607, %608 : vector<8x512xf32>
    %610 = arith.mulf %568, %579 : vector<8x512xf32>
    %cst_385 = arith.constant dense<0.000000e+00> : vector<8xf32>
    %611 = vector.multi_reduction <add>, %610, %cst_385 [1] : vector<8x512xf32> to vector<8xf32>
    %612 = vector.shape_cast %611 : vector<8xf32> to vector<8x1xf32>
    %613 = arith.mulf %610, %568 : vector<8x512xf32>
    %cst_386 = arith.constant dense<0.000000e+00> : vector<8xf32>
    %614 = vector.multi_reduction <add>, %613, %cst_386 [1] : vector<8x512xf32> to vector<8xf32>
    %615 = vector.shape_cast %614 : vector<8xf32> to vector<8x1xf32>
    %c4_i32_387 = arith.constant 4 : i32
    %616 = tpu.dynamic_rotate %612 by %c4_i32_387 dim 0 : vector<8x1xf32>, i32 -> vector<8x1xf32>
    %617 = arith.addf %612, %616 : vector<8x1xf32>
    %c4_i32_388 = arith.constant 4 : i32
    %618 = tpu.dynamic_rotate %615 by %c4_i32_388 dim 0 : vector<8x1xf32>, i32 -> vector<8x1xf32>
    %619 = arith.addf %615, %618 : vector<8x1xf32>
    %cst_389 = arith.constant 0.001953125 : f32
    %620 = vector.broadcast %cst_389 : f32 to vector<8x1xf32>
    %621 = arith.mulf %617, %620 : vector<8x1xf32>
    %cst_390 = arith.constant 0.001953125 : f32
    %622 = vector.broadcast %cst_390 : f32 to vector<8x1xf32>
    %623 = arith.mulf %619, %622 : vector<8x1xf32>
    %624 = arith.mulf %621, %621 : vector<8x1xf32>
    %625 = arith.subf %623, %624 : vector<8x1xf32>
    %c0_391 = arith.constant 0 : index
    %c0_392 = arith.constant 0 : index
    %626 = vector.load %arg3[%c0_391, %c0_392] : memref<8x1xf32, #tpu.memory_space<vmem>>, vector<8x1xf32>
    %cst_393 = arith.constant 9.99999974E-6 : f32
    %627 = vector.broadcast %cst_393 : f32 to vector<8x1xf32>
    %628 = arith.addf %625, %627 : vector<8x1xf32>
    %629 = math.rsqrt %628 : vector<8x1xf32>
    %630 = arith.mulf %626, %629 : vector<8x1xf32>
    %c0_394 = arith.constant 0 : index
    %c0_395 = arith.constant 0 : index
    %631 = vector.load %arg4[%c0_394, %c0_395] : memref<8x1xf32, #tpu.memory_space<vmem>>, vector<8x1xf32>
    %632 = arith.mulf %621, %630 : vector<8x1xf32>
    %633 = arith.subf %631, %632 : vector<8x1xf32>
    %634 = vector.broadcast %630 : vector<8x1xf32> to vector<8x512xf32>
    %635 = arith.mulf %568, %634 : vector<8x512xf32>
    %636 = arith.addf %609, %635 : vector<8x512xf32>
    %637 = vector.broadcast %633 : vector<8x1xf32> to vector<8x512xf32>
    %638 = arith.addf %636, %637 : vector<8x512xf32>
    %639 = arith.mulf %572, %579 : vector<8x512xf32>
    %cst_396 = arith.constant dense<0.000000e+00> : vector<8xf32>
    %640 = vector.multi_reduction <add>, %639, %cst_396 [1] : vector<8x512xf32> to vector<8xf32>
    %641 = vector.shape_cast %640 : vector<8xf32> to vector<8x1xf32>
    %642 = arith.mulf %639, %572 : vector<8x512xf32>
    %cst_397 = arith.constant dense<0.000000e+00> : vector<8xf32>
    %643 = vector.multi_reduction <add>, %642, %cst_397 [1] : vector<8x512xf32> to vector<8xf32>
    %644 = vector.shape_cast %643 : vector<8xf32> to vector<8x1xf32>
    %c4_i32_398 = arith.constant 4 : i32
    %645 = tpu.dynamic_rotate %641 by %c4_i32_398 dim 0 : vector<8x1xf32>, i32 -> vector<8x1xf32>
    %646 = arith.addf %641, %645 : vector<8x1xf32>
    %c4_i32_399 = arith.constant 4 : i32
    %647 = tpu.dynamic_rotate %644 by %c4_i32_399 dim 0 : vector<8x1xf32>, i32 -> vector<8x1xf32>
    %648 = arith.addf %644, %647 : vector<8x1xf32>
    %cst_400 = arith.constant 0.001953125 : f32
    %649 = vector.broadcast %cst_400 : f32 to vector<8x1xf32>
    %650 = arith.mulf %646, %649 : vector<8x1xf32>
    %cst_401 = arith.constant 0.001953125 : f32
    %651 = vector.broadcast %cst_401 : f32 to vector<8x1xf32>
    %652 = arith.mulf %648, %651 : vector<8x1xf32>
    %653 = arith.mulf %650, %650 : vector<8x1xf32>
    %654 = arith.subf %652, %653 : vector<8x1xf32>
    %c0_402 = arith.constant 0 : index
    %c0_403 = arith.constant 0 : index
    %655 = vector.load %arg3[%c0_402, %c0_403] : memref<8x1xf32, #tpu.memory_space<vmem>>, vector<8x1xf32>
    %cst_404 = arith.constant 9.99999974E-6 : f32
    %656 = vector.broadcast %cst_404 : f32 to vector<8x1xf32>
    %657 = arith.addf %654, %656 : vector<8x1xf32>
    %658 = math.rsqrt %657 : vector<8x1xf32>
    %659 = arith.mulf %655, %658 : vector<8x1xf32>
    %c0_405 = arith.constant 0 : index
    %c0_406 = arith.constant 0 : index
    %660 = vector.load %arg4[%c0_405, %c0_406] : memref<8x1xf32, #tpu.memory_space<vmem>>, vector<8x1xf32>
    %661 = arith.mulf %650, %659 : vector<8x1xf32>
    %662 = arith.subf %660, %661 : vector<8x1xf32>
    %663 = vector.broadcast %659 : vector<8x1xf32> to vector<8x512xf32>
    %664 = arith.mulf %572, %663 : vector<8x512xf32>
    %665 = arith.addf %638, %664 : vector<8x512xf32>
    %666 = vector.broadcast %662 : vector<8x1xf32> to vector<8x512xf32>
    %667 = arith.addf %665, %666 : vector<8x512xf32>
    %c0_407 = arith.constant 0 : index
    %c0_408 = arith.constant 0 : index
    %668 = vector.load %arg5[%c0_407, %c0_408] : memref<8x512xf32, #tpu.memory_space<vmem>>, vector<8x512xf32>
    tpu.vector_store %arg5[%c0_407, %c0_408], %667 {strides = array<i32>} : memref<8x512xf32, #tpu.memory_space<vmem>>, vector<8x512xf32>,
    return
  }
}

</mosaic_0001>

<llo_original>
// kernel: tile.23
$region0: #{tile.23}
  #allocation0 [shape = 's32[1]{0}', space=sflag, size = 0x4, scoped, tag = 'scoped memory for tile.23']
  %s0 = inlined_call_operand.vmem [shape: f32[4], index: 0, kind: input, shape index: {}]
  %s1 = inlined_call_operand.vmem [shape: f32[2,4], index: 1, kind: output, shape index: {}]
  // Predicated region
  $region2: #{tile.23} parent=0 // pred_check
    _
  $region3: #{tile.23} parent=0 // pred_check_branch
    %3 = sbr.rel (0) target = $region5
  $region4: #{tile.23} parent=0 // pred_region
    _
  $region5: #{tile.23} parent=0 // pred_fallthru
    _
  %v4 = vld [vmem:[%s0] ss:$0 sm:$0xff]
  %5 = vst [vmem:[%s1] sm:$0x3] %v4

// kernel: tile.1
$region0: #{tile.1}
  %s0 = inlined_call_operand.vmem [shape: f32[2,4], index: 0, kind: input, shape index: {}]
  %s1 = inlined_call_operand.vmem [shape: f32[8,1], index: 1, kind: output, shape index: {}]
  $region1: #{tile.1} parent=0
    #allocation0 [shape = 'u8[4096]{0}', space=vmem, size = 0x1000, scoped, tag = 'scoped mem for input reshape']
    %s3 = ssub.s32 4, 1
    %v4 = vld [vmem:[%s0] sm:%s3]
    %5 = vst [vmem:[#allocation0] sm:%s3] %v4
    %v6 = vld [vmem:[#allocation0] sm:$0x3]
    %vm7 = vcmask 7168
    %8 = vst.msk [vmem:[%s1] ss:$4 sm:$0x3] %vm7, %v6
    %v9 = vld [vmem:[#allocation0] sm:$0x3]
    %10 = vrot.lane.b32.xlu0 %v9, 127
    %v11 = vpop.permute.xlu0 %10
    %vm12 = vcmask 7168
    %s13 = scalar_lea.vmem %s1, 1
    %14 = vst.msk [vmem:[%s13] ss:$4 sm:$0x3] %vm12, %v11
    %v15 = vld [vmem:[#allocation0] sm:$0x3]
    %16 = vrot.lane.b32.xlu0 %v15, 126
    %v17 = vpop.permute.xlu0 %16
    %vm18 = vcmask 7168
    %s19 = scalar_lea.vmem %s1, 2
    %20 = vst.msk [vmem:[%s19] ss:$4 sm:$0x3] %vm18, %v17
    %v21 = vld [vmem:[#allocation0] sm:$0x3]
    %22 = vrot.lane.b32.xlu0 %v21, 125
    %v23 = vpop.permute.xlu0 %22
    %vm24 = vcmask 7168
    %s25 = scalar_lea.vmem %s1, 3
    %26 = vst.msk [vmem:[%s25] ss:$4 sm:$0x3] %vm24, %v23

// kernel: ms_forward.1
$region0: #{ms_forward.1}
  #allocation0 [shape = 'u32[]', space=smem, size = 0x4, offset = 0x4, fixed_abs, tag = 'smem constant byte address 0x4 - core index']
  #allocation1 [shape = 'u32[72,128]{1,0:T(1,128)}', space=vmem, size = 0x9000, scoped, tag = 'internal scratch']
  %s0 = inlined_call_operand.vmem [shape: f32[4,8,896], index: 0, kind: input, shape index: {}]
  %s1 = inlined_call_operand.vmem [shape: f32[8,512], index: 1, kind: input, shape index: {}]
  %s2 = inlined_call_operand.vmem [shape: f32[36,8,1], index: 2, kind: input, shape index: {}]
  %s3 = inlined_call_operand.vmem [shape: f32[8,1], index: 3, kind: input, shape index: {}]
  %s4 = inlined_call_operand.vmem [shape: f32[8,1], index: 4, kind: input, shape index: {}]
  %s5 = inlined_call_operand.vmem [shape: f32[8,512], index: 5, kind: output, shape index: {}]
  %s6 = sld [smem:[#allocation0]]
  $region30: #{ms_forward.1} parent=0
    _
  %s8 = ssub.s32 1, %s6
  %s9 = scalar_select 0, %s8, %s6
  // Predicated region
  $region2: #{ms_forward.1} parent=0 // pred_check
    _
  $region3: #{ms_forward.1} parent=0 // pred_check_branch
    %11 = sbr.rel (0) target = $region5
  $region4: #{ms_forward.1} parent=0 // pred_region
    _
  $region5: #{ms_forward.1} parent=0 // pred_fallthru
    _
  // Predicated region
  $region6: #{ms_forward.1} parent=0 // pred_check
    _
  $region7: #{ms_forward.1} parent=0 // pred_check_branch
    %13 = sbr.rel (0) target = $region9
  $region8: #{ms_forward.1} parent=0 // pred_region
    _
  $region9: #{ms_forward.1} parent=0 // pred_fallthru
    _
  // Predicated region
  $region10: #{ms_forward.1} parent=0 // pred_check
    _
  $region11: #{ms_forward.1} parent=0 // pred_check_branch
    %15 = sbr.rel (0) target = $region13
  $region12: #{ms_forward.1} parent=0 // pred_region
    _
  $region13: #{ms_forward.1} parent=0 // pred_fallthru
    _
  // Predicated region
  $region14: #{ms_forward.1} parent=0 // pred_check
    _
  $region15: #{ms_forward.1} parent=0 // pred_check_branch
    %17 = sbr.rel (0) target = $region17
  $region16: #{ms_forward.1} parent=0 // pred_region
    _
  $region17: #{ms_forward.1} parent=0 // pred_fallthru
    _
  // Predicated region
  $region18: #{ms_forward.1} parent=0 // pred_check
    _
  $region19: #{ms_forward.1} parent=0 // pred_check_branch
    %19 = sbr.rel (0) target = $region21
  $region20: #{ms_forward.1} parent=0 // pred_region
    _
  $region21: #{ms_forward.1} parent=0 // pred_fallthru
    _
  %v20 = vld [vmem:[%s2] sm:$0xff]
  %22 = vset.pattern.permute.xlu0 0
  %23 = vperm.xlu0 %22, %v20
  %v24 = vpop.permute.xlu0 %23
  %v26 = vld [vmem:[%s0 + $0x8] sm:$0xff]
  %v27 = vld [vmem:[%s0 + $0x10] sm:$0xff]
  %v28 = vld [vmem:[%s0 + $0x18] sm:$0xff]
  %v29 = vld [vmem:[%s0 + $0x20] sm:$0xff]
  %v30 = vld [vmem:[%s0 + $0x28] sm:$0xff]
  %v31 = vmul.f32 %v26, %v24
  %v32 = vmul.f32 %v27, %v24
  %v33 = vmul.f32 %v28, %v24
  %v34 = vmul.f32 %v29, %v24
  %v35 = vmul.f32 %v30, %v24
  %v36 = vld [vmem:[%s0] sm:$0xff]
  %v37 = vmul.f32 %v36, %v24
  %s38 = scalar_lea.vmem %s2, 8
  %v39 = vld [vmem:[%s38] sm:$0xff]
  %41 = vset.pattern.permute.xlu0 0
  %42 = vperm.xlu0 %41, %v39
  %v43 = vpop.permute.xlu0 %42
  %s45 = scalar_lea.vmem %s0, 56
  %v46 = vld [vmem:[%s45 + $0x8] sm:$0xff]
  %v47 = vld [vmem:[%s45 + $0x10] sm:$0xff]
  %v48 = vld [vmem:[%s45 + $0x18] sm:$0xff]
  %v49 = vld [vmem:[%s45 + $0x20] sm:$0xff]
  %v50 = vld [vmem:[%s45 + $0x28] sm:$0xff]
  %v51 = vmul.f32 %v46, %v43
  %v52 = vmul.f32 %v47, %v43
  %v53 = vmul.f32 %v48, %v43
  %v54 = vmul.f32 %v49, %v43
  %v55 = vmul.f32 %v50, %v43
  %v56 = vadd.f32 %v31, %v51
  %v57 = vadd.f32 %v32, %v52
  %v58 = vadd.f32 %v33, %v53
  %v59 = vadd.f32 %v34, %v54
  %v60 = vadd.f32 %v35, %v55
  %v61 = vld [vmem:[%s45] sm:$0xff]
  %v62 = vmul.f32 %v61, %v43
  %v63 = vadd.f32 %v37, %v62
  %s64 = scalar_lea.vmem %s2, 16
  %v65 = vld [vmem:[%s64] sm:$0xff]
  %67 = vset.pattern.permute.xlu0 0
  %68 = vperm.xlu0 %67, %v65
  %v69 = vpop.permute.xlu0 %68
  %s71 = scalar_lea.vmem %s0, 112
  %v72 = vld [vmem:[%s71 + $0x8] sm:$0xff]
  %v73 = vld [vmem:[%s71 + $0x10] sm:$0xff]
  %v74 = vld [vmem:[%s71 + $0x18] sm:$0xff]
  %v75 = vld [vmem:[%s71 + $0x20] sm:$0xff]
  %v76 = vld [vmem:[%s71 + $0x28] sm:$0xff]
  %v77 = vmul.f32 %v72, %v69
  %v78 = vmul.f32 %v73, %v69
  %v79 = vmul.f32 %v74, %v69
  %v80 = vmul.f32 %v75, %v69
  %v81 = vmul.f32 %v76, %v69
  %v82 = vadd.f32 %v56, %v77
  %v83 = vadd.f32 %v57, %v78
  %v84 = vadd.f32 %v58, %v79
  %v85 = vadd.f32 %v59, %v80
  %v86 = vadd.f32 %v60, %v81
  %v87 = vld [vmem:[%s71] sm:$0xff]
  %v88 = vmul.f32 %v87, %v69
  %v89 = vadd.f32 %v63, %v88
  %s90 = scalar_lea.vmem %s2, 24
  %v91 = vld [vmem:[%s90] sm:$0xff]
  %93 = vset.pattern.permute.xlu0 0
  %94 = vperm.xlu0 %93, %v91
  %v95 = vpop.permute.xlu0 %94
  %s97 = scalar_lea.vmem %s0, 168
  %v98 = vld [vmem:[%s97 + $0x8] sm:$0xff]
  %v99 = vld [vmem:[%s97 + $0x10] sm:$0xff]
  %v100 = vld [vmem:[%s97 + $0x18] sm:$0xff]
  %v101 = vld [vmem:[%s97 + $0x20] sm:$0xff]
  %v102 = vld [vmem:[%s97 + $0x28] sm:$0xff]
  %v103 = vmul.f32 %v98, %v95
  %v104 = vmul.f32 %v99, %v95
  %v105 = vmul.f32 %v100, %v95
  %v106 = vmul.f32 %v101, %v95
  %v107 = vmul.f32 %v102, %v95
  %v108 = vadd.f32 %v82, %v103
  %v109 = vadd.f32 %v83, %v104
  %v110 = vadd.f32 %v84, %v105
  %v111 = vadd.f32 %v85, %v106
  %v112 = vadd.f32 %v86, %v107
  %v113 = vld [vmem:[%s97] sm:$0xff]
  %v114 = vmul.f32 %v113, %v95
  %v115 = vadd.f32 %v89, %v114
  %s116 = scalar_lea.vmem %s2, 32
  %v117 = vld [vmem:[%s116] sm:$0xff]
  %119 = vset.pattern.permute.xlu0 0
  %120 = vperm.xlu0 %119, %v117
  %v121 = vpop.permute.xlu0 %120
  %v123 = vmul.f32 %v26, %v121
  %v124 = vmul.f32 %v27, %v121
  %v125 = vmul.f32 %v28, %v121
  %v126 = vmul.f32 %v29, %v121
  %v127 = vmul.f32 %v30, %v121
  %133 = vrot.lane.b32.xlu0 %v123, 127
  %v134 = vpop.permute.xlu0 %133
  %135 = vrot.lane.b32.xlu0 %v124, 127
  %v136 = vpop.permute.xlu0 %135
  %137 = vrot.lane.b32.xlu0 %v125, 127
  %v138 = vpop.permute.xlu0 %137
  %139 = vrot.lane.b32.xlu0 %v126, 127
  %v140 = vpop.permute.xlu0 %139
  %141 = vrot.lane.b32.xlu0 %v127, 127
  %v142 = vpop.permute.xlu0 %141
  %vm143 = vcmask 1039360
  %v144 = vsel %vm143, %v134, %v136
  %v145 = vsel %vm143, %v136, %v138
  %v146 = vsel %vm143, %v138, %v140
  %v147 = vsel %vm143, %v140, %v142
  %v153 = vadd.f32 %v108, %v144
  %v154 = vadd.f32 %v109, %v145
  %v155 = vadd.f32 %v110, %v146
  %v156 = vadd.f32 %v111, %v147
  %v157 = vadd.f32 %v112, %v142
  %v158 = vmul.f32 %v36, %v121
  %160 = vrot.lane.b32.xlu0 %v158, 125
  %v161 = vpop.permute.xlu0 %160
  %162 = vrot.lane.b32.xlu0 %v123, 125
  %v163 = vpop.permute.xlu0 %162
  %164 = vrot.lane.b32.xlu0 %v124, 125
  %v165 = vpop.permute.xlu0 %164
  %166 = vrot.lane.b32.xlu0 %v125, 125
  %v167 = vpop.permute.xlu0 %166
  %168 = vrot.lane.b32.xlu0 %v126, 125
  %v169 = vpop.permute.xlu0 %168
  %vm170 = vcmask 1022976
  %v171 = vsel %vm170, %v161, %v163
  %v172 = vsel %vm170, %v163, %v165
  %v173 = vsel %vm170, %v165, %v167
  %v174 = vsel %vm170, %v167, %v169
  %v180 = vadd.f32 %v115, %v171
  %v181 = vadd.f32 %v108, %v172
  %v182 = vadd.f32 %v109, %v173
  %v183 = vadd.f32 %v110, %v174
  %v184 = vadd.f32 %v111, %v169
  %185 = vrot.lane.b32.xlu0 %v158, 123
  %v186 = vpop.permute.xlu0 %185
  %187 = vrot.lane.b32.xlu0 %v123, 123
  %v188 = vpop.permute.xlu0 %187
  %189 = vrot.lane.b32.xlu0 %v124, 123
  %v190 = vpop.permute.xlu0 %189
  %191 = vrot.lane.b32.xlu0 %v125, 123
  %v192 = vpop.permute.xlu0 %191
  %193 = vrot.lane.b32.xlu0 %v126, 123
  %v194 = vpop.permute.xlu0 %193
  %vm195 = vcmask 1006592
  %v196 = vsel %vm195, %v186, %v188
  %v197 = vsel %vm195, %v188, %v190
  %v198 = vsel %vm195, %v190, %v192
  %v199 = vsel %vm195, %v192, %v194
  %v204 = vadd.f32 %v115, %v196
  %v205 = vadd.f32 %v108, %v197
  %v206 = vadd.f32 %v109, %v198
  %v207 = vadd.f32 %v110, %v199
  %s208 = scalar_lea.vmem %s2, 40
  %v209 = vld [vmem:[%s208] sm:$0xff]
  %211 = vset.pattern.permute.xlu0 0
  %212 = vperm.xlu0 %211, %v209
  %v213 = vpop.permute.xlu0 %212
  %v215 = vmul.f32 %v46, %v213
  %v216 = vmul.f32 %v47, %v213
  %v217 = vmul.f32 %v48, %v213
  %v218 = vmul.f32 %v49, %v213
  %v219 = vmul.f32 %v50, %v213
  %225 = vrot.lane.b32.xlu0 %v215, 127
  %v226 = vpop.permute.xlu0 %225
  %227 = vrot.lane.b32.xlu0 %v216, 127
  %v228 = vpop.permute.xlu0 %227
  %229 = vrot.lane.b32.xlu0 %v217, 127
  %v230 = vpop.permute.xlu0 %229
  %231 = vrot.lane.b32.xlu0 %v218, 127
  %v232 = vpop.permute.xlu0 %231
  %233 = vrot.lane.b32.xlu0 %v219, 127
  %v234 = vpop.permute.xlu0 %233
  %v235 = vsel %vm143, %v226, %v228
  %v236 = vsel %vm143, %v228, %v230
  %v237 = vsel %vm143, %v230, %v232
  %v238 = vsel %vm143, %v232, %v234
  %v244 = vadd.f32 %v153, %v235
  %v245 = vadd.f32 %v154, %v236
  %v246 = vadd.f32 %v155, %v237
  %v247 = vadd.f32 %v156, %v238
  %v248 = vadd.f32 %v157, %v234
  %v249 = vmul.f32 %v61, %v213
  %251 = vrot.lane.b32.xlu0 %v249, 125
  %v252 = vpop.permute.xlu0 %251
  %253 = vrot.lane.b32.xlu0 %v215, 125
  %v254 = vpop.permute.xlu0 %253
  %255 = vrot.lane.b32.xlu0 %v216, 125
  %v256 = vpop.permute.xlu0 %255
  %257 = vrot.lane.b32.xlu0 %v217, 125
  %v258 = vpop.permute.xlu0 %257
  %259 = vrot.lane.b32.xlu0 %v218, 125
  %v260 = vpop.permute.xlu0 %259
  %v261 = vsel %vm170, %v252, %v254
  %v262 = vsel %vm170, %v254, %v256
  %v263 = vsel %vm170, %v256, %v258
  %v264 = vsel %vm170, %v258, %v260
  %v270 = vadd.f32 %v180, %v261
  %v271 = vadd.f32 %v181, %v262
  %v272 = vadd.f32 %v182, %v263
  %v273 = vadd.f32 %v183, %v264
  %v274 = vadd.f32 %v184, %v260
  %275 = vrot.lane.b32.xlu0 %v249, 123
  %v276 = vpop.permute.xlu0 %275
  %277 = vrot.lane.b32.xlu0 %v215, 123
  %v278 = vpop.permute.xlu0 %277
  %279 = vrot.lane.b32.xlu0 %v216, 123
  %v280 = vpop.permute.xlu0 %279
  %281 = vrot.lane.b32.xlu0 %v217, 123
  %v282 = vpop.permute.xlu0 %281
  %283 = vrot.lane.b32.xlu0 %v218, 123
  %v284 = vpop.permute.xlu0 %283
  %v285 = vsel %vm195, %v276, %v278
  %v286 = vsel %vm195, %v278, %v280
  %v287 = vsel %vm195, %v280, %v282
  %v288 = vsel %vm195, %v282, %v284
  %v293 = vadd.f32 %v204, %v285
  %v294 = vadd.f32 %v205, %v286
  %v295 = vadd.f32 %v206, %v287
  %v296 = vadd.f32 %v207, %v288
  %s297 = scalar_lea.vmem %s2, 48
  %v298 = vld [vmem:[%s297] sm:$0xff]
  %300 = vset.pattern.permute.xlu0 0
  %301 = vperm.xlu0 %300, %v298
  %v302 = vpop.permute.xlu0 %301
  %v304 = vmul.f32 %v72, %v302
  %v305 = vmul.f32 %v73, %v302
  %v306 = vmul.f32 %v74, %v302
  %v307 = vmul.f32 %v75, %v302
  %v308 = vmul.f32 %v76, %v302
  %314 = vrot.lane.b32.xlu0 %v304, 127
  %v315 = vpop.permute.xlu0 %314
  %316 = vrot.lane.b32.xlu0 %v305, 127
  %v317 = vpop.permute.xlu0 %316
  %318 = vrot.lane.b32.xlu0 %v306, 127
  %v319 = vpop.permute.xlu0 %318
  %320 = vrot.lane.b32.xlu0 %v307, 127
  %v321 = vpop.permute.xlu0 %320
  %322 = vrot.lane.b32.xlu0 %v308, 127
  %v323 = vpop.permute.xlu0 %322
  %v324 = vsel %vm143, %v315, %v317
  %v325 = vsel %vm143, %v317, %v319
  %v326 = vsel %vm143, %v319, %v321
  %v327 = vsel %vm143, %v321, %v323
  %v333 = vadd.f32 %v244, %v324
  %v334 = vadd.f32 %v245, %v325
  %v335 = vadd.f32 %v246, %v326
  %v336 = vadd.f32 %v247, %v327
  %v337 = vadd.f32 %v248, %v323
  %v338 = vmul.f32 %v87, %v302
  %340 = vrot.lane.b32.xlu0 %v338, 125
  %v341 = vpop.permute.xlu0 %340
  %342 = vrot.lane.b32.xlu0 %v304, 125
  %v343 = vpop.permute.xlu0 %342
  %344 = vrot.lane.b32.xlu0 %v305, 125
  %v345 = vpop.permute.xlu0 %344
  %346 = vrot.lane.b32.xlu0 %v306, 125
  %v347 = vpop.permute.xlu0 %346
  %348 = vrot.lane.b32.xlu0 %v307, 125
  %v349 = vpop.permute.xlu0 %348
  %v350 = vsel %vm170, %v341, %v343
  %v351 = vsel %vm170, %v343, %v345
  %v352 = vsel %vm170, %v345, %v347
  %v353 = vsel %vm170, %v347, %v349
  %v359 = vadd.f32 %v270, %v350
  %v360 = vadd.f32 %v271, %v351
  %v361 = vadd.f32 %v272, %v352
  %v362 = vadd.f32 %v273, %v353
  %v363 = vadd.f32 %v274, %v349
  %364 = vrot.lane.b32.xlu0 %v338, 123
  %v365 = vpop.permute.xlu0 %364
  %366 = vrot.lane.b32.xlu0 %v304, 123
  %v367 = vpop.permute.xlu0 %366
  %368 = vrot.lane.b32.xlu0 %v305, 123
  %v369 = vpop.permute.xlu0 %368
  %370 = vrot.lane.b32.xlu0 %v306, 123
  %v371 = vpop.permute.xlu0 %370
  %372 = vrot.lane.b32.xlu0 %v307, 123
  %v373 = vpop.permute.xlu0 %372
  %v374 = vsel %vm195, %v365, %v367
  %v375 = vsel %vm195, %v367, %v369
  %v376 = vsel %vm195, %v369, %v371
  %v377 = vsel %vm195, %v371, %v373
  %v382 = vadd.f32 %v293, %v374
  %v383 = vadd.f32 %v294, %v375
  %v384 = vadd.f32 %v295, %v376
  %v385 = vadd.f32 %v296, %v377
  %s386 = scalar_lea.vmem %s2, 56
  %v387 = vld [vmem:[%s386] sm:$0xff]
  %389 = vset.pattern.permute.xlu0 0
  %390 = vperm.xlu0 %389, %v387
  %v391 = vpop.permute.xlu0 %390
  %v393 = vmul.f32 %v98, %v391
  %v394 = vmul.f32 %v99, %v391
  %v395 = vmul.f32 %v100, %v391
  %v396 = vmul.f32 %v101, %v391
  %v397 = vmul.f32 %v102, %v391
  %403 = vrot.lane.b32.xlu0 %v393, 127
  %v404 = vpop.permute.xlu0 %403
  %405 = vrot.lane.b32.xlu0 %v394, 127
  %v406 = vpop.permute.xlu0 %405
  %407 = vrot.lane.b32.xlu0 %v395, 127
  %v408 = vpop.permute.xlu0 %407
  %409 = vrot.lane.b32.xlu0 %v396, 127
  %v410 = vpop.permute.xlu0 %409
  %411 = vrot.lane.b32.xlu0 %v397, 127
  %v412 = vpop.permute.xlu0 %411
  %v413 = vsel %vm143, %v404, %v406
  %v414 = vsel %vm143, %v406, %v408
  %v415 = vsel %vm143, %v408, %v410
  %v416 = vsel %vm143, %v410, %v412
  %v422 = vadd.f32 %v333, %v413
  %v423 = vadd.f32 %v334, %v414
  %v424 = vadd.f32 %v335, %v415
  %v425 = vadd.f32 %v336, %v416
  %v426 = vadd.f32 %v337, %v412
  %v427 = vmul.f32 %v113, %v391
  %429 = vrot.lane.b32.xlu0 %v427, 125
  %v430 = vpop.permute.xlu0 %429
  %431 = vrot.lane.b32.xlu0 %v393, 125
  %v432 = vpop.permute.xlu0 %431
  %433 = vrot.lane.b32.xlu0 %v394, 125
  %v434 = vpop.permute.xlu0 %433
  %435 = vrot.lane.b32.xlu0 %v395, 125
  %v436 = vpop.permute.xlu0 %435
  %437 = vrot.lane.b32.xlu0 %v396, 125
  %v438 = vpop.permute.xlu0 %437
  %v439 = vsel %vm170, %v430, %v432
  %v440 = vsel %vm170, %v432, %v434
  %v441 = vsel %vm170, %v434, %v436
  %v442 = vsel %vm170, %v436, %v438
  %v448 = vadd.f32 %v359, %v439
  %v449 = vadd.f32 %v360, %v440
  %v450 = vadd.f32 %v361, %v441
  %v451 = vadd.f32 %v362, %v442
  %v452 = vadd.f32 %v363, %v438
  %453 = vrot.lane.b32.xlu0 %v427, 123
  %v454 = vpop.permute.xlu0 %453
  %455 = vrot.lane.b32.xlu0 %v393, 123
  %v456 = vpop.permute.xlu0 %455
  %457 = vrot.lane.b32.xlu0 %v394, 123
  %v458 = vpop.permute.xlu0 %457
  %459 = vrot.lane.b32.xlu0 %v395, 123
  %v460 = vpop.permute.xlu0 %459
  %461 = vrot.lane.b32.xlu0 %v396, 123
  %v462 = vpop.permute.xlu0 %461
  %v463 = vsel %vm195, %v454, %v456
  %v464 = vsel %vm195, %v456, %v458
  %v465 = vsel %vm195, %v458, %v460
  %v466 = vsel %vm195, %v460, %v462
  %v471 = vadd.f32 %v382, %v463
  %v472 = vadd.f32 %v383, %v464
  %v473 = vadd.f32 %v384, %v465
  %v474 = vadd.f32 %v385, %v466
  %s475 = scalar_lea.vmem %s2, 64
  %v476 = vld [vmem:[%s475] sm:$0xff]
  %478 = vset.pattern.permute.xlu0 0
  %479 = vperm.xlu0 %478, %v476
  %v480 = vpop.permute.xlu0 %479
  %v482 = vmul.f32 %v26, %v480
  %v483 = vmul.f32 %v27, %v480
  %v484 = vmul.f32 %v28, %v480
  %v485 = vmul.f32 %v29, %v480
  %v486 = vmul.f32 %v30, %v480
  %492 = vrot.lane.b32.xlu0 %v482, 126
  %v493 = vpop.permute.xlu0 %492
  %494 = vrot.lane.b32.xlu0 %v483, 126
  %v495 = vpop.permute.xlu0 %494
  %496 = vrot.lane.b32.xlu0 %v484, 126
  %v497 = vpop.permute.xlu0 %496
  %498 = vrot.lane.b32.xlu0 %v485, 126
  %v499 = vpop.permute.xlu0 %498
  %500 = vrot.lane.b32.xlu0 %v486, 126
  %v501 = vpop.permute.xlu0 %500
  %vm502 = vcmask 1031168
  %v503 = vsel %vm502, %v493, %v495
  %v504 = vsel %vm502, %v495, %v497
  %v505 = vsel %vm502, %v497, %v499
  %v506 = vsel %vm502, %v499, %v501
  %v512 = vadd.f32 %v422, %v503
  %v513 = vadd.f32 %v423, %v504
  %v514 = vadd.f32 %v424, %v505
  %v515 = vadd.f32 %v425, %v506
  %v516 = vadd.f32 %v426, %v501
  %v517 = vmul.f32 %v36, %v480
  %519 = vrot.lane.b32.xlu0 %v517, 122
  %v520 = vpop.permute.xlu0 %519
  %521 = vrot.lane.b32.xlu0 %v482, 122
  %v522 = vpop.permute.xlu0 %521
  %523 = vrot.lane.b32.xlu0 %v483, 122
  %v524 = vpop.permute.xlu0 %523
  %525 = vrot.lane.b32.xlu0 %v484, 122
  %v526 = vpop.permute.xlu0 %525
  %527 = vrot.lane.b32.xlu0 %v485, 122
  %v528 = vpop.permute.xlu0 %527
  %vm529 = vcmask 998400
  %v530 = vsel %vm529, %v520, %v522
  %v531 = vsel %vm529, %v522, %v524
  %v532 = vsel %vm529, %v524, %v526
  %v533 = vsel %vm529, %v526, %v528
  %v539 = vadd.f32 %v448, %v530
  %v540 = vadd.f32 %v449, %v531
  %v541 = vadd.f32 %v450, %v532
  %v542 = vadd.f32 %v451, %v533
  %v543 = vadd.f32 %v452, %v528
  %544 = vrot.lane.b32.xlu0 %v517, 118
  %v545 = vpop.permute.xlu0 %544
  %546 = vrot.lane.b32.xlu0 %v482, 118
  %v547 = vpop.permute.xlu0 %546
  %548 = vrot.lane.b32.xlu0 %v483, 118
  %v549 = vpop.permute.xlu0 %548
  %550 = vrot.lane.b32.xlu0 %v484, 118
  %v551 = vpop.permute.xlu0 %550
  %552 = vrot.lane.b32.xlu0 %v485, 118
  %v553 = vpop.permute.xlu0 %552
  %vm554 = vcmask 965632
  %v555 = vsel %vm554, %v545, %v547
  %v556 = vsel %vm554, %v547, %v549
  %v557 = vsel %vm554, %v549, %v551
  %v558 = vsel %vm554, %v551, %v553
  %v563 = vadd.f32 %v471, %v555
  %v564 = vadd.f32 %v472, %v556
  %v565 = vadd.f32 %v473, %v557
  %v566 = vadd.f32 %v474, %v558
  %s567 = scalar_lea.vmem %s2, 72
  %v568 = vld [vmem:[%s567] sm:$0xff]
  %570 = vset.pattern.permute.xlu0 0
  %571 = vperm.xlu0 %570, %v568
  %v572 = vpop.permute.xlu0 %571
  %v574 = vmul.f32 %v46, %v572
  %v575 = vmul.f32 %v47, %v572
  %v576 = vmul.f32 %v48, %v572
  %v577 = vmul.f32 %v49, %v572
  %v578 = vmul.f32 %v50, %v572
  %584 = vrot.lane.b32.xlu0 %v574, 126
  %v585 = vpop.permute.xlu0 %584
  %586 = vrot.lane.b32.xlu0 %v575, 126
  %v587 = vpop.permute.xlu0 %586
  %588 = vrot.lane.b32.xlu0 %v576, 126
  %v589 = vpop.permute.xlu0 %588
  %590 = vrot.lane.b32.xlu0 %v577, 126
  %v591 = vpop.permute.xlu0 %590
  %592 = vrot.lane.b32.xlu0 %v578, 126
  %v593 = vpop.permute.xlu0 %592
  %v594 = vsel %vm502, %v585, %v587
  %v595 = vsel %vm502, %v587, %v589
  %v596 = vsel %vm502, %v589, %v591
  %v597 = vsel %vm502, %v591, %v593
  %v603 = vadd.f32 %v512, %v594
  %v604 = vadd.f32 %v513, %v595
  %v605 = vadd.f32 %v514, %v596
  %v606 = vadd.f32 %v515, %v597
  %v607 = vadd.f32 %v516, %v593
  %v608 = vmul.f32 %v61, %v572
  %610 = vrot.lane.b32.xlu0 %v608, 122
  %v611 = vpop.permute.xlu0 %610
  %612 = vrot.lane.b32.xlu0 %v574, 122
  %v613 = vpop.permute.xlu0 %612
  %614 = vrot.lane.b32.xlu0 %v575, 122
  %v615 = vpop.permute.xlu0 %614
  %616 = vrot.lane.b32.xlu0 %v576, 122
  %v617 = vpop.permute.xlu0 %616
  %618 = vrot.lane.b32.xlu0 %v577, 122
  %v619 = vpop.permute.xlu0 %618
  %v620 = vsel %vm529, %v611, %v613
  %v621 = vsel %vm529, %v613, %v615
  %v622 = vsel %vm529, %v615, %v617
  %v623 = vsel %vm529, %v617, %v619
  %v629 = vadd.f32 %v539, %v620
  %v630 = vadd.f32 %v540, %v621
  %v631 = vadd.f32 %v541, %v622
  %v632 = vadd.f32 %v542, %v623
  %v633 = vadd.f32 %v543, %v619
  %634 = vrot.lane.b32.xlu0 %v608, 118
  %v635 = vpop.permute.xlu0 %634
  %636 = vrot.lane.b32.xlu0 %v574, 118
  %v637 = vpop.permute.xlu0 %636
  %638 = vrot.lane.b32.xlu0 %v575, 118
  %v639 = vpop.permute.xlu0 %638
  %640 = vrot.lane.b32.xlu0 %v576, 118
  %v641 = vpop.permute.xlu0 %640
  %642 = vrot.lane.b32.xlu0 %v577, 118
  %v643 = vpop.permute.xlu0 %642
  %v644 = vsel %vm554, %v635, %v637
  %v645 = vsel %vm554, %v637, %v639
  %v646 = vsel %vm554, %v639, %v641
  %v647 = vsel %vm554, %v641, %v643
  %v652 = vadd.f32 %v563, %v644
  %v653 = vadd.f32 %v564, %v645
  %v654 = vadd.f32 %v565, %v646
  %v655 = vadd.f32 %v566, %v647
  %s656 = scalar_lea.vmem %s2, 80
  %v657 = vld [vmem:[%s656] sm:$0xff]
  %659 = vset.pattern.permute.xlu0 0
  %660 = vperm.xlu0 %659, %v657
  %v661 = vpop.permute.xlu0 %660
  %v663 = vmul.f32 %v72, %v661
  %v664 = vmul.f32 %v73, %v661
  %v665 = vmul.f32 %v74, %v661
  %v666 = vmul.f32 %v75, %v661
  %v667 = vmul.f32 %v76, %v661
  %673 = vrot.lane.b32.xlu0 %v663, 126
  %v674 = vpop.permute.xlu0 %673
  %675 = vrot.lane.b32.xlu0 %v664, 126
  %v676 = vpop.permute.xlu0 %675
  %677 = vrot.lane.b32.xlu0 %v665, 126
  %v678 = vpop.permute.xlu0 %677
  %679 = vrot.lane.b32.xlu0 %v666, 126
  %v680 = vpop.permute.xlu0 %679
  %681 = vrot.lane.b32.xlu0 %v667, 126
  %v682 = vpop.permute.xlu0 %681
  %v683 = vsel %vm502, %v674, %v676
  %v684 = vsel %vm502, %v676, %v678
  %v685 = vsel %vm502, %v678, %v680
  %v686 = vsel %vm502, %v680, %v682
  %v692 = vadd.f32 %v603, %v683
  %v693 = vadd.f32 %v604, %v684
  %v694 = vadd.f32 %v605, %v685
  %v695 = vadd.f32 %v606, %v686
  %v696 = vadd.f32 %v607, %v682
  %v697 = vmul.f32 %v87, %v661
  %699 = vrot.lane.b32.xlu0 %v697, 122
  %v700 = vpop.permute.xlu0 %699
  %701 = vrot.lane.b32.xlu0 %v663, 122
  %v702 = vpop.permute.xlu0 %701
  %703 = vrot.lane.b32.xlu0 %v664, 122
  %v704 = vpop.permute.xlu0 %703
  %705 = vrot.lane.b32.xlu0 %v665, 122
  %v706 = vpop.permute.xlu0 %705
  %707 = vrot.lane.b32.xlu0 %v666, 122
  %v708 = vpop.permute.xlu0 %707
  %v709 = vsel %vm529, %v700, %v702
  %v710 = vsel %vm529, %v702, %v704
  %v711 = vsel %vm529, %v704, %v706
  %v712 = vsel %vm529, %v706, %v708
  %v718 = vadd.f32 %v629, %v709
  %v719 = vadd.f32 %v630, %v710
  %v720 = vadd.f32 %v631, %v711
  %v721 = vadd.f32 %v632, %v712
  %v722 = vadd.f32 %v633, %v708
  %723 = vrot.lane.b32.xlu0 %v697, 118
  %v724 = vpop.permute.xlu0 %723
  %725 = vrot.lane.b32.xlu0 %v663, 118
  %v726 = vpop.permute.xlu0 %725
  %727 = vrot.lane.b32.xlu0 %v664, 118
  %v728 = vpop.permute.xlu0 %727
  %729 = vrot.lane.b32.xlu0 %v665, 118
  %v730 = vpop.permute.xlu0 %729
  %731 = vrot.lane.b32.xlu0 %v666, 118
  %v732 = vpop.permute.xlu0 %731
  %v733 = vsel %vm554, %v724, %v726
  %v734 = vsel %vm554, %v726, %v728
  %v735 = vsel %vm554, %v728, %v730
  %v736 = vsel %vm554, %v730, %v732
  %v741 = vadd.f32 %v652, %v733
  %v742 = vadd.f32 %v653, %v734
  %v743 = vadd.f32 %v654, %v735
  %v744 = vadd.f32 %v655, %v736
  %s745 = scalar_lea.vmem %s2, 88
  %v746 = vld [vmem:[%s745] sm:$0xff]
  %748 = vset.pattern.permute.xlu0 0
  %749 = vperm.xlu0 %748, %v746
  %v750 = vpop.permute.xlu0 %749
  %v752 = vmul.f32 %v98, %v750
  %v753 = vmul.f32 %v99, %v750
  %v754 = vmul.f32 %v100, %v750
  %v755 = vmul.f32 %v101, %v750
  %v756 = vmul.f32 %v102, %v750
  %762 = vrot.lane.b32.xlu0 %v752, 126
  %v763 = vpop.permute.xlu0 %762
  %764 = vrot.lane.b32.xlu0 %v753, 126
  %v765 = vpop.permute.xlu0 %764
  %766 = vrot.lane.b32.xlu0 %v754, 126
  %v767 = vpop.permute.xlu0 %766
  %768 = vrot.lane.b32.xlu0 %v755, 126
  %v769 = vpop.permute.xlu0 %768
  %770 = vrot.lane.b32.xlu0 %v756, 126
  %v771 = vpop.permute.xlu0 %770
  %v772 = vsel %vm502, %v763, %v765
  %v773 = vsel %vm502, %v765, %v767
  %v774 = vsel %vm502, %v767, %v769
  %v775 = vsel %vm502, %v769, %v771
  %v781 = vadd.f32 %v692, %v772
  %v782 = vadd.f32 %v693, %v773
  %v783 = vadd.f32 %v694, %v774
  %v784 = vadd.f32 %v695, %v775
  %v785 = vadd.f32 %v696, %v771
  %v786 = vmul.f32 %v113, %v750
  %788 = vrot.lane.b32.xlu0 %v786, 122
  %v789 = vpop.permute.xlu0 %788
  %790 = vrot.lane.b32.xlu0 %v752, 122
  %v791 = vpop.permute.xlu0 %790
  %792 = vrot.lane.b32.xlu0 %v753, 122
  %v793 = vpop.permute.xlu0 %792
  %794 = vrot.lane.b32.xlu0 %v754, 122
  %v795 = vpop.permute.xlu0 %794
  %796 = vrot.lane.b32.xlu0 %v755, 122
  %v797 = vpop.permute.xlu0 %796
  %v798 = vsel %vm529, %v789, %v791
  %v799 = vsel %vm529, %v791, %v793
  %v800 = vsel %vm529, %v793, %v795
  %v801 = vsel %vm529, %v795, %v797
  %v807 = vadd.f32 %v718, %v798
  %v808 = vadd.f32 %v719, %v799
  %v809 = vadd.f32 %v720, %v800
  %v810 = vadd.f32 %v721, %v801
  %v811 = vadd.f32 %v722, %v797
  %812 = vrot.lane.b32.xlu0 %v786, 118
  %v813 = vpop.permute.xlu0 %812
  %814 = vrot.lane.b32.xlu0 %v752, 118
  %v815 = vpop.permute.xlu0 %814
  %816 = vrot.lane.b32.xlu0 %v753, 118
  %v817 = vpop.permute.xlu0 %816
  %818 = vrot.lane.b32.xlu0 %v754, 118
  %v819 = vpop.permute.xlu0 %818
  %820 = vrot.lane.b32.xlu0 %v755, 118
  %v821 = vpop.permute.xlu0 %820
  %v822 = vsel %vm554, %v813, %v815
  %v823 = vsel %vm554, %v815, %v817
  %v824 = vsel %vm554, %v817, %v819
  %v825 = vsel %vm554, %v819, %v821
  %v830 = vadd.f32 %v741, %v822
  %v831 = vadd.f32 %v742, %v823
  %v832 = vadd.f32 %v743, %v824
  %v833 = vadd.f32 %v744, %v825
  %s834 = scalar_lea.vmem %s2, 96
  %v835 = vld [vmem:[%s834] sm:$0xff]
  %837 = vset.pattern.permute.xlu0 0
  %838 = vperm.xlu0 %837, %v835
  %v839 = vpop.permute.xlu0 %838
  %v841 = vmul.f32 %v26, %v839
  %v842 = vmul.f32 %v27, %v839
  %v843 = vmul.f32 %v28, %v839
  %v844 = vmul.f32 %v29, %v839
  %v845 = vmul.f32 %v30, %v839
  %851 = vrot.lane.b32.xlu0 %v841, 96
  %v852 = vpop.permute.xlu0 %851
  %853 = vrot.lane.b32.xlu0 %v842, 96
  %v854 = vpop.permute.xlu0 %853
  %855 = vrot.lane.b32.xlu0 %v843, 96
  %v856 = vpop.permute.xlu0 %855
  %857 = vrot.lane.b32.xlu0 %v844, 96
  %v858 = vpop.permute.xlu0 %857
  %859 = vrot.lane.b32.xlu0 %v845, 96
  %v860 = vpop.permute.xlu0 %859
  %vm861 = vcmask 785408
  %v862 = vsel %vm861, %v852, %v854
  %v863 = vsel %vm861, %v854, %v856
  %v864 = vsel %vm861, %v856, %v858
  %v865 = vsel %vm861, %v858, %v860
  %v871 = vadd.f32 %v781, %v862
  %v872 = vadd.f32 %v782, %v863
  %v873 = vadd.f32 %v783, %v864
  %v874 = vadd.f32 %v784, %v865
  %v875 = vadd.f32 %v785, %v860
  %876 = vrot.lane.b32.xlu0 %v841, 32
  %v877 = vpop.permute.xlu0 %876
  %878 = vrot.lane.b32.xlu0 %v842, 32
  %v879 = vpop.permute.xlu0 %878
  %880 = vrot.lane.b32.xlu0 %v843, 32
  %v881 = vpop.permute.xlu0 %880
  %882 = vrot.lane.b32.xlu0 %v844, 32
  %v883 = vpop.permute.xlu0 %882
  %884 = vrot.lane.b32.xlu0 %v845, 32
  %v885 = vpop.permute.xlu0 %884
  %vm886 = vcmask 261120
  %v887 = vsel %vm886, %v877, %v879
  %v888 = vsel %vm886, %v879, %v881
  %v889 = vsel %vm886, %v881, %v883
  %v890 = vsel %vm886, %v883, %v885
  %v896 = vadd.f32 %v807, %v877
  %v897 = vadd.f32 %v808, %v887
  %v898 = vadd.f32 %v809, %v888
  %v899 = vadd.f32 %v810, %v889
  %v900 = vadd.f32 %v811, %v890
  %v901 = vadd.f32 %v830, %v862
  %v902 = vadd.f32 %v831, %v863
  %v903 = vadd.f32 %v832, %v864
  %v904 = vadd.f32 %v833, %v865
  %s905 = scalar_lea.vmem %s2, 104
  %v906 = vld [vmem:[%s905] sm:$0xff]
  %908 = vset.pattern.permute.xlu0 0
  %909 = vperm.xlu0 %908, %v906
  %v910 = vpop.permute.xlu0 %909
  %v912 = vmul.f32 %v46, %v910
  %v913 = vmul.f32 %v47, %v910
  %v914 = vmul.f32 %v48, %v910
  %v915 = vmul.f32 %v49, %v910
  %v916 = vmul.f32 %v50, %v910
  %922 = vrot.lane.b32.xlu0 %v912, 96
  %v923 = vpop.permute.xlu0 %922
  %924 = vrot.lane.b32.xlu0 %v913, 96
  %v925 = vpop.permute.xlu0 %924
  %926 = vrot.lane.b32.xlu0 %v914, 96
  %v927 = vpop.permute.xlu0 %926
  %928 = vrot.lane.b32.xlu0 %v915, 96
  %v929 = vpop.permute.xlu0 %928
  %930 = vrot.lane.b32.xlu0 %v916, 96
  %v931 = vpop.permute.xlu0 %930
  %v932 = vsel %vm861, %v923, %v925
  %v933 = vsel %vm861, %v925, %v927
  %v934 = vsel %vm861, %v927, %v929
  %v935 = vsel %vm861, %v929, %v931
  %v941 = vadd.f32 %v871, %v932
  %v942 = vadd.f32 %v872, %v933
  %v943 = vadd.f32 %v873, %v934
  %v944 = vadd.f32 %v874, %v935
  %v945 = vadd.f32 %v875, %v931
  %946 = vrot.lane.b32.xlu0 %v912, 32
  %v947 = vpop.permute.xlu0 %946
  %948 = vrot.lane.b32.xlu0 %v913, 32
  %v949 = vpop.permute.xlu0 %948
  %950 = vrot.lane.b32.xlu0 %v914, 32
  %v951 = vpop.permute.xlu0 %950
  %952 = vrot.lane.b32.xlu0 %v915, 32
  %v953 = vpop.permute.xlu0 %952
  %954 = vrot.lane.b32.xlu0 %v916, 32
  %v955 = vpop.permute.xlu0 %954
  %v956 = vsel %vm886, %v947, %v949
  %v957 = vsel %vm886, %v949, %v951
  %v958 = vsel %vm886, %v951, %v953
  %v959 = vsel %vm886, %v953, %v955
  %v965 = vadd.f32 %v896, %v947
  %v966 = vadd.f32 %v897, %v956
  %v967 = vadd.f32 %v898, %v957
  %v968 = vadd.f32 %v899, %v958
  %v969 = vadd.f32 %v900, %v959
  %v970 = vadd.f32 %v901, %v932
  %v971 = vadd.f32 %v902, %v933
  %v972 = vadd.f32 %v903, %v934
  %v973 = vadd.f32 %v904, %v935
  %s974 = scalar_lea.vmem %s2, 112
  %v975 = vld [vmem:[%s974] sm:$0xff]
  %977 = vset.pattern.permute.xlu0 0
  %978 = vperm.xlu0 %977, %v975
  %v979 = vpop.permute.xlu0 %978
  %v981 = vmul.f32 %v72, %v979
  %v982 = vmul.f32 %v73, %v979
  %v983 = vmul.f32 %v74, %v979
  %v984 = vmul.f32 %v75, %v979
  %v985 = vmul.f32 %v76, %v979
  %991 = vrot.lane.b32.xlu0 %v981, 96
  %v992 = vpop.permute.xlu0 %991
  %993 = vrot.lane.b32.xlu0 %v982, 96
  %v994 = vpop.permute.xlu0 %993
  %995 = vrot.lane.b32.xlu0 %v983, 96
  %v996 = vpop.permute.xlu0 %995
  %997 = vrot.lane.b32.xlu0 %v984, 96
  %v998 = vpop.permute.xlu0 %997
  %999 = vrot.lane.b32.xlu0 %v985, 96
  %v1000 = vpop.permute.xlu0 %999
  %v1001 = vsel %vm861, %v992, %v994
  %v1002 = vsel %vm861, %v994, %v996
  %v1003 = vsel %vm861, %v996, %v998
  %v1004 = vsel %vm861, %v998, %v1000
  %v1010 = vadd.f32 %v941, %v1001
  %v1011 = vadd.f32 %v942, %v1002
  %v1012 = vadd.f32 %v943, %v1003
  %v1013 = vadd.f32 %v944, %v1004
  %v1014 = vadd.f32 %v945, %v1000
  %1015 = vrot.lane.b32.xlu0 %v981, 32
  %v1016 = vpop.permute.xlu0 %1015
  %1017 = vrot.lane.b32.xlu0 %v982, 32
  %v1018 = vpop.permute.xlu0 %1017
  %1019 = vrot.lane.b32.xlu0 %v983, 32
  %v1020 = vpop.permute.xlu0 %1019
  %1021 = vrot.lane.b32.xlu0 %v984, 32
  %v1022 = vpop.permute.xlu0 %1021
  %1023 = vrot.lane.b32.xlu0 %v985, 32
  %v1024 = vpop.permute.xlu0 %1023
  %v1025 = vsel %vm886, %v1016, %v1018
  %v1026 = vsel %vm886, %v1018, %v1020
  %v1027 = vsel %vm886, %v1020, %v1022
  %v1028 = vsel %vm886, %v1022, %v1024
  %v1034 = vadd.f32 %v965, %v1016
  %v1035 = vadd.f32 %v966, %v1025
  %v1036 = vadd.f32 %v967, %v1026
  %v1037 = vadd.f32 %v968, %v1027
  %v1038 = vadd.f32 %v969, %v1028
  %v1039 = vadd.f32 %v970, %v1001
  %v1040 = vadd.f32 %v971, %v1002
  %v1041 = vadd.f32 %v972, %v1003
  %v1042 = vadd.f32 %v973, %v1004
  %s1043 = scalar_lea.vmem %s2, 120
  %v1044 = vld [vmem:[%s1043] sm:$0xff]
  %1046 = vset.pattern.permute.xlu0 0
  %1047 = vperm.xlu0 %1046, %v1044
  %v1048 = vpop.permute.xlu0 %1047
  %v1050 = vmul.f32 %v98, %v1048
  %v1051 = vmul.f32 %v99, %v1048
  %v1052 = vmul.f32 %v100, %v1048
  %v1053 = vmul.f32 %v101, %v1048
  %v1054 = vmul.f32 %v102, %v1048
  %1060 = vrot.lane.b32.xlu0 %v1050, 96
  %v1061 = vpop.permute.xlu0 %1060
  %1062 = vrot.lane.b32.xlu0 %v1051, 96
  %v1063 = vpop.permute.xlu0 %1062
  %1064 = vrot.lane.b32.xlu0 %v1052, 96
  %v1065 = vpop.permute.xlu0 %1064
  %1066 = vrot.lane.b32.xlu0 %v1053, 96
  %v1067 = vpop.permute.xlu0 %1066
  %1068 = vrot.lane.b32.xlu0 %v1054, 96
  %v1069 = vpop.permute.xlu0 %1068
  %v1070 = vsel %vm861, %v1061, %v1063
  %v1071 = vsel %vm861, %v1063, %v1065
  %v1072 = vsel %vm861, %v1065, %v1067
  %v1073 = vsel %vm861, %v1067, %v1069
  %v1079 = vadd.f32 %v1010, %v1070
  %v1080 = vadd.f32 %v1011, %v1071
  %v1081 = vadd.f32 %v1012, %v1072
  %v1082 = vadd.f32 %v1013, %v1073
  %v1083 = vadd.f32 %v1014, %v1069
  %1084 = vrot.lane.b32.xlu0 %v1050, 32
  %v1085 = vpop.permute.xlu0 %1084
  %1086 = vrot.lane.b32.xlu0 %v1051, 32
  %v1087 = vpop.permute.xlu0 %1086
  %1088 = vrot.lane.b32.xlu0 %v1052, 32
  %v1089 = vpop.permute.xlu0 %1088
  %1090 = vrot.lane.b32.xlu0 %v1053, 32
  %v1091 = vpop.permute.xlu0 %1090
  %1092 = vrot.lane.b32.xlu0 %v1054, 32
  %v1093 = vpop.permute.xlu0 %1092
  %v1094 = vsel %vm886, %v1085, %v1087
  %v1095 = vsel %vm886, %v1087, %v1089
  %v1096 = vsel %vm886, %v1089, %v1091
  %v1097 = vsel %vm886, %v1091, %v1093
  %v1103 = vadd.f32 %v1034, %v1085
  %v1104 = vadd.f32 %v1035, %v1094
  %v1105 = vadd.f32 %v1036, %v1095
  %v1106 = vadd.f32 %v1037, %v1096
  %v1107 = vadd.f32 %v1038, %v1097
  %v1108 = vadd.f32 %v1039, %v1070
  %v1109 = vadd.f32 %v1040, %v1071
  %v1110 = vadd.f32 %v1041, %v1072
  %v1111 = vadd.f32 %v1042, %v1073
  %s1112 = scalar_lea.vmem %s2, 128
  %v1113 = vld [vmem:[%s1112] sm:$0xff]
  %1115 = vset.pattern.permute.xlu0 0
  %1116 = vperm.xlu0 %1115, %v1113
  %v1117 = vpop.permute.xlu0 %1116
  %v1119 = vmul.f32 %v26, %v1117
  %v1120 = vmul.f32 %v27, %v1117
  %v1121 = vmul.f32 %v28, %v1117
  %v1122 = vmul.f32 %v29, %v1117
  %v1123 = vmul.f32 %v30, %v1117
  %1129 = vrot.lane.b32.xlu0 %v1119, 95
  %v1130 = vpop.permute.xlu0 %1129
  %1131 = vrot.lane.b32.xlu0 %v1120, 95
  %v1132 = vpop.permute.xlu0 %1131
  %1133 = vrot.lane.b32.xlu0 %v1121, 95
  %v1134 = vpop.permute.xlu0 %1133
  %1135 = vrot.lane.b32.xlu0 %v1122, 95
  %v1136 = vpop.permute.xlu0 %1135
  %1137 = vrot.lane.b32.xlu0 %v1123, 95
  %v1138 = vpop.permute.xlu0 %1137
  %vm1139 = vcmask 777216
  %v1140 = vsel %vm1139, %v1130, %v1132
  %v1141 = vsel %vm1139, %v1132, %v1134
  %v1142 = vsel %vm1139, %v1134, %v1136
  %v1143 = vsel %vm1139, %v1136, %v1138
  %v1149 = vadd.f32 %v1079, %v1140
  %v1150 = vadd.f32 %v1080, %v1141
  %v1151 = vadd.f32 %v1081, %v1142
  %v1152 = vadd.f32 %v1082, %v1143
  %v1153 = vadd.f32 %v1083, %v1138
  %1154 = vrot.lane.b32.xlu0 %v1119, 29
  %v1155 = vpop.permute.xlu0 %1154
  %1156 = vrot.lane.b32.xlu0 %v1120, 29
  %v1157 = vpop.permute.xlu0 %1156
  %1158 = vrot.lane.b32.xlu0 %v1121, 29
  %v1159 = vpop.permute.xlu0 %1158
  %1160 = vrot.lane.b32.xlu0 %v1122, 29
  %v1161 = vpop.permute.xlu0 %1160
  %1162 = vrot.lane.b32.xlu0 %v1123, 29
  %v1163 = vpop.permute.xlu0 %1162
  %vm1164 = vcmask 236544
  %v1165 = vsel %vm1164, %v1155, %v1157
  %v1166 = vsel %vm1164, %v1157, %v1159
  %v1167 = vsel %vm1164, %v1159, %v1161
  %v1168 = vsel %vm1164, %v1161, %v1163
  %v1174 = vadd.f32 %v1103, %v1155
  %v1175 = vadd.f32 %v1104, %v1165
  %v1176 = vadd.f32 %v1105, %v1166
  %v1177 = vadd.f32 %v1106, %v1167
  %v1178 = vadd.f32 %v1107, %v1168
  %1179 = vrot.lane.b32.xlu0 %v1119, 91
  %v1180 = vpop.permute.xlu0 %1179
  %1181 = vrot.lane.b32.xlu0 %v1120, 91
  %v1182 = vpop.permute.xlu0 %1181
  %1183 = vrot.lane.b32.xlu0 %v1121, 91
  %v1184 = vpop.permute.xlu0 %1183
  %1185 = vrot.lane.b32.xlu0 %v1122, 91
  %v1186 = vpop.permute.xlu0 %1185
  %1187 = vrot.lane.b32.xlu0 %v1123, 91
  %v1188 = vpop.permute.xlu0 %1187
  %vm1189 = vcmask 744448
  %v1190 = vsel %vm1189, %v1180, %v1182
  %v1191 = vsel %vm1189, %v1182, %v1184
  %v1192 = vsel %vm1189, %v1184, %v1186
  %v1193 = vsel %vm1189, %v1186, %v1188
  %v1198 = vadd.f32 %v1108, %v1190
  %v1199 = vadd.f32 %v1109, %v1191
  %v1200 = vadd.f32 %v1110, %v1192
  %v1201 = vadd.f32 %v1111, %v1193
  %s1202 = scalar_lea.vmem %s2, 136
  %v1203 = vld [vmem:[%s1202] sm:$0xff]
  %1205 = vset.pattern.permute.xlu0 0
  %1206 = vperm.xlu0 %1205, %v1203
  %v1207 = vpop.permute.xlu0 %1206
  %v1209 = vmul.f32 %v46, %v1207
  %v1210 = vmul.f32 %v47, %v1207
  %v1211 = vmul.f32 %v48, %v1207
  %v1212 = vmul.f32 %v49, %v1207
  %v1213 = vmul.f32 %v50, %v1207
  %1219 = vrot.lane.b32.xlu0 %v1209, 95
  %v1220 = vpop.permute.xlu0 %1219
  %1221 = vrot.lane.b32.xlu0 %v1210, 95
  %v1222 = vpop.permute.xlu0 %1221
  %1223 = vrot.lane.b32.xlu0 %v1211, 95
  %v1224 = vpop.permute.xlu0 %1223
  %1225 = vrot.lane.b32.xlu0 %v1212, 95
  %v1226 = vpop.permute.xlu0 %1225
  %1227 = vrot.lane.b32.xlu0 %v1213, 95
  %v1228 = vpop.permute.xlu0 %1227
  %v1229 = vsel %vm1139, %v1220, %v1222
  %v1230 = vsel %vm1139, %v1222, %v1224
  %v1231 = vsel %vm1139, %v1224, %v1226
  %v1232 = vsel %vm1139, %v1226, %v1228
  %v1238 = vadd.f32 %v1149, %v1229
  %v1239 = vadd.f32 %v1150, %v1230
  %v1240 = vadd.f32 %v1151, %v1231
  %v1241 = vadd.f32 %v1152, %v1232
  %v1242 = vadd.f32 %v1153, %v1228
  %1243 = vrot.lane.b32.xlu0 %v1209, 29
  %v1244 = vpop.permute.xlu0 %1243
  %1245 = vrot.lane.b32.xlu0 %v1210, 29
  %v1246 = vpop.permute.xlu0 %1245
  %1247 = vrot.lane.b32.xlu0 %v1211, 29
  %v1248 = vpop.permute.xlu0 %1247
  %1249 = vrot.lane.b32.xlu0 %v1212, 29
  %v1250 = vpop.permute.xlu0 %1249
  %1251 = vrot.lane.b32.xlu0 %v1213, 29
  %v1252 = vpop.permute.xlu0 %1251
  %v1253 = vsel %vm1164, %v1244, %v1246
  %v1254 = vsel %vm1164, %v1246, %v1248
  %v1255 = vsel %vm1164, %v1248, %v1250
  %v1256 = vsel %vm1164, %v1250, %v1252
  %v1262 = vadd.f32 %v1174, %v1244
  %v1263 = vadd.f32 %v1175, %v1253
  %v1264 = vadd.f32 %v1176, %v1254
  %v1265 = vadd.f32 %v1177, %v1255
  %v1266 = vadd.f32 %v1178, %v1256
  %1267 = vrot.lane.b32.xlu0 %v1209, 91
  %v1268 = vpop.permute.xlu0 %1267
  %1269 = vrot.lane.b32.xlu0 %v1210, 91
  %v1270 = vpop.permute.xlu0 %1269
  %1271 = vrot.lane.b32.xlu0 %v1211, 91
  %v1272 = vpop.permute.xlu0 %1271
  %1273 = vrot.lane.b32.xlu0 %v1212, 91
  %v1274 = vpop.permute.xlu0 %1273
  %1275 = vrot.lane.b32.xlu0 %v1213, 91
  %v1276 = vpop.permute.xlu0 %1275
  %v1277 = vsel %vm1189, %v1268, %v1270
  %v1278 = vsel %vm1189, %v1270, %v1272
  %v1279 = vsel %vm1189, %v1272, %v1274
  %v1280 = vsel %vm1189, %v1274, %v1276
  %v1285 = vadd.f32 %v1198, %v1277
  %v1286 = vadd.f32 %v1199, %v1278
  %v1287 = vadd.f32 %v1200, %v1279
  %v1288 = vadd.f32 %v1201, %v1280
  %s1289 = scalar_lea.vmem %s2, 144
  %v1290 = vld [vmem:[%s1289] sm:$0xff]
  %1292 = vset.pattern.permute.xlu0 0
  %1293 = vperm.xlu0 %1292, %v1290
  %v1294 = vpop.permute.xlu0 %1293
  %v1296 = vmul.f32 %v72, %v1294
  %v1297 = vmul.f32 %v73, %v1294
  %v1298 = vmul.f32 %v74, %v1294
  %v1299 = vmul.f32 %v75, %v1294
  %v1300 = vmul.f32 %v76, %v1294
  %1306 = vrot.lane.b32.xlu0 %v1296, 95
  %v1307 = vpop.permute.xlu0 %1306
  %1308 = vrot.lane.b32.xlu0 %v1297, 95
  %v1309 = vpop.permute.xlu0 %1308
  %1310 = vrot.lane.b32.xlu0 %v1298, 95
  %v1311 = vpop.permute.xlu0 %1310
  %1312 = vrot.lane.b32.xlu0 %v1299, 95
  %v1313 = vpop.permute.xlu0 %1312
  %1314 = vrot.lane.b32.xlu0 %v1300, 95
  %v1315 = vpop.permute.xlu0 %1314
  %v1316 = vsel %vm1139, %v1307, %v1309
  %v1317 = vsel %vm1139, %v1309, %v1311
  %v1318 = vsel %vm1139, %v1311, %v1313
  %v1319 = vsel %vm1139, %v1313, %v1315
  %v1325 = vadd.f32 %v1238, %v1316
  %v1326 = vadd.f32 %v1239, %v1317
  %v1327 = vadd.f32 %v1240, %v1318
  %v1328 = vadd.f32 %v1241, %v1319
  %v1329 = vadd.f32 %v1242, %v1315
  %1330 = vrot.lane.b32.xlu0 %v1296, 29
  %v1331 = vpop.permute.xlu0 %1330
  %1332 = vrot.lane.b32.xlu0 %v1297, 29
  %v1333 = vpop.permute.xlu0 %1332
  %1334 = vrot.lane.b32.xlu0 %v1298, 29
  %v1335 = vpop.permute.xlu0 %1334
  %1336 = vrot.lane.b32.xlu0 %v1299, 29
  %v1337 = vpop.permute.xlu0 %1336
  %1338 = vrot.lane.b32.xlu0 %v1300, 29
  %v1339 = vpop.permute.xlu0 %1338
  %v1340 = vsel %vm1164, %v1331, %v1333
  %v1341 = vsel %vm1164, %v1333, %v1335
  %v1342 = vsel %vm1164, %v1335, %v1337
  %v1343 = vsel %vm1164, %v1337, %v1339
  %v1349 = vadd.f32 %v1262, %v1331
  %v1350 = vadd.f32 %v1263, %v1340
  %v1351 = vadd.f32 %v1264, %v1341
  %v1352 = vadd.f32 %v1265, %v1342
  %v1353 = vadd.f32 %v1266, %v1343
  %1354 = vrot.lane.b32.xlu0 %v1296, 91
  %v1355 = vpop.permute.xlu0 %1354
  %1356 = vrot.lane.b32.xlu0 %v1297, 91
  %v1357 = vpop.permute.xlu0 %1356
  %1358 = vrot.lane.b32.xlu0 %v1298, 91
  %v1359 = vpop.permute.xlu0 %1358
  %1360 = vrot.lane.b32.xlu0 %v1299, 91
  %v1361 = vpop.permute.xlu0 %1360
  %1362 = vrot.lane.b32.xlu0 %v1300, 91
  %v1363 = vpop.permute.xlu0 %1362
  %v1364 = vsel %vm1189, %v1355, %v1357
  %v1365 = vsel %vm1189, %v1357, %v1359
  %v1366 = vsel %vm1189, %v1359, %v1361
  %v1367 = vsel %vm1189, %v1361, %v1363
  %v1372 = vadd.f32 %v1285, %v1364
  %v1373 = vadd.f32 %v1286, %v1365
  %v1374 = vadd.f32 %v1287, %v1366
  %v1375 = vadd.f32 %v1288, %v1367
  %s1376 = scalar_lea.vmem %s2, 152
  %v1377 = vld [vmem:[%s1376] sm:$0xff]
  %1379 = vset.pattern.permute.xlu0 0
  %1380 = vperm.xlu0 %1379, %v1377
  %v1381 = vpop.permute.xlu0 %1380
  %v1383 = vmul.f32 %v98, %v1381
  %v1384 = vmul.f32 %v99, %v1381
  %v1385 = vmul.f32 %v100, %v1381
  %v1386 = vmul.f32 %v101, %v1381
  %v1387 = vmul.f32 %v102, %v1381
  %1393 = vrot.lane.b32.xlu0 %v1383, 95
  %v1394 = vpop.permute.xlu0 %1393
  %1395 = vrot.lane.b32.xlu0 %v1384, 95
  %v1396 = vpop.permute.xlu0 %1395
  %1397 = vrot.lane.b32.xlu0 %v1385, 95
  %v1398 = vpop.permute.xlu0 %1397
  %1399 = vrot.lane.b32.xlu0 %v1386, 95
  %v1400 = vpop.permute.xlu0 %1399
  %1401 = vrot.lane.b32.xlu0 %v1387, 95
  %v1402 = vpop.permute.xlu0 %1401
  %v1403 = vsel %vm1139, %v1394, %v1396
  %v1404 = vsel %vm1139, %v1396, %v1398
  %v1405 = vsel %vm1139, %v1398, %v1400
  %v1406 = vsel %vm1139, %v1400, %v1402
  %v1412 = vadd.f32 %v1325, %v1403
  %v1413 = vadd.f32 %v1326, %v1404
  %v1414 = vadd.f32 %v1327, %v1405
  %v1415 = vadd.f32 %v1328, %v1406
  %v1416 = vadd.f32 %v1329, %v1402
  %1417 = vrot.lane.b32.xlu0 %v1383, 29
  %v1418 = vpop.permute.xlu0 %1417
  %1419 = vrot.lane.b32.xlu0 %v1384, 29
  %v1420 = vpop.permute.xlu0 %1419
  %1421 = vrot.lane.b32.xlu0 %v1385, 29
  %v1422 = vpop.permute.xlu0 %1421
  %1423 = vrot.lane.b32.xlu0 %v1386, 29
  %v1424 = vpop.permute.xlu0 %1423
  %1425 = vrot.lane.b32.xlu0 %v1387, 29
  %v1426 = vpop.permute.xlu0 %1425
  %v1427 = vsel %vm1164, %v1418, %v1420
  %v1428 = vsel %vm1164, %v1420, %v1422
  %v1429 = vsel %vm1164, %v1422, %v1424
  %v1430 = vsel %vm1164, %v1424, %v1426
  %v1436 = vadd.f32 %v1349, %v1418
  %v1437 = vadd.f32 %v1350, %v1427
  %v1438 = vadd.f32 %v1351, %v1428
  %v1439 = vadd.f32 %v1352, %v1429
  %v1440 = vadd.f32 %v1353, %v1430
  %1441 = vrot.lane.b32.xlu0 %v1383, 91
  %v1442 = vpop.permute.xlu0 %1441
  %1443 = vrot.lane.b32.xlu0 %v1384, 91
  %v1444 = vpop.permute.xlu0 %1443
  %1445 = vrot.lane.b32.xlu0 %v1385, 91
  %v1446 = vpop.permute.xlu0 %1445
  %1447 = vrot.lane.b32.xlu0 %v1386, 91
  %v1448 = vpop.permute.xlu0 %1447
  %1449 = vrot.lane.b32.xlu0 %v1387, 91
  %v1450 = vpop.permute.xlu0 %1449
  %v1451 = vsel %vm1189, %v1442, %v1444
  %v1452 = vsel %vm1189, %v1444, %v1446
  %v1453 = vsel %vm1189, %v1446, %v1448
  %v1454 = vsel %vm1189, %v1448, %v1450
  %v1459 = vadd.f32 %v1372, %v1451
  %v1460 = vadd.f32 %v1373, %v1452
  %v1461 = vadd.f32 %v1374, %v1453
  %v1462 = vadd.f32 %v1375, %v1454
  %s1463 = scalar_lea.vmem %s2, 160
  %v1464 = vld [vmem:[%s1463] sm:$0xff]
  %1466 = vset.pattern.permute.xlu0 0
  %1467 = vperm.xlu0 %1466, %v1464
  %v1468 = vpop.permute.xlu0 %1467
  %v1470 = vmul.f32 %v26, %v1468
  %v1471 = vmul.f32 %v27, %v1468
  %v1472 = vmul.f32 %v28, %v1468
  %v1473 = vmul.f32 %v29, %v1468
  %v1474 = vmul.f32 %v30, %v1468
  %1480 = vrot.lane.b32.xlu0 %v1470, 94
  %v1481 = vpop.permute.xlu0 %1480
  %1482 = vrot.lane.b32.xlu0 %v1471, 94
  %v1483 = vpop.permute.xlu0 %1482
  %1484 = vrot.lane.b32.xlu0 %v1472, 94
  %v1485 = vpop.permute.xlu0 %1484
  %1486 = vrot.lane.b32.xlu0 %v1473, 94
  %v1487 = vpop.permute.xlu0 %1486
  %1488 = vrot.lane.b32.xlu0 %v1474, 94
  %v1489 = vpop.permute.xlu0 %1488
  %vm1490 = vcmask 769024
  %v1491 = vsel %vm1490, %v1481, %v1483
  %v1492 = vsel %vm1490, %v1483, %v1485
  %v1493 = vsel %vm1490, %v1485, %v1487
  %v1494 = vsel %vm1490, %v1487, %v1489
  %v1500 = vadd.f32 %v1412, %v1491
  %v1501 = vadd.f32 %v1413, %v1492
  %v1502 = vadd.f32 %v1414, %v1493
  %v1503 = vadd.f32 %v1415, %v1494
  %v1504 = vadd.f32 %v1416, %v1489
  %1505 = vrot.lane.b32.xlu0 %v1470, 26
  %v1506 = vpop.permute.xlu0 %1505
  %1507 = vrot.lane.b32.xlu0 %v1471, 26
  %v1508 = vpop.permute.xlu0 %1507
  %1509 = vrot.lane.b32.xlu0 %v1472, 26
  %v1510 = vpop.permute.xlu0 %1509
  %1511 = vrot.lane.b32.xlu0 %v1473, 26
  %v1512 = vpop.permute.xlu0 %1511
  %1513 = vrot.lane.b32.xlu0 %v1474, 26
  %v1514 = vpop.permute.xlu0 %1513
  %vm1515 = vcmask 211968
  %v1516 = vsel %vm1515, %v1506, %v1508
  %v1517 = vsel %vm1515, %v1508, %v1510
  %v1518 = vsel %vm1515, %v1510, %v1512
  %v1519 = vsel %vm1515, %v1512, %v1514
  %v1525 = vadd.f32 %v1436, %v1506
  %v1526 = vadd.f32 %v1437, %v1516
  %v1527 = vadd.f32 %v1438, %v1517
  %v1528 = vadd.f32 %v1439, %v1518
  %v1529 = vadd.f32 %v1440, %v1519
  %1530 = vrot.lane.b32.xlu0 %v1470, 86
  %v1531 = vpop.permute.xlu0 %1530
  %1532 = vrot.lane.b32.xlu0 %v1471, 86
  %v1533 = vpop.permute.xlu0 %1532
  %1534 = vrot.lane.b32.xlu0 %v1472, 86
  %v1535 = vpop.permute.xlu0 %1534
  %1536 = vrot.lane.b32.xlu0 %v1473, 86
  %v1537 = vpop.permute.xlu0 %1536
  %1538 = vrot.lane.b32.xlu0 %v1474, 86
  %v1539 = vpop.permute.xlu0 %1538
  %vm1540 = vcmask 703488
  %v1541 = vsel %vm1540, %v1531, %v1533
  %v1542 = vsel %vm1540, %v1533, %v1535
  %v1543 = vsel %vm1540, %v1535, %v1537
  %v1544 = vsel %vm1540, %v1537, %v1539
  %v1549 = vadd.f32 %v1459, %v1541
  %v1550 = vadd.f32 %v1460, %v1542
  %v1551 = vadd.f32 %v1461, %v1543
  %v1552 = vadd.f32 %v1462, %v1544
  %s1553 = scalar_lea.vmem %s2, 168
  %v1554 = vld [vmem:[%s1553] sm:$0xff]
  %1556 = vset.pattern.permute.xlu0 0
  %1557 = vperm.xlu0 %1556, %v1554
  %v1558 = vpop.permute.xlu0 %1557
  %v1560 = vmul.f32 %v46, %v1558
  %v1561 = vmul.f32 %v47, %v1558
  %v1562 = vmul.f32 %v48, %v1558
  %v1563 = vmul.f32 %v49, %v1558
  %v1564 = vmul.f32 %v50, %v1558
  %1570 = vrot.lane.b32.xlu0 %v1560, 94
  %v1571 = vpop.permute.xlu0 %1570
  %1572 = vrot.lane.b32.xlu0 %v1561, 94
  %v1573 = vpop.permute.xlu0 %1572
  %1574 = vrot.lane.b32.xlu0 %v1562, 94
  %v1575 = vpop.permute.xlu0 %1574
  %1576 = vrot.lane.b32.xlu0 %v1563, 94
  %v1577 = vpop.permute.xlu0 %1576
  %1578 = vrot.lane.b32.xlu0 %v1564, 94
  %v1579 = vpop.permute.xlu0 %1578
  %v1580 = vsel %vm1490, %v1571, %v1573
  %v1581 = vsel %vm1490, %v1573, %v1575
  %v1582 = vsel %vm1490, %v1575, %v1577
  %v1583 = vsel %vm1490, %v1577, %v1579
  %v1589 = vadd.f32 %v1500, %v1580
  %v1590 = vadd.f32 %v1501, %v1581
  %v1591 = vadd.f32 %v1502, %v1582
  %v1592 = vadd.f32 %v1503, %v1583
  %v1593 = vadd.f32 %v1504, %v1579
  %1594 = vrot.lane.b32.xlu0 %v1560, 26
  %v1595 = vpop.permute.xlu0 %1594
  %1596 = vrot.lane.b32.xlu0 %v1561, 26
  %v1597 = vpop.permute.xlu0 %1596
  %1598 = vrot.lane.b32.xlu0 %v1562, 26
  %v1599 = vpop.permute.xlu0 %1598
  %1600 = vrot.lane.b32.xlu0 %v1563, 26
  %v1601 = vpop.permute.xlu0 %1600
  %1602 = vrot.lane.b32.xlu0 %v1564, 26
  %v1603 = vpop.permute.xlu0 %1602
  %v1604 = vsel %vm1515, %v1595, %v1597
  %v1605 = vsel %vm1515, %v1597, %v1599
  %v1606 = vsel %vm1515, %v1599, %v1601
  %v1607 = vsel %vm1515, %v1601, %v1603
  %v1613 = vadd.f32 %v1525, %v1595
  %v1614 = vadd.f32 %v1526, %v1604
  %v1615 = vadd.f32 %v1527, %v1605
  %v1616 = vadd.f32 %v1528, %v1606
  %v1617 = vadd.f32 %v1529, %v1607
  %1618 = vrot.lane.b32.xlu0 %v1560, 86
  %v1619 = vpop.permute.xlu0 %1618
  %1620 = vrot.lane.b32.xlu0 %v1561, 86
  %v1621 = vpop.permute.xlu0 %1620
  %1622 = vrot.lane.b32.xlu0 %v1562, 86
  %v1623 = vpop.permute.xlu0 %1622
  %1624 = vrot.lane.b32.xlu0 %v1563, 86
  %v1625 = vpop.permute.xlu0 %1624
  %1626 = vrot.lane.b32.xlu0 %v1564, 86
  %v1627 = vpop.permute.xlu0 %1626
  %v1628 = vsel %vm1540, %v1619, %v1621
  %v1629 = vsel %vm1540, %v1621, %v1623
  %v1630 = vsel %vm1540, %v1623, %v1625
  %v1631 = vsel %vm1540, %v1625, %v1627
  %v1636 = vadd.f32 %v1549, %v1628
  %v1637 = vadd.f32 %v1550, %v1629
  %v1638 = vadd.f32 %v1551, %v1630
  %v1639 = vadd.f32 %v1552, %v1631
  %s1640 = scalar_lea.vmem %s2, 176
  %v1641 = vld [vmem:[%s1640] sm:$0xff]
  %1643 = vset.pattern.permute.xlu0 0
  %1644 = vperm.xlu0 %1643, %v1641
  %v1645 = vpop.permute.xlu0 %1644
  %v1647 = vmul.f32 %v72, %v1645
  %v1648 = vmul.f32 %v73, %v1645
  %v1649 = vmul.f32 %v74, %v1645
  %v1650 = vmul.f32 %v75, %v1645
  %v1651 = vmul.f32 %v76, %v1645
  %1657 = vrot.lane.b32.xlu0 %v1647, 94
  %v1658 = vpop.permute.xlu0 %1657
  %1659 = vrot.lane.b32.xlu0 %v1648, 94
  %v1660 = vpop.permute.xlu0 %1659
  %1661 = vrot.lane.b32.xlu0 %v1649, 94
  %v1662 = vpop.permute.xlu0 %1661
  %1663 = vrot.lane.b32.xlu0 %v1650, 94
  %v1664 = vpop.permute.xlu0 %1663
  %1665 = vrot.lane.b32.xlu0 %v1651, 94
  %v1666 = vpop.permute.xlu0 %1665
  %v1667 = vsel %vm1490, %v1658, %v1660
  %v1668 = vsel %vm1490, %v1660, %v1662
  %v1669 = vsel %vm1490, %v1662, %v1664
  %v1670 = vsel %vm1490, %v1664, %v1666
  %v1676 = vadd.f32 %v1589, %v1667
  %v1677 = vadd.f32 %v1590, %v1668
  %v1678 = vadd.f32 %v1591, %v1669
  %v1679 = vadd.f32 %v1592, %v1670
  %v1680 = vadd.f32 %v1593, %v1666
  %1681 = vrot.lane.b32.xlu0 %v1647, 26
  %v1682 = vpop.permute.xlu0 %1681
  %1683 = vrot.lane.b32.xlu0 %v1648, 26
  %v1684 = vpop.permute.xlu0 %1683
  %1685 = vrot.lane.b32.xlu0 %v1649, 26
  %v1686 = vpop.permute.xlu0 %1685
  %1687 = vrot.lane.b32.xlu0 %v1650, 26
  %v1688 = vpop.permute.xlu0 %1687
  %1689 = vrot.lane.b32.xlu0 %v1651, 26
  %v1690 = vpop.permute.xlu0 %1689
  %v1691 = vsel %vm1515, %v1682, %v1684
  %v1692 = vsel %vm1515, %v1684, %v1686
  %v1693 = vsel %vm1515, %v1686, %v1688
  %v1694 = vsel %vm1515, %v1688, %v1690
  %v1700 = vadd.f32 %v1613, %v1682
  %v1701 = vadd.f32 %v1614, %v1691
  %v1702 = vadd.f32 %v1615, %v1692
  %v1703 = vadd.f32 %v1616, %v1693
  %v1704 = vadd.f32 %v1617, %v1694
  %1705 = vrot.lane.b32.xlu0 %v1647, 86
  %v1706 = vpop.permute.xlu0 %1705
  %1707 = vrot.lane.b32.xlu0 %v1648, 86
  %v1708 = vpop.permute.xlu0 %1707
  %1709 = vrot.lane.b32.xlu0 %v1649, 86
  %v1710 = vpop.permute.xlu0 %1709
  %1711 = vrot.lane.b32.xlu0 %v1650, 86
  %v1712 = vpop.permute.xlu0 %1711
  %1713 = vrot.lane.b32.xlu0 %v1651, 86
  %v1714 = vpop.permute.xlu0 %1713
  %v1715 = vsel %vm1540, %v1706, %v1708
  %v1716 = vsel %vm1540, %v1708, %v1710
  %v1717 = vsel %vm1540, %v1710, %v1712
  %v1718 = vsel %vm1540, %v1712, %v1714
  %v1723 = vadd.f32 %v1636, %v1715
  %v1724 = vadd.f32 %v1637, %v1716
  %v1725 = vadd.f32 %v1638, %v1717
  %v1726 = vadd.f32 %v1639, %v1718
  %s1727 = scalar_lea.vmem %s2, 184
  %v1728 = vld [vmem:[%s1727] sm:$0xff]
  %1730 = vset.pattern.permute.xlu0 0
  %1731 = vperm.xlu0 %1730, %v1728
  %v1732 = vpop.permute.xlu0 %1731
  %v1734 = vmul.f32 %v98, %v1732
  %v1735 = vmul.f32 %v99, %v1732
  %v1736 = vmul.f32 %v100, %v1732
  %v1737 = vmul.f32 %v101, %v1732
  %v1738 = vmul.f32 %v102, %v1732
  %1744 = vrot.lane.b32.xlu0 %v1734, 94
  %v1745 = vpop.permute.xlu0 %1744
  %1746 = vrot.lane.b32.xlu0 %v1735, 94
  %v1747 = vpop.permute.xlu0 %1746
  %1748 = vrot.lane.b32.xlu0 %v1736, 94
  %v1749 = vpop.permute.xlu0 %1748
  %1750 = vrot.lane.b32.xlu0 %v1737, 94
  %v1751 = vpop.permute.xlu0 %1750
  %1752 = vrot.lane.b32.xlu0 %v1738, 94
  %v1753 = vpop.permute.xlu0 %1752
  %v1754 = vsel %vm1490, %v1745, %v1747
  %v1755 = vsel %vm1490, %v1747, %v1749
  %v1756 = vsel %vm1490, %v1749, %v1751
  %v1757 = vsel %vm1490, %v1751, %v1753
  %v1763 = vadd.f32 %v1676, %v1754
  %v1764 = vadd.f32 %v1677, %v1755
  %v1765 = vadd.f32 %v1678, %v1756
  %v1766 = vadd.f32 %v1679, %v1757
  %v1767 = vadd.f32 %v1680, %v1753
  %1768 = vrot.lane.b32.xlu0 %v1734, 26
  %v1769 = vpop.permute.xlu0 %1768
  %1770 = vrot.lane.b32.xlu0 %v1735, 26
  %v1771 = vpop.permute.xlu0 %1770
  %1772 = vrot.lane.b32.xlu0 %v1736, 26
  %v1773 = vpop.permute.xlu0 %1772
  %1774 = vrot.lane.b32.xlu0 %v1737, 26
  %v1775 = vpop.permute.xlu0 %1774
  %1776 = vrot.lane.b32.xlu0 %v1738, 26
  %v1777 = vpop.permute.xlu0 %1776
  %v1778 = vsel %vm1515, %v1769, %v1771
  %v1779 = vsel %vm1515, %v1771, %v1773
  %v1780 = vsel %vm1515, %v1773, %v1775
  %v1781 = vsel %vm1515, %v1775, %v1777
  %v1787 = vadd.f32 %v1700, %v1769
  %v1788 = vadd.f32 %v1701, %v1778
  %v1789 = vadd.f32 %v1702, %v1779
  %v1790 = vadd.f32 %v1703, %v1780
  %v1791 = vadd.f32 %v1704, %v1781
  %1792 = vrot.lane.b32.xlu0 %v1734, 86
  %v1793 = vpop.permute.xlu0 %1792
  %1794 = vrot.lane.b32.xlu0 %v1735, 86
  %v1795 = vpop.permute.xlu0 %1794
  %1796 = vrot.lane.b32.xlu0 %v1736, 86
  %v1797 = vpop.permute.xlu0 %1796
  %1798 = vrot.lane.b32.xlu0 %v1737, 86
  %v1799 = vpop.permute.xlu0 %1798
  %1800 = vrot.lane.b32.xlu0 %v1738, 86
  %v1801 = vpop.permute.xlu0 %1800
  %v1802 = vsel %vm1540, %v1793, %v1795
  %v1803 = vsel %vm1540, %v1795, %v1797
  %v1804 = vsel %vm1540, %v1797, %v1799
  %v1805 = vsel %vm1540, %v1799, %v1801
  %v1810 = vadd.f32 %v1723, %v1802
  %v1811 = vadd.f32 %v1724, %v1803
  %v1812 = vadd.f32 %v1725, %v1804
  %v1813 = vadd.f32 %v1726, %v1805
  %s1814 = scalar_lea.vmem %s2, 192
  %v1815 = vld [vmem:[%s1814] sm:$0xff]
  %1817 = vset.pattern.permute.xlu0 0
  %1818 = vperm.xlu0 %1817, %v1815
  %v1819 = vpop.permute.xlu0 %1818
  %v1821 = vmul.f32 %v26, %v1819
  %v1822 = vmul.f32 %v27, %v1819
  %v1823 = vmul.f32 %v28, %v1819
  %v1824 = vmul.f32 %v29, %v1819
  %v1825 = vmul.f32 %v30, %v1819
  %1831 = vrot.lane.b32.xlu0 %v1821, 64
  %v1832 = vpop.permute.xlu0 %1831
  %1833 = vrot.lane.b32.xlu0 %v1822, 64
  %v1834 = vpop.permute.xlu0 %1833
  %1835 = vrot.lane.b32.xlu0 %v1823, 64
  %v1836 = vpop.permute.xlu0 %1835
  %1837 = vrot.lane.b32.xlu0 %v1824, 64
  %v1838 = vpop.permute.xlu0 %1837
  %1839 = vrot.lane.b32.xlu0 %v1825, 64
  %v1840 = vpop.permute.xlu0 %1839
  %vm1841 = vcmask 523264
  %v1842 = vsel %vm1841, %v1832, %v1834
  %v1843 = vsel %vm1841, %v1834, %v1836
  %v1844 = vsel %vm1841, %v1836, %v1838
  %v1845 = vsel %vm1841, %v1838, %v1840
  %v1851 = vadd.f32 %v1763, %v1842
  %v1852 = vadd.f32 %v1764, %v1843
  %v1853 = vadd.f32 %v1765, %v1844
  %v1854 = vadd.f32 %v1766, %v1845
  %v1855 = vadd.f32 %v1767, %v1840
  %v1856 = vld [vmem:[%s0 + $0x10] sm:$0xff]
  %v1857 = vld [vmem:[%s0 + $0x18] sm:$0xff]
  %v1858 = vld [vmem:[%s0 + $0x20] sm:$0xff]
  %v1859 = vld [vmem:[%s0 + $0x28] sm:$0xff]
  %v1860 = vld [vmem:[%s0 + $0x30] sm:$0xff]
  %v1861 = vmul.f32 %v1856, %v1819
  %v1862 = vmul.f32 %v1857, %v1819
  %v1863 = vmul.f32 %v1858, %v1819
  %v1864 = vmul.f32 %v1859, %v1819
  %v1865 = vmul.f32 %v1860, %v1819
  %1871 = vrot.lane.b32.xlu0 %v1861, 64
  %v1872 = vpop.permute.xlu0 %1871
  %1873 = vrot.lane.b32.xlu0 %v1862, 64
  %v1874 = vpop.permute.xlu0 %1873
  %1875 = vrot.lane.b32.xlu0 %v1863, 64
  %v1876 = vpop.permute.xlu0 %1875
  %1877 = vrot.lane.b32.xlu0 %v1864, 64
  %v1878 = vpop.permute.xlu0 %1877
  %1879 = vrot.lane.b32.xlu0 %v1865, 64
  %v1880 = vpop.permute.xlu0 %1879
  %v1881 = vsel %vm1841, %v1872, %v1874
  %v1882 = vsel %vm1841, %v1874, %v1876
  %v1883 = vsel %vm1841, %v1876, %v1878
  %v1884 = vsel %vm1841, %v1878, %v1880
  %v1890 = vadd.f32 %v1787, %v1872
  %v1891 = vadd.f32 %v1788, %v1881
  %v1892 = vadd.f32 %v1789, %v1882
  %v1893 = vadd.f32 %v1790, %v1883
  %v1894 = vadd.f32 %v1791, %v1884
  %v1895 = vadd.f32 %v1810, %v1881
  %v1896 = vadd.f32 %v1811, %v1882
  %v1897 = vadd.f32 %v1812, %v1883
  %v1898 = vadd.f32 %v1813, %v1884
  %s1899 = scalar_lea.vmem %s2, 200
  %v1900 = vld [vmem:[%s1899] sm:$0xff]
  %1902 = vset.pattern.permute.xlu0 0
  %1903 = vperm.xlu0 %1902, %v1900
  %v1904 = vpop.permute.xlu0 %1903
  %v1906 = vmul.f32 %v46, %v1904
  %v1907 = vmul.f32 %v47, %v1904
  %v1908 = vmul.f32 %v48, %v1904
  %v1909 = vmul.f32 %v49, %v1904
  %v1910 = vmul.f32 %v50, %v1904
  %1916 = vrot.lane.b32.xlu0 %v1906, 64
  %v1917 = vpop.permute.xlu0 %1916
  %1918 = vrot.lane.b32.xlu0 %v1907, 64
  %v1919 = vpop.permute.xlu0 %1918
  %1920 = vrot.lane.b32.xlu0 %v1908, 64
  %v1921 = vpop.permute.xlu0 %1920
  %1922 = vrot.lane.b32.xlu0 %v1909, 64
  %v1923 = vpop.permute.xlu0 %1922
  %1924 = vrot.lane.b32.xlu0 %v1910, 64
  %v1925 = vpop.permute.xlu0 %1924
  %v1926 = vsel %vm1841, %v1917, %v1919
  %v1927 = vsel %vm1841, %v1919, %v1921
  %v1928 = vsel %vm1841, %v1921, %v1923
  %v1929 = vsel %vm1841, %v1923, %v1925
  %v1935 = vadd.f32 %v1851, %v1926
  %v1936 = vadd.f32 %v1852, %v1927
  %v1937 = vadd.f32 %v1853, %v1928
  %v1938 = vadd.f32 %v1854, %v1929
  %v1939 = vadd.f32 %v1855, %v1925
  %v1940 = vld [vmem:[%s45 + $0x10] sm:$0xff]
  %v1941 = vld [vmem:[%s45 + $0x18] sm:$0xff]
  %v1942 = vld [vmem:[%s45 + $0x20] sm:$0xff]
  %v1943 = vld [vmem:[%s45 + $0x28] sm:$0xff]
  %v1944 = vld [vmem:[%s45 + $0x30] sm:$0xff]
  %v1945 = vmul.f32 %v1940, %v1904
  %v1946 = vmul.f32 %v1941, %v1904
  %v1947 = vmul.f32 %v1942, %v1904
  %v1948 = vmul.f32 %v1943, %v1904
  %v1949 = vmul.f32 %v1944, %v1904
  %1955 = vrot.lane.b32.xlu0 %v1945, 64
  %v1956 = vpop.permute.xlu0 %1955
  %1957 = vrot.lane.b32.xlu0 %v1946, 64
  %v1958 = vpop.permute.xlu0 %1957
  %1959 = vrot.lane.b32.xlu0 %v1947, 64
  %v1960 = vpop.permute.xlu0 %1959
  %1961 = vrot.lane.b32.xlu0 %v1948, 64
  %v1962 = vpop.permute.xlu0 %1961
  %1963 = vrot.lane.b32.xlu0 %v1949, 64
  %v1964 = vpop.permute.xlu0 %1963
  %v1965 = vsel %vm1841, %v1956, %v1958
  %v1966 = vsel %vm1841, %v1958, %v1960
  %v1967 = vsel %vm1841, %v1960, %v1962
  %v1968 = vsel %vm1841, %v1962, %v1964
  %v1974 = vadd.f32 %v1890, %v1956
  %v1975 = vadd.f32 %v1891, %v1965
  %v1976 = vadd.f32 %v1892, %v1966
  %v1977 = vadd.f32 %v1893, %v1967
  %v1978 = vadd.f32 %v1894, %v1968
  %v1979 = vadd.f32 %v1895, %v1965
  %v1980 = vadd.f32 %v1896, %v1966
  %v1981 = vadd.f32 %v1897, %v1967
  %v1982 = vadd.f32 %v1898, %v1968
  %s1983 = scalar_lea.vmem %s2, 208
  %v1984 = vld [vmem:[%s1983] sm:$0xff]
  %1986 = vset.pattern.permute.xlu0 0
  %1987 = vperm.xlu0 %1986, %v1984
  %v1988 = vpop.permute.xlu0 %1987
  %v1990 = vmul.f32 %v72, %v1988
  %v1991 = vmul.f32 %v73, %v1988
  %v1992 = vmul.f32 %v74, %v1988
  %v1993 = vmul.f32 %v75, %v1988
  %v1994 = vmul.f32 %v76, %v1988
  %2000 = vrot.lane.b32.xlu0 %v1990, 64
  %v2001 = vpop.permute.xlu0 %2000
  %2002 = vrot.lane.b32.xlu0 %v1991, 64
  %v2003 = vpop.permute.xlu0 %2002
  %2004 = vrot.lane.b32.xlu0 %v1992, 64
  %v2005 = vpop.permute.xlu0 %2004
  %2006 = vrot.lane.b32.xlu0 %v1993, 64
  %v2007 = vpop.permute.xlu0 %2006
  %2008 = vrot.lane.b32.xlu0 %v1994, 64
  %v2009 = vpop.permute.xlu0 %2008
  %v2010 = vsel %vm1841, %v2001, %v2003
  %v2011 = vsel %vm1841, %v2003, %v2005
  %v2012 = vsel %vm1841, %v2005, %v2007
  %v2013 = vsel %vm1841, %v2007, %v2009
  %v2019 = vadd.f32 %v1935, %v2010
  %v2020 = vadd.f32 %v1936, %v2011
  %v2021 = vadd.f32 %v1937, %v2012
  %v2022 = vadd.f32 %v1938, %v2013
  %v2023 = vadd.f32 %v1939, %v2009
  %v2024 = vld [vmem:[%s71 + $0x10] sm:$0xff]
  %v2025 = vld [vmem:[%s71 + $0x18] sm:$0xff]
  %v2026 = vld [vmem:[%s71 + $0x20] sm:$0xff]
  %v2027 = vld [vmem:[%s71 + $0x28] sm:$0xff]
  %v2028 = vld [vmem:[%s71 + $0x30] sm:$0xff]
  %v2029 = vmul.f32 %v2024, %v1988
  %v2030 = vmul.f32 %v2025, %v1988
  %v2031 = vmul.f32 %v2026, %v1988
  %v2032 = vmul.f32 %v2027, %v1988
  %v2033 = vmul.f32 %v2028, %v1988
  %2039 = vrot.lane.b32.xlu0 %v2029, 64
  %v2040 = vpop.permute.xlu0 %2039
  %2041 = vrot.lane.b32.xlu0 %v2030, 64
  %v2042 = vpop.permute.xlu0 %2041
  %2043 = vrot.lane.b32.xlu0 %v2031, 64
  %v2044 = vpop.permute.xlu0 %2043
  %2045 = vrot.lane.b32.xlu0 %v2032, 64
  %v2046 = vpop.permute.xlu0 %2045
  %2047 = vrot.lane.b32.xlu0 %v2033, 64
  %v2048 = vpop.permute.xlu0 %2047
  %v2049 = vsel %vm1841, %v2040, %v2042
  %v2050 = vsel %vm1841, %v2042, %v2044
  %v2051 = vsel %vm1841, %v2044, %v2046
  %v2052 = vsel %vm1841, %v2046, %v2048
  %v2058 = vadd.f32 %v1974, %v2040
  %v2059 = vadd.f32 %v1975, %v2049
  %v2060 = vadd.f32 %v1976, %v2050
  %v2061 = vadd.f32 %v1977, %v2051
  %v2062 = vadd.f32 %v1978, %v2052
  %v2063 = vadd.f32 %v1979, %v2049
  %v2064 = vadd.f32 %v1980, %v2050
  %v2065 = vadd.f32 %v1981, %v2051
  %v2066 = vadd.f32 %v1982, %v2052
  %s2067 = scalar_lea.vmem %s2, 216
  %v2068 = vld [vmem:[%s2067] sm:$0xff]
  %2070 = vset.pattern.permute.xlu0 0
  %2071 = vperm.xlu0 %2070, %v2068
  %v2072 = vpop.permute.xlu0 %2071
  %v2074 = vmul.f32 %v98, %v2072
  %v2075 = vmul.f32 %v99, %v2072
  %v2076 = vmul.f32 %v100, %v2072
  %v2077 = vmul.f32 %v101, %v2072
  %v2078 = vmul.f32 %v102, %v2072
  %2084 = vrot.lane.b32.xlu0 %v2074, 64
  %v2085 = vpop.permute.xlu0 %2084
  %2086 = vrot.lane.b32.xlu0 %v2075, 64
  %v2087 = vpop.permute.xlu0 %2086
  %2088 = vrot.lane.b32.xlu0 %v2076, 64
  %v2089 = vpop.permute.xlu0 %2088
  %2090 = vrot.lane.b32.xlu0 %v2077, 64
  %v2091 = vpop.permute.xlu0 %2090
  %2092 = vrot.lane.b32.xlu0 %v2078, 64
  %v2093 = vpop.permute.xlu0 %2092
  %v2094 = vsel %vm1841, %v2085, %v2087
  %v2095 = vsel %vm1841, %v2087, %v2089
  %v2096 = vsel %vm1841, %v2089, %v2091
  %v2097 = vsel %vm1841, %v2091, %v2093
  %v2103 = vadd.f32 %v2019, %v2094
  %v2104 = vadd.f32 %v2020, %v2095
  %v2105 = vadd.f32 %v2021, %v2096
  %v2106 = vadd.f32 %v2022, %v2097
  %v2107 = vadd.f32 %v2023, %v2093
  %v2108 = vld [vmem:[%s97 + $0x10] sm:$0xff]
  %v2109 = vld [vmem:[%s97 + $0x18] sm:$0xff]
  %v2110 = vld [vmem:[%s97 + $0x20] sm:$0xff]
  %v2111 = vld [vmem:[%s97 + $0x28] sm:$0xff]
  %v2112 = vld [vmem:[%s97 + $0x30] sm:$0xff]
  %v2113 = vmul.f32 %v2108, %v2072
  %v2114 = vmul.f32 %v2109, %v2072
  %v2115 = vmul.f32 %v2110, %v2072
  %v2116 = vmul.f32 %v2111, %v2072
  %v2117 = vmul.f32 %v2112, %v2072
  %2123 = vrot.lane.b32.xlu0 %v2113, 64
  %v2124 = vpop.permute.xlu0 %2123
  %2125 = vrot.lane.b32.xlu0 %v2114, 64
  %v2126 = vpop.permute.xlu0 %2125
  %2127 = vrot.lane.b32.xlu0 %v2115, 64
  %v2128 = vpop.permute.xlu0 %2127
  %2129 = vrot.lane.b32.xlu0 %v2116, 64
  %v2130 = vpop.permute.xlu0 %2129
  %2131 = vrot.lane.b32.xlu0 %v2117, 64
  %v2132 = vpop.permute.xlu0 %2131
  %v2133 = vsel %vm1841, %v2124, %v2126
  %v2134 = vsel %vm1841, %v2126, %v2128
  %v2135 = vsel %vm1841, %v2128, %v2130
  %v2136 = vsel %vm1841, %v2130, %v2132
  %v2142 = vadd.f32 %v2058, %v2124
  %v2143 = vadd.f32 %v2059, %v2133
  %v2144 = vadd.f32 %v2060, %v2134
  %v2145 = vadd.f32 %v2061, %v2135
  %v2146 = vadd.f32 %v2062, %v2136
  %v2147 = vadd.f32 %v2063, %v2133
  %v2148 = vadd.f32 %v2064, %v2134
  %v2149 = vadd.f32 %v2065, %v2135
  %v2150 = vadd.f32 %v2066, %v2136
  %s2151 = scalar_lea.vmem %s2, 224
  %v2152 = vld [vmem:[%s2151] sm:$0xff]
  %2154 = vset.pattern.permute.xlu0 0
  %2155 = vperm.xlu0 %2154, %v2152
  %v2156 = vpop.permute.xlu0 %2155
  %v2158 = vmul.f32 %v26, %v2156
  %v2159 = vmul.f32 %v27, %v2156
  %v2160 = vmul.f32 %v28, %v2156
  %v2161 = vmul.f32 %v29, %v2156
  %v2162 = vmul.f32 %v30, %v2156
  %2168 = vrot.lane.b32.xlu0 %v2158, 63
  %v2169 = vpop.permute.xlu0 %2168
  %2170 = vrot.lane.b32.xlu0 %v2159, 63
  %v2171 = vpop.permute.xlu0 %2170
  %2172 = vrot.lane.b32.xlu0 %v2160, 63
  %v2173 = vpop.permute.xlu0 %2172
  %2174 = vrot.lane.b32.xlu0 %v2161, 63
  %v2175 = vpop.permute.xlu0 %2174
  %2176 = vrot.lane.b32.xlu0 %v2162, 63
  %v2177 = vpop.permute.xlu0 %2176
  %vm2178 = vcmask 515072
  %v2179 = vsel %vm2178, %v2169, %v2171
  %v2180 = vsel %vm2178, %v2171, %v2173
  %v2181 = vsel %vm2178, %v2173, %v2175
  %v2182 = vsel %vm2178, %v2175, %v2177
  %v2188 = vadd.f32 %v2103, %v2179
  %v2189 = vadd.f32 %v2104, %v2180
  %v2190 = vadd.f32 %v2105, %v2181
  %v2191 = vadd.f32 %v2106, %v2182
  %v2192 = vadd.f32 %v2107, %v2177
  %v2193 = vmul.f32 %v1856, %v2156
  %v2194 = vmul.f32 %v1857, %v2156
  %v2195 = vmul.f32 %v1858, %v2156
  %v2196 = vmul.f32 %v1859, %v2156
  %v2197 = vmul.f32 %v1860, %v2156
  %2203 = vrot.lane.b32.xlu0 %v2193, 61
  %v2204 = vpop.permute.xlu0 %2203
  %2205 = vrot.lane.b32.xlu0 %v2194, 61
  %v2206 = vpop.permute.xlu0 %2205
  %2207 = vrot.lane.b32.xlu0 %v2195, 61
  %v2208 = vpop.permute.xlu0 %2207
  %2209 = vrot.lane.b32.xlu0 %v2196, 61
  %v2210 = vpop.permute.xlu0 %2209
  %2211 = vrot.lane.b32.xlu0 %v2197, 61
  %v2212 = vpop.permute.xlu0 %2211
  %vm2213 = vcmask 498688
  %v2214 = vsel %vm2213, %v2204, %v2206
  %v2215 = vsel %vm2213, %v2206, %v2208
  %v2216 = vsel %vm2213, %v2208, %v2210
  %v2217 = vsel %vm2213, %v2210, %v2212
  %v2223 = vadd.f32 %v2142, %v2204
  %v2224 = vadd.f32 %v2143, %v2214
  %v2225 = vadd.f32 %v2144, %v2215
  %v2226 = vadd.f32 %v2145, %v2216
  %v2227 = vadd.f32 %v2146, %v2217
  %2228 = vrot.lane.b32.xlu0 %v2193, 59
  %v2229 = vpop.permute.xlu0 %2228
  %2230 = vrot.lane.b32.xlu0 %v2194, 59
  %v2231 = vpop.permute.xlu0 %2230
  %2232 = vrot.lane.b32.xlu0 %v2195, 59
  %v2233 = vpop.permute.xlu0 %2232
  %2234 = vrot.lane.b32.xlu0 %v2196, 59
  %v2235 = vpop.permute.xlu0 %2234
  %2236 = vrot.lane.b32.xlu0 %v2197, 59
  %v2237 = vpop.permute.xlu0 %2236
  %vm2238 = vcmask 482304
  %v2239 = vsel %vm2238, %v2229, %v2231
  %v2240 = vsel %vm2238, %v2231, %v2233
  %v2241 = vsel %vm2238, %v2233, %v2235
  %v2242 = vsel %vm2238, %v2235, %v2237
  %v2247 = vadd.f32 %v2147, %v2239
  %v2248 = vadd.f32 %v2148, %v2240
  %v2249 = vadd.f32 %v2149, %v2241
  %v2250 = vadd.f32 %v2150, %v2242
  %s2251 = scalar_lea.vmem %s2, 232
  %v2252 = vld [vmem:[%s2251] sm:$0xff]
  %2254 = vset.pattern.permute.xlu0 0
  %2255 = vperm.xlu0 %2254, %v2252
  %v2256 = vpop.permute.xlu0 %2255
  %v2258 = vmul.f32 %v46, %v2256
  %v2259 = vmul.f32 %v47, %v2256
  %v2260 = vmul.f32 %v48, %v2256
  %v2261 = vmul.f32 %v49, %v2256
  %v2262 = vmul.f32 %v50, %v2256
  %2268 = vrot.lane.b32.xlu0 %v2258, 63
  %v2269 = vpop.permute.xlu0 %2268
  %2270 = vrot.lane.b32.xlu0 %v2259, 63
  %v2271 = vpop.permute.xlu0 %2270
  %2272 = vrot.lane.b32.xlu0 %v2260, 63
  %v2273 = vpop.permute.xlu0 %2272
  %2274 = vrot.lane.b32.xlu0 %v2261, 63
  %v2275 = vpop.permute.xlu0 %2274
  %2276 = vrot.lane.b32.xlu0 %v2262, 63
  %v2277 = vpop.permute.xlu0 %2276
  %v2278 = vsel %vm2178, %v2269, %v2271
  %v2279 = vsel %vm2178, %v2271, %v2273
  %v2280 = vsel %vm2178, %v2273, %v2275
  %v2281 = vsel %vm2178, %v2275, %v2277
  %v2287 = vadd.f32 %v2188, %v2278
  %v2288 = vadd.f32 %v2189, %v2279
  %v2289 = vadd.f32 %v2190, %v2280
  %v2290 = vadd.f32 %v2191, %v2281
  %v2291 = vadd.f32 %v2192, %v2277
  %v2292 = vmul.f32 %v1940, %v2256
  %v2293 = vmul.f32 %v1941, %v2256
  %v2294 = vmul.f32 %v1942, %v2256
  %v2295 = vmul.f32 %v1943, %v2256
  %v2296 = vmul.f32 %v1944, %v2256
  %2302 = vrot.lane.b32.xlu0 %v2292, 61
  %v2303 = vpop.permute.xlu0 %2302
  %2304 = vrot.lane.b32.xlu0 %v2293, 61
  %v2305 = vpop.permute.xlu0 %2304
  %2306 = vrot.lane.b32.xlu0 %v2294, 61
  %v2307 = vpop.permute.xlu0 %2306
  %2308 = vrot.lane.b32.xlu0 %v2295, 61
  %v2309 = vpop.permute.xlu0 %2308
  %2310 = vrot.lane.b32.xlu0 %v2296, 61
  %v2311 = vpop.permute.xlu0 %2310
  %v2312 = vsel %vm2213, %v2303, %v2305
  %v2313 = vsel %vm2213, %v2305, %v2307
  %v2314 = vsel %vm2213, %v2307, %v2309
  %v2315 = vsel %vm2213, %v2309, %v2311
  %v2321 = vadd.f32 %v2223, %v2303
  %v2322 = vadd.f32 %v2224, %v2312
  %v2323 = vadd.f32 %v2225, %v2313
  %v2324 = vadd.f32 %v2226, %v2314
  %v2325 = vadd.f32 %v2227, %v2315
  %2326 = vrot.lane.b32.xlu0 %v2292, 59
  %v2327 = vpop.permute.xlu0 %2326
  %2328 = vrot.lane.b32.xlu0 %v2293, 59
  %v2329 = vpop.permute.xlu0 %2328
  %2330 = vrot.lane.b32.xlu0 %v2294, 59
  %v2331 = vpop.permute.xlu0 %2330
  %2332 = vrot.lane.b32.xlu0 %v2295, 59
  %v2333 = vpop.permute.xlu0 %2332
  %2334 = vrot.lane.b32.xlu0 %v2296, 59
  %v2335 = vpop.permute.xlu0 %2334
  %v2336 = vsel %vm2238, %v2327, %v2329
  %v2337 = vsel %vm2238, %v2329, %v2331
  %v2338 = vsel %vm2238, %v2331, %v2333
  %v2339 = vsel %vm2238, %v2333, %v2335
  %v2344 = vadd.f32 %v2247, %v2336
  %v2345 = vadd.f32 %v2248, %v2337
  %v2346 = vadd.f32 %v2249, %v2338
  %v2347 = vadd.f32 %v2250, %v2339
  %s2348 = scalar_lea.vmem %s2, 240
  %v2349 = vld [vmem:[%s2348] sm:$0xff]
  %2351 = vset.pattern.permute.xlu0 0
  %2352 = vperm.xlu0 %2351, %v2349
  %v2353 = vpop.permute.xlu0 %2352
  %v2355 = vmul.f32 %v72, %v2353
  %v2356 = vmul.f32 %v73, %v2353
  %v2357 = vmul.f32 %v74, %v2353
  %v2358 = vmul.f32 %v75, %v2353
  %v2359 = vmul.f32 %v76, %v2353
  %2365 = vrot.lane.b32.xlu0 %v2355, 63
  %v2366 = vpop.permute.xlu0 %2365
  %2367 = vrot.lane.b32.xlu0 %v2356, 63
  %v2368 = vpop.permute.xlu0 %2367
  %2369 = vrot.lane.b32.xlu0 %v2357, 63
  %v2370 = vpop.permute.xlu0 %2369
  %2371 = vrot.lane.b32.xlu0 %v2358, 63
  %v2372 = vpop.permute.xlu0 %2371
  %2373 = vrot.lane.b32.xlu0 %v2359, 63
  %v2374 = vpop.permute.xlu0 %2373
  %v2375 = vsel %vm2178, %v2366, %v2368
  %v2376 = vsel %vm2178, %v2368, %v2370
  %v2377 = vsel %vm2178, %v2370, %v2372
  %v2378 = vsel %vm2178, %v2372, %v2374
  %v2384 = vadd.f32 %v2287, %v2375
  %v2385 = vadd.f32 %v2288, %v2376
  %v2386 = vadd.f32 %v2289, %v2377
  %v2387 = vadd.f32 %v2290, %v2378
  %v2388 = vadd.f32 %v2291, %v2374
  %v2389 = vmul.f32 %v2024, %v2353
  %v2390 = vmul.f32 %v2025, %v2353
  %v2391 = vmul.f32 %v2026, %v2353
  %v2392 = vmul.f32 %v2027, %v2353
  %v2393 = vmul.f32 %v2028, %v2353
  %2399 = vrot.lane.b32.xlu0 %v2389, 61
  %v2400 = vpop.permute.xlu0 %2399
  %2401 = vrot.lane.b32.xlu0 %v2390, 61
  %v2402 = vpop.permute.xlu0 %2401
  %2403 = vrot.lane.b32.xlu0 %v2391, 61
  %v2404 = vpop.permute.xlu0 %2403
  %2405 = vrot.lane.b32.xlu0 %v2392, 61
  %v2406 = vpop.permute.xlu0 %2405
  %2407 = vrot.lane.b32.xlu0 %v2393, 61
  %v2408 = vpop.permute.xlu0 %2407
  %v2409 = vsel %vm2213, %v2400, %v2402
  %v2410 = vsel %vm2213, %v2402, %v2404
  %v2411 = vsel %vm2213, %v2404, %v2406
  %v2412 = vsel %vm2213, %v2406, %v2408
  %v2418 = vadd.f32 %v2321, %v2400
  %v2419 = vadd.f32 %v2322, %v2409
  %v2420 = vadd.f32 %v2323, %v2410
  %v2421 = vadd.f32 %v2324, %v2411
  %v2422 = vadd.f32 %v2325, %v2412
  %2423 = vrot.lane.b32.xlu0 %v2389, 59
  %v2424 = vpop.permute.xlu0 %2423
  %2425 = vrot.lane.b32.xlu0 %v2390, 59
  %v2426 = vpop.permute.xlu0 %2425
  %2427 = vrot.lane.b32.xlu0 %v2391, 59
  %v2428 = vpop.permute.xlu0 %2427
  %2429 = vrot.lane.b32.xlu0 %v2392, 59
  %v2430 = vpop.permute.xlu0 %2429
  %2431 = vrot.lane.b32.xlu0 %v2393, 59
  %v2432 = vpop.permute.xlu0 %2431
  %v2433 = vsel %vm2238, %v2424, %v2426
  %v2434 = vsel %vm2238, %v2426, %v2428
  %v2435 = vsel %vm2238, %v2428, %v2430
  %v2436 = vsel %vm2238, %v2430, %v2432
  %v2441 = vadd.f32 %v2344, %v2433
  %v2442 = vadd.f32 %v2345, %v2434
  %v2443 = vadd.f32 %v2346, %v2435
  %v2444 = vadd.f32 %v2347, %v2436
  %s2445 = scalar_lea.vmem %s2, 248
  %v2446 = vld [vmem:[%s2445] sm:$0xff]
  %2448 = vset.pattern.permute.xlu0 0
  %2449 = vperm.xlu0 %2448, %v2446
  %v2450 = vpop.permute.xlu0 %2449
  %v2452 = vmul.f32 %v98, %v2450
  %v2453 = vmul.f32 %v99, %v2450
  %v2454 = vmul.f32 %v100, %v2450
  %v2455 = vmul.f32 %v101, %v2450
  %v2456 = vmul.f32 %v102, %v2450
  %2462 = vrot.lane.b32.xlu0 %v2452, 63
  %v2463 = vpop.permute.xlu0 %2462
  %2464 = vrot.lane.b32.xlu0 %v2453, 63
  %v2465 = vpop.permute.xlu0 %2464
  %2466 = vrot.lane.b32.xlu0 %v2454, 63
  %v2467 = vpop.permute.xlu0 %2466
  %2468 = vrot.lane.b32.xlu0 %v2455, 63
  %v2469 = vpop.permute.xlu0 %2468
  %2470 = vrot.lane.b32.xlu0 %v2456, 63
  %v2471 = vpop.permute.xlu0 %2470
  %v2472 = vsel %vm2178, %v2463, %v2465
  %v2473 = vsel %vm2178, %v2465, %v2467
  %v2474 = vsel %vm2178, %v2467, %v2469
  %v2475 = vsel %vm2178, %v2469, %v2471
  %v2481 = vadd.f32 %v2384, %v2472
  %v2482 = vadd.f32 %v2385, %v2473
  %v2483 = vadd.f32 %v2386, %v2474
  %v2484 = vadd.f32 %v2387, %v2475
  %v2485 = vadd.f32 %v2388, %v2471
  %v2486 = vmul.f32 %v2108, %v2450
  %v2487 = vmul.f32 %v2109, %v2450
  %v2488 = vmul.f32 %v2110, %v2450
  %v2489 = vmul.f32 %v2111, %v2450
  %v2490 = vmul.f32 %v2112, %v2450
  %2496 = vrot.lane.b32.xlu0 %v2486, 61
  %v2497 = vpop.permute.xlu0 %2496
  %2498 = vrot.lane.b32.xlu0 %v2487, 61
  %v2499 = vpop.permute.xlu0 %2498
  %2500 = vrot.lane.b32.xlu0 %v2488, 61
  %v2501 = vpop.permute.xlu0 %2500
  %2502 = vrot.lane.b32.xlu0 %v2489, 61
  %v2503 = vpop.permute.xlu0 %2502
  %2504 = vrot.lane.b32.xlu0 %v2490, 61
  %v2505 = vpop.permute.xlu0 %2504
  %v2506 = vsel %vm2213, %v2497, %v2499
  %v2507 = vsel %vm2213, %v2499, %v2501
  %v2508 = vsel %vm2213, %v2501, %v2503
  %v2509 = vsel %vm2213, %v2503, %v2505
  %v2515 = vadd.f32 %v2418, %v2497
  %v2516 = vadd.f32 %v2419, %v2506
  %v2517 = vadd.f32 %v2420, %v2507
  %v2518 = vadd.f32 %v2421, %v2508
  %v2519 = vadd.f32 %v2422, %v2509
  %2520 = vrot.lane.b32.xlu0 %v2486, 59
  %v2521 = vpop.permute.xlu0 %2520
  %2522 = vrot.lane.b32.xlu0 %v2487, 59
  %v2523 = vpop.permute.xlu0 %2522
  %2524 = vrot.lane.b32.xlu0 %v2488, 59
  %v2525 = vpop.permute.xlu0 %2524
  %2526 = vrot.lane.b32.xlu0 %v2489, 59
  %v2527 = vpop.permute.xlu0 %2526
  %2528 = vrot.lane.b32.xlu0 %v2490, 59
  %v2529 = vpop.permute.xlu0 %2528
  %v2530 = vsel %vm2238, %v2521, %v2523
  %v2531 = vsel %vm2238, %v2523, %v2525
  %v2532 = vsel %vm2238, %v2525, %v2527
  %v2533 = vsel %vm2238, %v2527, %v2529
  %v2538 = vadd.f32 %v2441, %v2530
  %v2539 = vadd.f32 %v2442, %v2531
  %v2540 = vadd.f32 %v2443, %v2532
  %v2541 = vadd.f32 %v2444, %v2533
  %s2542 = scalar_lea.vmem %s2, 256
  %v2543 = vld [vmem:[%s2542] sm:$0xff]
  %2545 = vset.pattern.permute.xlu0 0
  %2546 = vperm.xlu0 %2545, %v2543
  %v2547 = vpop.permute.xlu0 %2546
  %v2549 = vmul.f32 %v26, %v2547
  %v2550 = vmul.f32 %v27, %v2547
  %v2551 = vmul.f32 %v28, %v2547
  %v2552 = vmul.f32 %v29, %v2547
  %v2553 = vmul.f32 %v30, %v2547
  %2559 = vrot.lane.b32.xlu0 %v2549, 62
  %v2560 = vpop.permute.xlu0 %2559
  %2561 = vrot.lane.b32.xlu0 %v2550, 62
  %v2562 = vpop.permute.xlu0 %2561
  %2563 = vrot.lane.b32.xlu0 %v2551, 62
  %v2564 = vpop.permute.xlu0 %2563
  %2565 = vrot.lane.b32.xlu0 %v2552, 62
  %v2566 = vpop.permute.xlu0 %2565
  %2567 = vrot.lane.b32.xlu0 %v2553, 62
  %v2568 = vpop.permute.xlu0 %2567
  %vm2569 = vcmask 506880
  %v2570 = vsel %vm2569, %v2560, %v2562
  %v2571 = vsel %vm2569, %v2562, %v2564
  %v2572 = vsel %vm2569, %v2564, %v2566
  %v2573 = vsel %vm2569, %v2566, %v2568
  %v2579 = vadd.f32 %v2481, %v2570
  %v2580 = vadd.f32 %v2482, %v2571
  %v2581 = vadd.f32 %v2483, %v2572
  %v2582 = vadd.f32 %v2484, %v2573
  %v2583 = vadd.f32 %v2485, %v2568
  %v2584 = vmul.f32 %v1856, %v2547
  %v2585 = vmul.f32 %v1857, %v2547
  %v2586 = vmul.f32 %v1858, %v2547
  %v2587 = vmul.f32 %v1859, %v2547
  %v2588 = vmul.f32 %v1860, %v2547
  %2594 = vrot.lane.b32.xlu0 %v2584, 58
  %v2595 = vpop.permute.xlu0 %2594
  %2596 = vrot.lane.b32.xlu0 %v2585, 58
  %v2597 = vpop.permute.xlu0 %2596
  %2598 = vrot.lane.b32.xlu0 %v2586, 58
  %v2599 = vpop.permute.xlu0 %2598
  %2600 = vrot.lane.b32.xlu0 %v2587, 58
  %v2601 = vpop.permute.xlu0 %2600
  %2602 = vrot.lane.b32.xlu0 %v2588, 58
  %v2603 = vpop.permute.xlu0 %2602
  %vm2604 = vcmask 474112
  %v2605 = vsel %vm2604, %v2595, %v2597
  %v2606 = vsel %vm2604, %v2597, %v2599
  %v2607 = vsel %vm2604, %v2599, %v2601
  %v2608 = vsel %vm2604, %v2601, %v2603
  %v2614 = vadd.f32 %v2515, %v2595
  %v2615 = vadd.f32 %v2516, %v2605
  %v2616 = vadd.f32 %v2517, %v2606
  %v2617 = vadd.f32 %v2518, %v2607
  %v2618 = vadd.f32 %v2519, %v2608
  %2619 = vrot.lane.b32.xlu0 %v2584, 54
  %v2620 = vpop.permute.xlu0 %2619
  %2621 = vrot.lane.b32.xlu0 %v2585, 54
  %v2622 = vpop.permute.xlu0 %2621
  %2623 = vrot.lane.b32.xlu0 %v2586, 54
  %v2624 = vpop.permute.xlu0 %2623
  %2625 = vrot.lane.b32.xlu0 %v2587, 54
  %v2626 = vpop.permute.xlu0 %2625
  %2627 = vrot.lane.b32.xlu0 %v2588, 54
  %v2628 = vpop.permute.xlu0 %2627
  %vm2629 = vcmask 441344
  %v2630 = vsel %vm2629, %v2620, %v2622
  %v2631 = vsel %vm2629, %v2622, %v2624
  %v2632 = vsel %vm2629, %v2624, %v2626
  %v2633 = vsel %vm2629, %v2626, %v2628
  %v2638 = vadd.f32 %v2538, %v2630
  %v2639 = vadd.f32 %v2539, %v2631
  %v2640 = vadd.f32 %v2540, %v2632
  %v2641 = vadd.f32 %v2541, %v2633
  %s2642 = scalar_lea.vmem %s2, 264
  %v2643 = vld [vmem:[%s2642] sm:$0xff]
  %2645 = vset.pattern.permute.xlu0 0
  %2646 = vperm.xlu0 %2645, %v2643
  %v2647 = vpop.permute.xlu0 %2646
  %v2649 = vmul.f32 %v46, %v2647
  %v2650 = vmul.f32 %v47, %v2647
  %v2651 = vmul.f32 %v48, %v2647
  %v2652 = vmul.f32 %v49, %v2647
  %v2653 = vmul.f32 %v50, %v2647
  %2659 = vrot.lane.b32.xlu0 %v2649, 62
  %v2660 = vpop.permute.xlu0 %2659
  %2661 = vrot.lane.b32.xlu0 %v2650, 62
  %v2662 = vpop.permute.xlu0 %2661
  %2663 = vrot.lane.b32.xlu0 %v2651, 62
  %v2664 = vpop.permute.xlu0 %2663
  %2665 = vrot.lane.b32.xlu0 %v2652, 62
  %v2666 = vpop.permute.xlu0 %2665
  %2667 = vrot.lane.b32.xlu0 %v2653, 62
  %v2668 = vpop.permute.xlu0 %2667
  %v2669 = vsel %vm2569, %v2660, %v2662
  %v2670 = vsel %vm2569, %v2662, %v2664
  %v2671 = vsel %vm2569, %v2664, %v2666
  %v2672 = vsel %vm2569, %v2666, %v2668
  %v2678 = vadd.f32 %v2579, %v2669
  %v2679 = vadd.f32 %v2580, %v2670
  %v2680 = vadd.f32 %v2581, %v2671
  %v2681 = vadd.f32 %v2582, %v2672
  %v2682 = vadd.f32 %v2583, %v2668
  %v2683 = vmul.f32 %v1940, %v2647
  %v2684 = vmul.f32 %v1941, %v2647
  %v2685 = vmul.f32 %v1942, %v2647
  %v2686 = vmul.f32 %v1943, %v2647
  %v2687 = vmul.f32 %v1944, %v2647
  %2693 = vrot.lane.b32.xlu0 %v2683, 58
  %v2694 = vpop.permute.xlu0 %2693
  %2695 = vrot.lane.b32.xlu0 %v2684, 58
  %v2696 = vpop.permute.xlu0 %2695
  %2697 = vrot.lane.b32.xlu0 %v2685, 58
  %v2698 = vpop.permute.xlu0 %2697
  %2699 = vrot.lane.b32.xlu0 %v2686, 58
  %v2700 = vpop.permute.xlu0 %2699
  %2701 = vrot.lane.b32.xlu0 %v2687, 58
  %v2702 = vpop.permute.xlu0 %2701
  %v2703 = vsel %vm2604, %v2694, %v2696
  %v2704 = vsel %vm2604, %v2696, %v2698
  %v2705 = vsel %vm2604, %v2698, %v2700
  %v2706 = vsel %vm2604, %v2700, %v2702
  %v2712 = vadd.f32 %v2614, %v2694
  %v2713 = vadd.f32 %v2615, %v2703
  %v2714 = vadd.f32 %v2616, %v2704
  %v2715 = vadd.f32 %v2617, %v2705
  %v2716 = vadd.f32 %v2618, %v2706
  %2717 = vrot.lane.b32.xlu0 %v2683, 54
  %v2718 = vpop.permute.xlu0 %2717
  %2719 = vrot.lane.b32.xlu0 %v2684, 54
  %v2720 = vpop.permute.xlu0 %2719
  %2721 = vrot.lane.b32.xlu0 %v2685, 54
  %v2722 = vpop.permute.xlu0 %2721
  %2723 = vrot.lane.b32.xlu0 %v2686, 54
  %v2724 = vpop.permute.xlu0 %2723
  %2725 = vrot.lane.b32.xlu0 %v2687, 54
  %v2726 = vpop.permute.xlu0 %2725
  %v2727 = vsel %vm2629, %v2718, %v2720
  %v2728 = vsel %vm2629, %v2720, %v2722
  %v2729 = vsel %vm2629, %v2722, %v2724
  %v2730 = vsel %vm2629, %v2724, %v2726
  %v2735 = vadd.f32 %v2638, %v2727
  %v2736 = vadd.f32 %v2639, %v2728
  %v2737 = vadd.f32 %v2640, %v2729
  %v2738 = vadd.f32 %v2641, %v2730
  %s2739 = scalar_lea.vmem %s2, 272
  %v2740 = vld [vmem:[%s2739] sm:$0xff]
  %2742 = vset.pattern.permute.xlu0 0
  %2743 = vperm.xlu0 %2742, %v2740
  %v2744 = vpop.permute.xlu0 %2743
  %v2746 = vmul.f32 %v72, %v2744
  %v2747 = vmul.f32 %v73, %v2744
  %v2748 = vmul.f32 %v74, %v2744
  %v2749 = vmul.f32 %v75, %v2744
  %v2750 = vmul.f32 %v76, %v2744
  %2756 = vrot.lane.b32.xlu0 %v2746, 62
  %v2757 = vpop.permute.xlu0 %2756
  %2758 = vrot.lane.b32.xlu0 %v2747, 62
  %v2759 = vpop.permute.xlu0 %2758
  %2760 = vrot.lane.b32.xlu0 %v2748, 62
  %v2761 = vpop.permute.xlu0 %2760
  %2762 = vrot.lane.b32.xlu0 %v2749, 62
  %v2763 = vpop.permute.xlu0 %2762
  %2764 = vrot.lane.b32.xlu0 %v2750, 62
  %v2765 = vpop.permute.xlu0 %2764
  %v2766 = vsel %vm2569, %v2757, %v2759
  %v2767 = vsel %vm2569, %v2759, %v2761
  %v2768 = vsel %vm2569, %v2761, %v2763
  %v2769 = vsel %vm2569, %v2763, %v2765
  %v2775 = vadd.f32 %v2678, %v2766
  %v2776 = vadd.f32 %v2679, %v2767
  %v2777 = vadd.f32 %v2680, %v2768
  %v2778 = vadd.f32 %v2681, %v2769
  %v2779 = vadd.f32 %v2682, %v2765
  %v2780 = vmul.f32 %v2024, %v2744
  %v2781 = vmul.f32 %v2025, %v2744
  %v2782 = vmul.f32 %v2026, %v2744
  %v2783 = vmul.f32 %v2027, %v2744
  %v2784 = vmul.f32 %v2028, %v2744
  %2790 = vrot.lane.b32.xlu0 %v2780, 58
  %v2791 = vpop.permute.xlu0 %2790
  %2792 = vrot.lane.b32.xlu0 %v2781, 58
  %v2793 = vpop.permute.xlu0 %2792
  %2794 = vrot.lane.b32.xlu0 %v2782, 58
  %v2795 = vpop.permute.xlu0 %2794
  %2796 = vrot.lane.b32.xlu0 %v2783, 58
  %v2797 = vpop.permute.xlu0 %2796
  %2798 = vrot.lane.b32.xlu0 %v2784, 58
  %v2799 = vpop.permute.xlu0 %2798
  %v2800 = vsel %vm2604, %v2791, %v2793
  %v2801 = vsel %vm2604, %v2793, %v2795
  %v2802 = vsel %vm2604, %v2795, %v2797
  %v2803 = vsel %vm2604, %v2797, %v2799
  %v2809 = vadd.f32 %v2712, %v2791
  %v2810 = vadd.f32 %v2713, %v2800
  %v2811 = vadd.f32 %v2714, %v2801
  %v2812 = vadd.f32 %v2715, %v2802
  %v2813 = vadd.f32 %v2716, %v2803
  %2814 = vrot.lane.b32.xlu0 %v2780, 54
  %v2815 = vpop.permute.xlu0 %2814
  %2816 = vrot.lane.b32.xlu0 %v2781, 54
  %v2817 = vpop.permute.xlu0 %2816
  %2818 = vrot.lane.b32.xlu0 %v2782, 54
  %v2819 = vpop.permute.xlu0 %2818
  %2820 = vrot.lane.b32.xlu0 %v2783, 54
  %v2821 = vpop.permute.xlu0 %2820
  %2822 = vrot.lane.b32.xlu0 %v2784, 54
  %v2823 = vpop.permute.xlu0 %2822
  %v2824 = vsel %vm2629, %v2815, %v2817
  %v2825 = vsel %vm2629, %v2817, %v2819
  %v2826 = vsel %vm2629, %v2819, %v2821
  %v2827 = vsel %vm2629, %v2821, %v2823
  %v2832 = vadd.f32 %v2735, %v2824
  %v2833 = vadd.f32 %v2736, %v2825
  %v2834 = vadd.f32 %v2737, %v2826
  %v2835 = vadd.f32 %v2738, %v2827
  %s2836 = scalar_lea.vmem %s2, 280
  %v2837 = vld [vmem:[%s2836] sm:$0xff]
  %2839 = vset.pattern.permute.xlu0 0
  %2840 = vperm.xlu0 %2839, %v2837
  %v2841 = vpop.permute.xlu0 %2840
  %v2843 = vmul.f32 %v98, %v2841
  %v2844 = vmul.f32 %v99, %v2841
  %v2845 = vmul.f32 %v100, %v2841
  %v2846 = vmul.f32 %v101, %v2841
  %v2847 = vmul.f32 %v102, %v2841
  %2853 = vrot.lane.b32.xlu0 %v2843, 62
  %v2854 = vpop.permute.xlu0 %2853
  %2855 = vrot.lane.b32.xlu0 %v2844, 62
  %v2856 = vpop.permute.xlu0 %2855
  %2857 = vrot.lane.b32.xlu0 %v2845, 62
  %v2858 = vpop.permute.xlu0 %2857
  %2859 = vrot.lane.b32.xlu0 %v2846, 62
  %v2860 = vpop.permute.xlu0 %2859
  %2861 = vrot.lane.b32.xlu0 %v2847, 62
  %v2862 = vpop.permute.xlu0 %2861
  %v2863 = vsel %vm2569, %v2854, %v2856
  %v2864 = vsel %vm2569, %v2856, %v2858
  %v2865 = vsel %vm2569, %v2858, %v2860
  %v2866 = vsel %vm2569, %v2860, %v2862
  %v2872 = vadd.f32 %v2775, %v2863
  %v2873 = vadd.f32 %v2776, %v2864
  %v2874 = vadd.f32 %v2777, %v2865
  %v2875 = vadd.f32 %v2778, %v2866
  %v2876 = vadd.f32 %v2779, %v2862
  %v2877 = vmul.f32 %v2108, %v2841
  %v2878 = vmul.f32 %v2109, %v2841
  %v2879 = vmul.f32 %v2110, %v2841
  %v2880 = vmul.f32 %v2111, %v2841
  %v2881 = vmul.f32 %v2112, %v2841
  %2887 = vrot.lane.b32.xlu0 %v2877, 58
  %v2888 = vpop.permute.xlu0 %2887
  %2889 = vrot.lane.b32.xlu0 %v2878, 58
  %v2890 = vpop.permute.xlu0 %2889
  %2891 = vrot.lane.b32.xlu0 %v2879, 58
  %v2892 = vpop.permute.xlu0 %2891
  %2893 = vrot.lane.b32.xlu0 %v2880, 58
  %v2894 = vpop.permute.xlu0 %2893
  %2895 = vrot.lane.b32.xlu0 %v2881, 58
  %v2896 = vpop.permute.xlu0 %2895
  %v2897 = vsel %vm2604, %v2888, %v2890
  %v2898 = vsel %vm2604, %v2890, %v2892
  %v2899 = vsel %vm2604, %v2892, %v2894
  %v2900 = vsel %vm2604, %v2894, %v2896
  %v2906 = vadd.f32 %v2809, %v2888
  %v2907 = vadd.f32 %v2810, %v2897
  %v2908 = vadd.f32 %v2811, %v2898
  %v2909 = vadd.f32 %v2812, %v2899
  %v2910 = vadd.f32 %v2813, %v2900
  %2911 = vrot.lane.b32.xlu0 %v2877, 54
  %v2912 = vpop.permute.xlu0 %2911
  %2913 = vrot.lane.b32.xlu0 %v2878, 54
  %v2914 = vpop.permute.xlu0 %2913
  %2915 = vrot.lane.b32.xlu0 %v2879, 54
  %v2916 = vpop.permute.xlu0 %2915
  %2917 = vrot.lane.b32.xlu0 %v2880, 54
  %v2918 = vpop.permute.xlu0 %2917
  %2919 = vrot.lane.b32.xlu0 %v2881, 54
  %v2920 = vpop.permute.xlu0 %2919
  %v2921 = vsel %vm2629, %v2912, %v2914
  %v2922 = vsel %vm2629, %v2914, %v2916
  %v2923 = vsel %vm2629, %v2916, %v2918
  %v2924 = vsel %vm2629, %v2918, %v2920
  %v2929 = vadd.f32 %v2832, %v2921
  %v2930 = vadd.f32 %v2833, %v2922
  %v2931 = vadd.f32 %v2834, %v2923
  %v2932 = vadd.f32 %v2835, %v2924
  %v2933 = vlaneseq
  %v2934 = vand.u32 %v2933, 127
  %v2935 = vadd.s32 %v2934, 128
  %v2936 = vadd.s32 %v2934, 256
  %v2937 = vadd.s32 %v2934, 384
  %v2938 = vand.u32 %v2934, 31
  %v2939 = vand.u32 %v2935, 31
  %v2940 = vand.u32 %v2936, 31
  %v2941 = vand.u32 %v2937, 31
  %vm2942 = vcmp.lt.s32.totalorder %v2938, 16
  %vm2943 = vcmp.lt.s32.totalorder %v2939, 16
  %vm2944 = vcmp.lt.s32.totalorder %v2940, 16
  %vm2945 = vcmp.lt.s32.totalorder %v2941, 16
  %v2946 = vsel %vm2942, 1, 0
  %v2947 = vsel %vm2943, 1, 0
  %v2948 = vsel %vm2944, 1, 0
  %v2949 = vsel %vm2945, 1, 0
  %v2950 = vcvt.s32.f32 %v2946
  %v2951 = vcvt.s32.f32 %v2947
  %v2952 = vcvt.s32.f32 %v2948
  %v2953 = vcvt.s32.f32 %v2949
  %v2954 = vld [vmem:[%s1] sm:$0xff]
  %v2955 = vld [vmem:[%s1 + $0x8] sm:$0xff]
  %v2956 = vld [vmem:[%s1 + $0x10] sm:$0xff]
  %v2957 = vld [vmem:[%s1 + $0x18] sm:$0xff]
  %2962 = vrot.lane.b32.xlu0 %v2950, 4
  %v2963 = vpop.permute.xlu0 %2962
  %2964 = vrot.lane.b32.xlu0 %v2951, 4
  %v2965 = vpop.permute.xlu0 %2964
  %2966 = vrot.lane.b32.xlu0 %v2952, 4
  %v2967 = vpop.permute.xlu0 %2966
  %2968 = vrot.lane.b32.xlu0 %v2953, 4
  %v2969 = vpop.permute.xlu0 %2968
  %vm2970 = vcmask 31744
  %v2971 = vsel %vm2970, %v2963, %v2965
  %v2972 = vsel %vm2970, %v2965, %v2967
  %v2973 = vsel %vm2970, %v2967, %v2969
  %v2979 = vmul.f32 %v2872, %v2963
  %v2980 = vmul.f32 %v2873, %v2971
  %v2981 = vmul.f32 %v2874, %v2972
  %v2982 = vmul.f32 %v2875, %v2973
  %v2983 = vmul.f32 %v2876, %v2969
  %2989 = vrot.lane.b32.xlu0 %v2979, 124
  %v2990 = vpop.permute.xlu0 %2989
  %2991 = vrot.lane.b32.xlu0 %v2980, 124
  %v2992 = vpop.permute.xlu0 %2991
  %2993 = vrot.lane.b32.xlu0 %v2981, 124
  %v2994 = vpop.permute.xlu0 %2993
  %2995 = vrot.lane.b32.xlu0 %v2982, 124
  %v2996 = vpop.permute.xlu0 %2995
  %2997 = vrot.lane.b32.xlu0 %v2983, 124
  %v2998 = vpop.permute.xlu0 %2997
  %vm2999 = vcmask 1014784
  %v3000 = vsel %vm2999, %v2990, %v2992
  %v3001 = vsel %vm2999, %v2992, %v2994
  %v3002 = vsel %vm2999, %v2994, %v2996
  %v3003 = vsel %vm2999, %v2996, %v2998
  %v3008 = vadd.f32 %v3000, %v3001
  %v3009 = vadd.f32 %v3008, %v3002
  %v3010 = vadd.f32 %v3009, %v3003
  %3011 = vadd.xlane.f32.xlu0 %v3010
  %v3012 = vpop.xlane.xlu0 %3011
  %v3013 = vmul.f32 %v2979, %v2872
  %v3014 = vmul.f32 %v2980, %v2873
  %v3015 = vmul.f32 %v2981, %v2874
  %v3016 = vmul.f32 %v2982, %v2875
  %v3017 = vmul.f32 %v2983, %v2876
  %3023 = vrot.lane.b32.xlu0 %v3013, 124
  %v3024 = vpop.permute.xlu0 %3023
  %3025 = vrot.lane.b32.xlu0 %v3014, 124
  %v3026 = vpop.permute.xlu0 %3025
  %3027 = vrot.lane.b32.xlu0 %v3015, 124
  %v3028 = vpop.permute.xlu0 %3027
  %3029 = vrot.lane.b32.xlu0 %v3016, 124
  %v3030 = vpop.permute.xlu0 %3029
  %3031 = vrot.lane.b32.xlu0 %v3017, 124
  %v3032 = vpop.permute.xlu0 %3031
  %v3033 = vsel %vm2999, %v3024, %v3026
  %v3034 = vsel %vm2999, %v3026, %v3028
  %v3035 = vsel %vm2999, %v3028, %v3030
  %v3036 = vsel %vm2999, %v3030, %v3032
  %v3041 = vadd.f32 %v3033, %v3034
  %v3042 = vadd.f32 %v3041, %v3035
  %v3043 = vadd.f32 %v3042, %v3036
  %3044 = vadd.xlane.f32.xlu0 %v3043
  %v3045 = vpop.xlane.xlu0 %3044
  %v3046 = vrot.slane %v3012, 4
  %v3047 = vadd.f32 %v3012, %v3046
  %v3048 = vrot.slane %v3045, 4
  %v3049 = vadd.f32 %v3045, %v3048
  %v3050 = vmul.f32 %v3047, 0.001953125
  %v3051 = vmul.f32 %v3049, 0.001953125
  %v3052 = vmul.f32 %v3050, %v3050
  %v3053 = vsub.f32 %v3051, %v3052
  %v3054 = vld [vmem:[%s3] sm:$0xff]
  %v3055 = vadd.f32 %v3053, 1e-05
  %v3056 = vrsqrt.pop %v3055
  %v3057 = vmul.f32 %v3056, %v3055
  %v3058 = vmul.f32 %v3057, %v3056
  %v3059 = vmul.f32 0.5, %v3058
  %v3060 = vsub.f32 1.5, %v3059
  %v3061 = vmul.f32 %v3056, %v3060
  %vm3062 = vweird.f32 %v3055
  %vm3063 = vweird.f32 %v3056
  %vm3064 = vmor %vm3062, %vm3063
  %v3065 = vsel %vm3064, %v3056, %v3061
  %v3066 = vmul.f32 %v3054, %v3065
  %v3067 = vld [vmem:[%s4] sm:$0xff]
  %v3068 = vmul.f32 %v3050, %v3066
  %v3069 = vsub.f32 %v3067, %v3068
  %3071 = vset.pattern.permute.xlu0 0
  %3072 = vperm.xlu0 %3071, %v3066
  %v3073 = vpop.permute.xlu0 %3072
  %v3075 = vmul.f32 %v2872, %v3073
  %v3076 = vmul.f32 %v2873, %v3073
  %v3077 = vmul.f32 %v2874, %v3073
  %v3078 = vmul.f32 %v2875, %v3073
  %v3079 = vmul.f32 %v2876, %v3073
  %3085 = vrot.lane.b32.xlu0 %v3075, 124
  %v3086 = vpop.permute.xlu0 %3085
  %3087 = vrot.lane.b32.xlu0 %v3076, 124
  %v3088 = vpop.permute.xlu0 %3087
  %3089 = vrot.lane.b32.xlu0 %v3077, 124
  %v3090 = vpop.permute.xlu0 %3089
  %3091 = vrot.lane.b32.xlu0 %v3078, 124
  %v3092 = vpop.permute.xlu0 %3091
  %3093 = vrot.lane.b32.xlu0 %v3079, 124
  %v3094 = vpop.permute.xlu0 %3093
  %v3095 = vsel %vm2999, %v3086, %v3088
  %v3096 = vsel %vm2999, %v3088, %v3090
  %v3097 = vsel %vm2999, %v3090, %v3092
  %v3098 = vsel %vm2999, %v3092, %v3094
  %v3103 = vadd.f32 %v2954, %v3095
  %v3104 = vadd.f32 %v2955, %v3096
  %v3105 = vadd.f32 %v2956, %v3097
  %v3106 = vadd.f32 %v2957, %v3098
  %3108 = vset.pattern.permute.xlu0 0
  %3109 = vperm.xlu0 %3108, %v3069
  %v3110 = vpop.permute.xlu0 %3109
  %v3112 = vadd.f32 %v3103, %v3110
  %v3113 = vadd.f32 %v3104, %v3110
  %v3114 = vadd.f32 %v3105, %v3110
  %v3115 = vadd.f32 %v3106, %v3110
  %3116 = vrot.lane.b32.xlu0 %v2950, 66
  %v3117 = vpop.permute.xlu0 %3116
  %3118 = vrot.lane.b32.xlu0 %v2951, 66
  %v3119 = vpop.permute.xlu0 %3118
  %3120 = vrot.lane.b32.xlu0 %v2952, 66
  %v3121 = vpop.permute.xlu0 %3120
  %3122 = vrot.lane.b32.xlu0 %v2953, 66
  %v3123 = vpop.permute.xlu0 %3122
  %vm3124 = vcmask 539648
  %v3125 = vsel %vm3124, %v3117, %v3119
  %v3126 = vsel %vm3124, %v3119, %v3121
  %v3127 = vsel %vm3124, %v3121, %v3123
  %v3133 = vmul.f32 %v2906, %v3117
  %v3134 = vmul.f32 %v2907, %v3125
  %v3135 = vmul.f32 %v2908, %v3126
  %v3136 = vmul.f32 %v2909, %v3127
  %v3137 = vmul.f32 %v2910, %v3123
  %3143 = vrot.lane.b32.xlu0 %v3133, 62
  %v3144 = vpop.permute.xlu0 %3143
  %3145 = vrot.lane.b32.xlu0 %v3134, 62
  %v3146 = vpop.permute.xlu0 %3145
  %3147 = vrot.lane.b32.xlu0 %v3135, 62
  %v3148 = vpop.permute.xlu0 %3147
  %3149 = vrot.lane.b32.xlu0 %v3136, 62
  %v3150 = vpop.permute.xlu0 %3149
  %3151 = vrot.lane.b32.xlu0 %v3137, 62
  %v3152 = vpop.permute.xlu0 %3151
  %v3153 = vsel %vm2569, %v3144, %v3146
  %v3154 = vsel %vm2569, %v3146, %v3148
  %v3155 = vsel %vm2569, %v3148, %v3150
  %v3156 = vsel %vm2569, %v3150, %v3152
  %v3161 = vadd.f32 %v3153, %v3154
  %v3162 = vadd.f32 %v3161, %v3155
  %v3163 = vadd.f32 %v3162, %v3156
  %3164 = vadd.xlane.f32.xlu0 %v3163
  %v3165 = vpop.xlane.xlu0 %3164
  %v3166 = vmul.f32 %v3133, %v2906
  %v3167 = vmul.f32 %v3134, %v2907
  %v3168 = vmul.f32 %v3135, %v2908
  %v3169 = vmul.f32 %v3136, %v2909
  %v3170 = vmul.f32 %v3137, %v2910
  %3176 = vrot.lane.b32.xlu0 %v3166, 62
  %v3177 = vpop.permute.xlu0 %3176
  %3178 = vrot.lane.b32.xlu0 %v3167, 62
  %v3179 = vpop.permute.xlu0 %3178
  %3180 = vrot.lane.b32.xlu0 %v3168, 62
  %v3181 = vpop.permute.xlu0 %3180
  %3182 = vrot.lane.b32.xlu0 %v3169, 62
  %v3183 = vpop.permute.xlu0 %3182
  %3184 = vrot.lane.b32.xlu0 %v3170, 62
  %v3185 = vpop.permute.xlu0 %3184
  %v3186 = vsel %vm2569, %v3177, %v3179
  %v3187 = vsel %vm2569, %v3179, %v3181
  %v3188 = vsel %vm2569, %v3181, %v3183
  %v3189 = vsel %vm2569, %v3183, %v3185
  %v3194 = vadd.f32 %v3186, %v3187
  %v3195 = vadd.f32 %v3194, %v3188
  %v3196 = vadd.f32 %v3195, %v3189
  %3197 = vadd.xlane.f32.xlu0 %v3196
  %v3198 = vpop.xlane.xlu0 %3197
  %v3199 = vrot.slane %v3165, 4
  %v3200 = vadd.f32 %v3165, %v3199
  %v3201 = vrot.slane %v3198, 4
  %v3202 = vadd.f32 %v3198, %v3201
  %v3203 = vmul.f32 %v3200, 0.001953125
  %v3204 = vmul.f32 %v3202, 0.001953125
  %v3205 = vmul.f32 %v3203, %v3203
  %v3206 = vsub.f32 %v3204, %v3205
  %v3207 = vadd.f32 %v3206, 1e-05
  %v3208 = vrsqrt.pop %v3207
  %v3209 = vmul.f32 %v3208, %v3207
  %v3210 = vmul.f32 %v3209, %v3208
  %v3211 = vmul.f32 0.5, %v3210
  %v3212 = vsub.f32 1.5, %v3211
  %v3213 = vmul.f32 %v3208, %v3212
  %vm3214 = vweird.f32 %v3207
  %vm3215 = vweird.f32 %v3208
  %vm3216 = vmor %vm3214, %vm3215
  %v3217 = vsel %vm3216, %v3208, %v3213
  %v3218 = vmul.f32 %v3054, %v3217
  %v3219 = vmul.f32 %v3203, %v3218
  %v3220 = vsub.f32 %v3067, %v3219
  %3222 = vset.pattern.permute.xlu0 0
  %3223 = vperm.xlu0 %3222, %v3218
  %v3224 = vpop.permute.xlu0 %3223
  %v3226 = vmul.f32 %v2906, %v3224
  %v3227 = vmul.f32 %v2907, %v3224
  %v3228 = vmul.f32 %v2908, %v3224
  %v3229 = vmul.f32 %v2909, %v3224
  %v3230 = vmul.f32 %v2910, %v3224
  %3236 = vrot.lane.b32.xlu0 %v3226, 62
  %v3237 = vpop.permute.xlu0 %3236
  %3238 = vrot.lane.b32.xlu0 %v3227, 62
  %v3239 = vpop.permute.xlu0 %3238
  %3240 = vrot.lane.b32.xlu0 %v3228, 62
  %v3241 = vpop.permute.xlu0 %3240
  %3242 = vrot.lane.b32.xlu0 %v3229, 62
  %v3243 = vpop.permute.xlu0 %3242
  %3244 = vrot.lane.b32.xlu0 %v3230, 62
  %v3245 = vpop.permute.xlu0 %3244
  %v3246 = vsel %vm2569, %v3237, %v3239
  %v3247 = vsel %vm2569, %v3239, %v3241
  %v3248 = vsel %vm2569, %v3241, %v3243
  %v3249 = vsel %vm2569, %v3243, %v3245
  %v3254 = vadd.f32 %v3112, %v3246
  %v3255 = vadd.f32 %v3113, %v3247
  %v3256 = vadd.f32 %v3114, %v3248
  %v3257 = vadd.f32 %v3115, %v3249
  %3259 = vset.pattern.permute.xlu0 0
  %3260 = vperm.xlu0 %3259, %v3220
  %v3261 = vpop.permute.xlu0 %3260
  %v3263 = vadd.f32 %v3254, %v3261
  %v3264 = vadd.f32 %v3255, %v3261
  %v3265 = vadd.f32 %v3256, %v3261
  %v3266 = vadd.f32 %v3257, %v3261
  %v3267 = vmul.f32 %v2929, %v2950
  %v3268 = vmul.f32 %v2930, %v2951
  %v3269 = vmul.f32 %v2931, %v2952
  %v3270 = vmul.f32 %v2932, %v2953
  %v3271 = vadd.f32 %v3267, %v3268
  %v3272 = vadd.f32 %v3271, %v3269
  %v3273 = vadd.f32 %v3272, %v3270
  %3274 = vadd.xlane.f32.xlu0 %v3273
  %v3275 = vpop.xlane.xlu0 %3274
  %v3276 = vmul.f32 %v3267, %v2929
  %v3277 = vmul.f32 %v3268, %v2930
  %v3278 = vmul.f32 %v3269, %v2931
  %v3279 = vmul.f32 %v3270, %v2932
  %v3280 = vadd.f32 %v3276, %v3277
  %v3281 = vadd.f32 %v3280, %v3278
  %v3282 = vadd.f32 %v3281, %v3279
  %3283 = vadd.xlane.f32.xlu0 %v3282
  %v3284 = vpop.xlane.xlu0 %3283
  %v3285 = vrot.slane %v3275, 4
  %v3286 = vadd.f32 %v3275, %v3285
  %v3287 = vrot.slane %v3284, 4
  %v3288 = vadd.f32 %v3284, %v3287
  %v3289 = vmul.f32 %v3286, 0.001953125
  %v3290 = vmul.f32 %v3288, 0.001953125
  %v3291 = vmul.f32 %v3289, %v3289
  %v3292 = vsub.f32 %v3290, %v3291
  %v3293 = vadd.f32 %v3292, 1e-05
  %v3294 = vrsqrt.pop %v3293
  %v3295 = vmul.f32 %v3294, %v3293
  %v3296 = vmul.f32 %v3295, %v3294
  %v3297 = vmul.f32 0.5, %v3296
  %v3298 = vsub.f32 1.5, %v3297
  %v3299 = vmul.f32 %v3294, %v3298
  %vm3300 = vweird.f32 %v3293
  %vm3301 = vweird.f32 %v3294
  %vm3302 = vmor %vm3300, %vm3301
  %v3303 = vsel %vm3302, %v3294, %v3299
  %v3304 = vmul.f32 %v3054, %v3303
  %v3305 = vmul.f32 %v3289, %v3304
  %v3306 = vsub.f32 %v3067, %v3305
  %3308 = vset.pattern.permute.xlu0 0
  %3309 = vperm.xlu0 %3308, %v3304
  %v3310 = vpop.permute.xlu0 %3309
  %v3312 = vmul.f32 %v2929, %v3310
  %v3313 = vmul.f32 %v2930, %v3310
  %v3314 = vmul.f32 %v2931, %v3310
  %v3315 = vmul.f32 %v2932, %v3310
  %v3316 = vadd.f32 %v3263, %v3312
  %v3317 = vadd.f32 %v3264, %v3313
  %v3318 = vadd.f32 %v3265, %v3314
  %v3319 = vadd.f32 %v3266, %v3315
  %3321 = vset.pattern.permute.xlu0 0
  %3322 = vperm.xlu0 %3321, %v3306
  %v3323 = vpop.permute.xlu0 %3322
  %v3325 = vadd.f32 %v3316, %v3323
  %v3326 = vadd.f32 %v3317, %v3323
  %v3327 = vadd.f32 %v3318, %v3323
  %v3328 = vadd.f32 %v3319, %v3323
  %3329 = vst [vmem:[%s5] sm:$0xff] %v3325
  %3330 = vst [vmem:[%s5 + $0x8] sm:$0xff] %v3326
  %3331 = vst [vmem:[%s5 + $0x10] sm:$0xff] %v3327
  %3332 = vst [vmem:[%s5 + $0x18] sm:$0xff] %v3328
  // Predicated region
  $region22: #{ms_forward.1} parent=0 // pred_check
    _
  $region23: #{ms_forward.1} parent=0 // pred_check_branch
    %3334 = sbr.rel (0) target = $region25
  $region24: #{ms_forward.1} parent=0 // pred_region
    _
  $region25: #{ms_forward.1} parent=0 // pred_fallthru
    _
  // Predicated region
  $region26: #{ms_forward.1} parent=0 // pred_check
    _
  $region27: #{ms_forward.1} parent=0 // pred_check_branch
    %3336 = sbr.rel (0) target = $region29
  $region28: #{ms_forward.1} parent=0 // pred_region
    _
  $region29: #{ms_forward.1} parent=0 // pred_fallthru
    _

</llo_original>
